<compile_context>
chip_gen: v7x
topology: tpu7x:2x2x1
jax: 0.10.0
libtpu: 0.0.40
codegen_flags: <defaults>
</compile_context>

<pallas_src>
import functools

import jax
import jax.numpy as jnp
from jax.experimental import pallas as pl
from jax.experimental.pallas import tpu as pltpu


def _gru_chunk_kernel(x_ref, h0_ref, wih_ref, whh_ref, bx_ref, bhn_ref,
                      gamma_ref, beta_ref, out_ref, hn_ref,
                      h_carry, gx_scr, hseq_scr, *,
                      eps, h_true, t_true, need_mask, unroll):
    c = pl.program_id(1)                      # time-chunk index (serial axis)
    tc, bt, d = x_ref.shape
    hp = h_carry.shape[-1]

    # Initialize the hidden-state carry at the first time chunk of this batch tile.
    @pl.when(c == 0)
    def _():
        h_carry[...] = h0_ref[0].astype(jnp.float32)

    # ---- Hoisted input projection for the whole chunk: one big MXU matmul ----
    # (Tc*B, D) @ (D, 3H) + combined bias (b_ih + hidden-side r/z biases).
    x2d = x_ref[...].reshape(tc * bt, d).astype(wih_ref.dtype)
    gx_scr[...] = (
        jnp.dot(x2d, wih_ref[...], preferred_element_type=jnp.float32)
        + bx_ref[...])

    # Hoist the n-gate hidden-bias broadcast out of the (unrolled) serial loop.
    bhn_b = jnp.broadcast_to(bhn_ref[...], (bt, hp)).astype(jnp.float32)

    if need_mask:
        n_valid = jnp.minimum(tc, t_true - c * tc)

    # ---- Serial recurrence over the chunk (the only sequential work) ----
    def step(t, h_prev):
        row = pl.multiple_of(t * bt, bt)
        gx_t = gx_scr[pl.ds(row, bt), :]                      # (B, 3H) f32
        # TODO(synk): make this dot weight-stationary with pltpu.matmul_push_rhs.
        gh = jnp.dot(h_prev.astype(whh_ref.dtype), whh_ref[...],
                     preferred_element_type=jnp.float32)      # (B, 3H) f32
        rz = jax.nn.sigmoid(gx_t[:, 0:2 * hp] + gh[:, 0:2 * hp])
        r = rz[:, 0:hp]
        z = rz[:, hp:2 * hp]
        n = jnp.tanh(gx_t[:, 2 * hp:3 * hp] + r * (gh[:, 2 * hp:3 * hp] + bhn_b))
        h_new = (1.0 - z) * n + z * h_prev                    # (B, H) f32
        if need_mask:
            h_new = jnp.where(t < n_valid, h_new, h_prev)     # freeze past T
        hseq_scr[t] = h_new
        return h_new

    h_last = jax.lax.fori_loop(0, tc, step, h_carry[...], unroll=unroll)
    h_carry[...] = h_last

    # ---- Fused LayerNorm(hidden) + SiLU over the whole chunk at once ----
    # Padded hidden lanes are exactly zero, so sums over Hp equal sums over H.
    hs = hseq_scr[...]                                        # (Tc, B, Hp) f32
    inv_h = jnp.float32(1.0 / h_true)
    s1 = jnp.sum(hs, axis=-1, keepdims=True)
    s2 = jnp.sum(hs * hs, axis=-1, keepdims=True)
    mean = s1 * inv_h
    var = jnp.maximum(s2 * inv_h - mean * mean, 0.0)
    y = (hs - mean) * jax.lax.rsqrt(var + eps) * gamma_ref[...] + beta_ref[...]
    y = y * jax.nn.sigmoid(y)                                 # SiLU
    out_ref[...] = y.astype(out_ref.dtype)

    # Emit the raw final hidden state on the last time chunk.
    @pl.when(c == pl.num_programs(1) - 1)
    def _():
        hn_ref[0] = h_last.astype(hn_ref.dtype)


def _round_up(n, m):
    return ((n + m - 1) // m) * m


def _pad_last(a, new):
    pad = new - a.shape[-1]
    if pad == 0:
        return a
    return jnp.pad(a, [(0, 0)] * (a.ndim - 1) + [(0, pad)])


def gru_forward(x, h0, w_ih, w_hh, b_ih, b_hh, gamma, beta, *,
                eps=1e-5, max_chunk=16, compute_dtype=jnp.bfloat16):
    """x: (T, B, D); h0: (1, B, H); w_ih: (3, D, H); w_hh: (3, H, H);
    b_ih/b_hh: (3, 1, H); gamma/beta: (1, H).
    Returns (activated_output (T, B, H), final_hidden (1, B, H))."""
    T, B, D = x.shape
    H = h0.shape[-1]

    # ---- Lane/sublane-friendly padding: H -> mult of 128, B -> mult of 8 ----
    Hp = _round_up(H, 128)
    Bp = _round_up(B, 8)

    w_ih_pd = _pad_last(w_ih, Hp)                            # (3, D, Hp)
    w_hh_pd = _pad_last(w_hh, Hp)                            # (3, H, Hp)
    if Hp != H:
        w_hh_pd = jnp.pad(w_hh_pd, ((0, 0), (0, Hp - H), (0, 0)))   # (3, Hp, Hp)
    b_ih_pd = _pad_last(b_ih, Hp)
    b_hh_pd = _pad_last(b_hh, Hp)
    gamma_pd = _pad_last(gamma, Hp).astype(jnp.float32)
    beta_pd = _pad_last(beta, Hp).astype(jnp.float32)

    x_p, h0_p = x, h0
    if Bp != B:
        x_p = jnp.pad(x_p, ((0, 0), (0, Bp - B), (0, 0)))
        h0_p = jnp.pad(h0_p, ((0, 0), (0, Bp - B), (0, 0)))
    h0_p = _pad_last(h0_p, Hp)                               # (1, Bp, Hp)

    # Gate-concatenated weights (bf16 by default -> native MXU dtype).
    w_ih_p = jnp.concatenate([w_ih_pd[0], w_ih_pd[1], w_ih_pd[2]],
                             axis=-1).astype(compute_dtype)   # (D, 3Hp)
    w_hh_p = jnp.concatenate([w_hh_pd[0], w_hh_pd[1], w_hh_pd[2]],
                             axis=-1).astype(compute_dtype)   # (Hp, 3Hp)
    # Fold the hidden-side r/z biases into the input-side bias; the n-gate
    # hidden bias stays separate because it is multiplied by r.
    bx = jnp.concatenate([b_ih_pd[0] + b_hh_pd[0],
                          b_ih_pd[1] + b_hh_pd[1],
                          b_ih_pd[2]], axis=-1).astype(jnp.float32)   # (1, 3Hp)
    b_hn = b_hh_pd[2].astype(jnp.float32)                             # (1, Hp)

    # ---- Batch tiling (second TensorCore on v7x when B is large enough) ----
    if Bp >= 16 and (Bp // 2) % 8 == 0:
        Bt = Bp // 2
    else:
        Bt = Bp
    n_bt = Bp // Bt

    # ---- Time chunking: target Tc*B >= 256 (MXU M dim), cap by VMEM scratch ----
    Tc = min(T, max(max_chunk, pl.cdiv(256, Bp)))
    per_step_scratch = Bt * 4 * Hp * 4            # gx (3Hp) + hseq (Hp), f32
    Tc = max(1, min(Tc, (8 << 20) // max(per_step_scratch, 1)))
    n_tc = pl.cdiv(T, Tc)
    need_mask = (T % Tc) != 0

    # Capped unroll (keeps (B,3H) live intermediates within the vreg file).
    step_live = Bt * 3 * Hp * 4
    unroll = int(max(1, min(8, Tc, (32 * 4096) // max(step_live, 1))))

    kernel = functools.partial(_gru_chunk_kernel, eps=eps, h_true=H, t_true=T,
                               need_mask=need_mask, unroll=unroll)

    # ---- VMEM budget: estimate footprint, cap at physical capacity - 8 MiB ----
    io_item = jnp.dtype(x.dtype).itemsize
    w_item = jnp.dtype(compute_dtype).itemsize
    est = (2 * Tc * Bt * D * io_item              # x (double-buffered)
           + 2 * Tc * Bt * Hp * io_item           # out (double-buffered)
           + 4 * Bt * Hp * io_item                # h0 + hn
           + (D + Hp) * 3 * Hp * w_item           # weights (single-buffered)
           + 8 * Hp * 4                           # biases / gamma / beta
           + 4 * (Bt * Hp + Tc * Bt * 3 * Hp + Tc * Bt * Hp))   # f32 scratch
    try:
        cap = int(pltpu.get_tpu_info().vmem_capacity_bytes)
    except Exception:
        cap = 64 << 20                            # conservative (v7x per-TC)
    vmem_limit = int(min(max(int(1.3 * est), 32 << 20), cap - (8 << 20)))

    const = pl.Buffered(1)                        # single-buffer invariants

    out_p, hn_p = pl.pallas_call(
        kernel,
        out_shape=(
            jax.ShapeDtypeStruct((T, Bp, Hp), x.dtype),
            jax.ShapeDtypeStruct((1, Bp, Hp), x.dtype),
        ),
        grid_spec=pltpu.PrefetchScalarGridSpec(
            num_scalar_prefetch=0,
            grid=(n_bt, n_tc),
            in_specs=[
                pl.BlockSpec((Tc, Bt, D), lambda bi, c: (c, bi, 0)),     # x
                pl.BlockSpec((1, Bt, Hp), lambda bi, c: (0, bi, 0)),     # h0
                pl.BlockSpec((D, 3 * Hp), lambda bi, c: (0, 0),
                             pipeline_mode=const),                       # w_ih
                pl.BlockSpec((Hp, 3 * Hp), lambda bi, c: (0, 0),
                             pipeline_mode=const),                       # w_hh
                pl.BlockSpec((1, 3 * Hp), lambda bi, c: (0, 0),
                             pipeline_mode=const),                       # bx
                pl.BlockSpec((1, Hp), lambda bi, c: (0, 0),
                             pipeline_mode=const),                       # b_hn
                pl.BlockSpec((1, Hp), lambda bi, c: (0, 0),
                             pipeline_mode=const),                       # gamma
                pl.BlockSpec((1, Hp), lambda bi, c: (0, 0),
                             pipeline_mode=const),                       # beta
            ],
            out_specs=[
                pl.BlockSpec((Tc, Bt, Hp), lambda bi, c: (c, bi, 0)),    # out
                pl.BlockSpec((1, Bt, Hp), lambda bi, c: (0, bi, 0)),     # h_n
            ],
            scratch_shapes=[
                pltpu.VMEM((Bt, Hp), jnp.float32),              # h carry
                pltpu.VMEM((Tc * Bt, 3 * Hp), jnp.float32),     # input-proj gates
                pltpu.VMEM((Tc, Bt, Hp), jnp.float32),          # raw h outputs
            ],
        ),
        compiler_params=pltpu.CompilerParams(
            dimension_semantics=("parallel", "arbitrary"),
            vmem_limit_bytes=vmem_limit),
    )(x_p, h0_p, w_ih_p, w_hh_p, bx, b_hn, gamma_pd, beta_pd)

    # Strip batch / hidden padding.
    return out_p[:, :B, :H], hn_p[:, :B, :H]


def gru_reference(x, h0, w_ih, w_hh, b_ih, b_hh, gamma, beta, eps=1e-5):
    """Pure-JAX reference (lax.scan) mirroring torch.nn.GRU + LayerNorm + SiLU."""
    def step(h, x_t):
        i_r = x_t @ w_ih[0] + b_ih[0]
        i_z = x_t @ w_ih[1] + b_ih[1]
        i_n = x_t @ w_ih[2] + b_ih[2]
        h_r = h @ w_hh[0] + b_hh[0]
        h_z = h @ w_hh[1] + b_hh[1]
        h_n = h @ w_hh[2] + b_hh[2]
        r = jax.nn.sigmoid(i_r + h_r)
        z = jax.nn.sigmoid(i_z + h_z)
        n = jnp.tanh(i_n + r * h_n)
        h_new = (1.0 - z) * n + z * h
        return h_new, h_new

    h_final, outs = jax.lax.scan(step, h0[0], x)
    mean = jnp.mean(outs, axis=-1, keepdims=True)
    var = jnp.mean(jnp.square(outs - mean), axis=-1, keepdims=True)
    y = (outs - mean) * jax.lax.rsqrt(var + eps) * gamma + beta
    y = y * jax.nn.sigmoid(y)
    return y, h_final[None]


if __name__ == "__main__":
    # Small shapes consistent with nn.GRU(input_dim, hidden_dim).
    T, B, D, H = 8, 8, 16, 32

    key = jax.random.PRNGKey(0)
    k = jax.random.split(key, 6)
    scale = 1.0 / jnp.sqrt(H)  # torch.nn.GRU default init: U(-1/sqrt(H), 1/sqrt(H))

    x = jax.random.normal(k[0], (T, B, D), dtype=jnp.float32)
    h0 = jax.random.normal(k[1], (1, B, H), dtype=jnp.float32)

    w_ih = jax.random.uniform(k[2], (3, D, H), jnp.float32, -scale, scale)
    w_hh = jax.random.uniform(k[3], (3, H, H), jnp.float32, -scale, scale)
    b_ih = jax.random.uniform(k[4], (3, 1, H), jnp.float32, -scale, scale)
    b_hh = jax.random.uniform(k[5], (3, 1, H), jnp.float32, -scale, scale)
    gamma = jnp.ones((1, H), jnp.float32)   # LayerNorm weight
    beta = jnp.zeros((1, H), jnp.float32)   # LayerNorm bias

    out_ref, h_n_ref = gru_reference(x, h0, w_ih, w_hh, b_ih, b_hh, gamma, beta)

    # f32 compute path: tight numerical check against the pure-JAX reference.
    out32, hn32 = gru_forward(x, h0, w_ih, w_hh, b_ih, b_hh, gamma, beta,
                              compute_dtype=jnp.float32)
    jax.block_until_ready((out32, hn32))
    assert out32.shape == (T, B, H) and hn32.shape == (1, B, H)
    assert jnp.allclose(out32, out_ref, atol=1e-4, rtol=1e-4)
    assert jnp.allclose(hn32, h_n_ref, atol=1e-4, rtol=1e-4)

    # Default bf16-MXU path: looser consistency / sanity check.
    out16, hn16 = gru_forward(x, h0, w_ih, w_hh, b_ih, b_hh, gamma, beta)
    jax.block_until_ready((out16, hn16))
    assert out16.shape == (T, B, H) and hn16.shape == (1, B, H)
    assert bool(jnp.all(jnp.isfinite(out16))) and bool(jnp.all(jnp.isfinite(hn16)))
    assert jnp.allclose(out16, out_ref, atol=1e-1, rtol=1e-1)
    assert jnp.allclose(hn16, h_n_ref, atol=1e-1, rtol=1e-1)

    print("KERNEL_OK")
</pallas_src>

<mosaic_0001>
module attributes {stable_mosaic.version = 11 : i64} {
  func.func @_gru_chunk_kernel(%arg0: i32, %arg1: i32, %arg2: memref<8x8x16xf32, #tpu.memory_space<vmem>>, %arg3: memref<1x8x128xf32, #tpu.memory_space<vmem>>, %arg4: memref<16x384xf32, #tpu.memory_space<vmem>>, %arg5: memref<128x384xf32, #tpu.memory_space<vmem>>, %arg6: memref<1x384xf32, #tpu.memory_space<vmem>>, %arg7: memref<1x128xf32, #tpu.memory_space<vmem>>, %arg8: memref<1x128xf32, #tpu.memory_space<vmem>>, %arg9: memref<1x128xf32, #tpu.memory_space<vmem>>, %arg10: memref<8x8x128xf32, #tpu.memory_space<vmem>>, %arg11: memref<1x8x128xf32, #tpu.memory_space<vmem>>, %arg12: memref<8x128xf32, #tpu.memory_space<vmem>>, %arg13: memref<64x384xf32, #tpu.memory_space<vmem>>, %arg14: memref<8x8x128xf32, #tpu.memory_space<vmem>>) attributes {dimension_semantics = [#tpu.dimension_semantics<parallel>, #tpu.dimension_semantics<arbitrary>], iteration_bounds = array<i64: 1, 1>, scalar_prefetch = 0 : i64, scratch_operands = 3 : i64, tpu.core_type = #tpu.core_type<tc>, window_params = [{transform_indices = @transform_0, window_bounds = array<i64: 8, 8, 16>}, {transform_indices = @transform_1, window_bounds = array<i64: 1, 8, 128>}, {pipeline_mode = #tpu.pipeline_mode<synchronous>, transform_indices = @transform_2, window_bounds = array<i64: 16, 384>}, {pipeline_mode = #tpu.pipeline_mode<synchronous>, transform_indices = @transform_3, window_bounds = array<i64: 128, 384>}, {pipeline_mode = #tpu.pipeline_mode<synchronous>, transform_indices = @transform_4, window_bounds = array<i64: 1, 384>}, {pipeline_mode = #tpu.pipeline_mode<synchronous>, transform_indices = @transform_5, window_bounds = array<i64: 1, 128>}, {pipeline_mode = #tpu.pipeline_mode<synchronous>, transform_indices = @transform_6, window_bounds = array<i64: 1, 128>}, {pipeline_mode = #tpu.pipeline_mode<synchronous>, transform_indices = @transform_7, window_bounds = array<i64: 1, 128>}, {transform_indices = @transform_8, window_bounds = array<i64: 8, 8, 128>}, {transform_indices = @transform_9, window_bounds = array<i64: 1, 8, 128>}]} {
    %c0_i32 = arith.constant 0 : i32
    %0 = arith.cmpi eq, %arg1, %c0_i32 : i32
    %1 = arith.extui %0 : i1 to i32
    %c0_i32_0 = arith.constant 0 : i32
    %2 = arith.cmpi ne, %1, %c0_i32_0 : i32
    scf.if %2 {
      %c0_107 = arith.constant 0 : index
      %c0_108 = arith.constant 0 : index
      %c0_109 = arith.constant 0 : index
      %303 = vector.load %arg3[%c0_107, %c0_108, %c0_109] : memref<1x8x128xf32, #tpu.memory_space<vmem>>, vector<1x8x128xf32>
      %304 = vector.shape_cast %303 : vector<1x8x128xf32> to vector<8x128xf32>
      %c0_110 = arith.constant 0 : index
      %c0_111 = arith.constant 0 : index
      %305 = vector.load %arg12[%c0_110, %c0_111] : memref<8x128xf32, #tpu.memory_space<vmem>>, vector<8x128xf32>
      tpu.vector_store %arg12[%c0_110, %c0_111], %304 {strides = array<i32>} : memref<8x128xf32, #tpu.memory_space<vmem>>, vector<8x128xf32>,
    } else {
    }
    %c0 = arith.constant 0 : index
    %c0_1 = arith.constant 0 : index
    %c0_2 = arith.constant 0 : index
    %3 = vector.load %arg2[%c0, %c0_1, %c0_2] : memref<8x8x16xf32, #tpu.memory_space<vmem>>, vector<8x8x16xf32>
    %4 = vector.shape_cast %3 : vector<8x8x16xf32> to vector<64x16xf32>
    %c0_3 = arith.constant 0 : index
    %c0_4 = arith.constant 0 : index
    %5 = vector.load %arg4[%c0_3, %c0_4] : memref<16x384xf32, #tpu.memory_space<vmem>>, vector<16x384xf32>
    %cst = arith.constant dense<0.000000e+00> : vector<64x384xf32>
    %6 = tpu.matmul %4, %5, %cst {dimension_numbers = #tpu.dot_dimension_numbers<[1], [0], [0], [1], [0, 0, 1, 1], [], []>} : vector<64x16xf32>, vector<16x384xf32>, vector<64x384xf32> -> vector<64x384xf32>
    %c0_5 = arith.constant 0 : index
    %c0_6 = arith.constant 0 : index
    %7 = vector.load %arg6[%c0_5, %c0_6] : memref<1x384xf32, #tpu.memory_space<vmem>>, vector<1x384xf32>
    %8 = vector.broadcast %7 : vector<1x384xf32> to vector<64x384xf32>
    %9 = arith.addf %6, %8 : vector<64x384xf32>
    %c0_7 = arith.constant 0 : index
    %c0_8 = arith.constant 0 : index
    %10 = vector.load %arg13[%c0_7, %c0_8] : memref<64x384xf32, #tpu.memory_space<vmem>>, vector<64x384xf32>
    tpu.vector_store %arg13[%c0_7, %c0_8], %9 {strides = array<i32>} : memref<64x384xf32, #tpu.memory_space<vmem>>, vector<64x384xf32>,
    %c0_9 = arith.constant 0 : index
    %c0_10 = arith.constant 0 : index
    %11 = vector.load %arg7[%c0_9, %c0_10] : memref<1x128xf32, #tpu.memory_space<vmem>>, vector<1x128xf32>
    %12 = vector.shape_cast %11 : vector<1x128xf32> to vector<1x128xf32>
    %13 = vector.broadcast %12 : vector<1x128xf32> to vector<8x128xf32>
    %c0_11 = arith.constant 0 : index
    %c0_12 = arith.constant 0 : index
    %14 = vector.load %arg12[%c0_11, %c0_12] : memref<8x128xf32, #tpu.memory_space<vmem>>, vector<8x128xf32>
    %c0_i32_13 = arith.constant 0 : i32
    %c8_i32 = arith.constant 8 : i32
    %15 = arith.muli %c0_i32_13, %c8_i32 : i32
    %16 = tpu.assume_multiple %15, 8 : i32
    %17 = arith.index_cast %16 : i32 to index
    %c0_14 = arith.constant 0 : index
    %18 = vector.load %arg13[%17, %c0_14] : memref<64x384xf32, #tpu.memory_space<vmem>>, vector<8x384xf32>
    %c0_15 = arith.constant 0 : index
    %c0_16 = arith.constant 0 : index
    %19 = vector.load %arg5[%c0_15, %c0_16] : memref<128x384xf32, #tpu.memory_space<vmem>>, vector<128x384xf32>
    %cst_17 = arith.constant dense<0.000000e+00> : vector<8x384xf32>
    %20 = tpu.matmul %14, %19, %cst_17 {dimension_numbers = #tpu.dot_dimension_numbers<[1], [0], [0], [1], [0, 0, 1, 1], [], []>} : vector<8x128xf32>, vector<128x384xf32>, vector<8x384xf32> -> vector<8x384xf32>
    %21 = vector.extract_strided_slice %18 {offsets = [0, 0], sizes = [8, 256], strides = [1, 1]} : vector<8x384xf32> to vector<8x256xf32>
    %22 = vector.extract_strided_slice %20 {offsets = [0, 0], sizes = [8, 256], strides = [1, 1]} : vector<8x384xf32> to vector<8x256xf32>
    %23 = arith.addf %21, %22 : vector<8x256xf32>
    %24 = arith.negf %23 : vector<8x256xf32>
    %25 = math.exp %24 : vector<8x256xf32>
    %cst_18 = arith.constant 1.000000e+00 : f32
    %26 = vector.broadcast %cst_18 : f32 to vector<8x256xf32>
    %27 = arith.addf %26, %25 : vector<8x256xf32>
    %28 = arith.divf %26, %27 : vector<8x256xf32>
    %29 = vector.extract_strided_slice %28 {offsets = [0, 0], sizes = [8, 128], strides = [1, 1]} : vector<8x256xf32> to vector<8x128xf32>
    %30 = vector.extract_strided_slice %28 {offsets = [0, 128], sizes = [8, 128], strides = [1, 1]} : vector<8x256xf32> to vector<8x128xf32>
    %31 = vector.extract_strided_slice %18 {offsets = [0, 256], sizes = [8, 128], strides = [1, 1]} : vector<8x384xf32> to vector<8x128xf32>
    %32 = vector.extract_strided_slice %20 {offsets = [0, 256], sizes = [8, 128], strides = [1, 1]} : vector<8x384xf32> to vector<8x128xf32>
    %33 = arith.addf %32, %13 : vector<8x128xf32>
    %34 = arith.mulf %29, %33 : vector<8x128xf32>
    %35 = arith.addf %31, %34 : vector<8x128xf32>
    %36 = math.tanh %35 : vector<8x128xf32>
    %cst_19 = arith.constant 1.000000e+00 : f32
    %37 = vector.broadcast %cst_19 : f32 to vector<8x128xf32>
    %38 = arith.subf %37, %30 : vector<8x128xf32>
    %39 = arith.mulf %38, %36 : vector<8x128xf32>
    %40 = arith.mulf %30, %14 : vector<8x128xf32>
    %41 = arith.addf %39, %40 : vector<8x128xf32>
    %42 = arith.index_cast %c0_i32_13 : i32 to index
    %c0_20 = arith.constant 0 : index
    %c0_21 = arith.constant 0 : index
    %43 = vector.load %arg14[%42, %c0_20, %c0_21] : memref<8x8x128xf32, #tpu.memory_space<vmem>>, vector<1x8x128xf32>
    %44 = vector.shape_cast %43 : vector<1x8x128xf32> to vector<8x128xf32>
    %45 = vector.shape_cast %41 : vector<8x128xf32> to vector<1x8x128xf32>
    tpu.vector_store %arg14[%42, %c0_20, %c0_21], %45 {strides = array<i32>} : memref<8x8x128xf32, #tpu.memory_space<vmem>>, vector<1x8x128xf32>,
    %c1_i32 = arith.constant 1 : i32
    %c8_i32_22 = arith.constant 8 : i32
    %46 = arith.muli %c1_i32, %c8_i32_22 : i32
    %47 = tpu.assume_multiple %46, 8 : i32
    %48 = arith.index_cast %47 : i32 to index
    %c0_23 = arith.constant 0 : index
    %49 = vector.load %arg13[%48, %c0_23] : memref<64x384xf32, #tpu.memory_space<vmem>>, vector<8x384xf32>
    %c0_24 = arith.constant 0 : index
    %c0_25 = arith.constant 0 : index
    %50 = vector.load %arg5[%c0_24, %c0_25] : memref<128x384xf32, #tpu.memory_space<vmem>>, vector<128x384xf32>
    %cst_26 = arith.constant dense<0.000000e+00> : vector<8x384xf32>
    %51 = tpu.matmul %41, %50, %cst_26 {dimension_numbers = #tpu.dot_dimension_numbers<[1], [0], [0], [1], [0, 0, 1, 1], [], []>} : vector<8x128xf32>, vector<128x384xf32>, vector<8x384xf32> -> vector<8x384xf32>
    %52 = vector.extract_strided_slice %49 {offsets = [0, 0], sizes = [8, 256], strides = [1, 1]} : vector<8x384xf32> to vector<8x256xf32>
    %53 = vector.extract_strided_slice %51 {offsets = [0, 0], sizes = [8, 256], strides = [1, 1]} : vector<8x384xf32> to vector<8x256xf32>
    %54 = arith.addf %52, %53 : vector<8x256xf32>
    %55 = arith.negf %54 : vector<8x256xf32>
    %56 = math.exp %55 : vector<8x256xf32>
    %cst_27 = arith.constant 1.000000e+00 : f32
    %57 = vector.broadcast %cst_27 : f32 to vector<8x256xf32>
    %58 = arith.addf %57, %56 : vector<8x256xf32>
    %59 = arith.divf %57, %58 : vector<8x256xf32>
    %60 = vector.extract_strided_slice %59 {offsets = [0, 0], sizes = [8, 128], strides = [1, 1]} : vector<8x256xf32> to vector<8x128xf32>
    %61 = vector.extract_strided_slice %59 {offsets = [0, 128], sizes = [8, 128], strides = [1, 1]} : vector<8x256xf32> to vector<8x128xf32>
    %62 = vector.extract_strided_slice %49 {offsets = [0, 256], sizes = [8, 128], strides = [1, 1]} : vector<8x384xf32> to vector<8x128xf32>
    %63 = vector.extract_strided_slice %51 {offsets = [0, 256], sizes = [8, 128], strides = [1, 1]} : vector<8x384xf32> to vector<8x128xf32>
    %64 = arith.addf %63, %13 : vector<8x128xf32>
    %65 = arith.mulf %60, %64 : vector<8x128xf32>
    %66 = arith.addf %62, %65 : vector<8x128xf32>
    %67 = math.tanh %66 : vector<8x128xf32>
    %cst_28 = arith.constant 1.000000e+00 : f32
    %68 = vector.broadcast %cst_28 : f32 to vector<8x128xf32>
    %69 = arith.subf %68, %61 : vector<8x128xf32>
    %70 = arith.mulf %69, %67 : vector<8x128xf32>
    %71 = arith.mulf %61, %41 : vector<8x128xf32>
    %72 = arith.addf %70, %71 : vector<8x128xf32>
    %73 = arith.index_cast %c1_i32 : i32 to index
    %c0_29 = arith.constant 0 : index
    %c0_30 = arith.constant 0 : index
    %74 = vector.load %arg14[%73, %c0_29, %c0_30] : memref<8x8x128xf32, #tpu.memory_space<vmem>>, vector<1x8x128xf32>
    %75 = vector.shape_cast %74 : vector<1x8x128xf32> to vector<8x128xf32>
    %76 = vector.shape_cast %72 : vector<8x128xf32> to vector<1x8x128xf32>
    tpu.vector_store %arg14[%73, %c0_29, %c0_30], %76 {strides = array<i32>} : memref<8x8x128xf32, #tpu.memory_space<vmem>>, vector<1x8x128xf32>,
    %c2_i32 = arith.constant 2 : i32
    %c8_i32_31 = arith.constant 8 : i32
    %77 = arith.muli %c2_i32, %c8_i32_31 : i32
    %78 = tpu.assume_multiple %77, 8 : i32
    %79 = arith.index_cast %78 : i32 to index
    %c0_32 = arith.constant 0 : index
    %80 = vector.load %arg13[%79, %c0_32] : memref<64x384xf32, #tpu.memory_space<vmem>>, vector<8x384xf32>
    %c0_33 = arith.constant 0 : index
    %c0_34 = arith.constant 0 : index
    %81 = vector.load %arg5[%c0_33, %c0_34] : memref<128x384xf32, #tpu.memory_space<vmem>>, vector<128x384xf32>
    %cst_35 = arith.constant dense<0.000000e+00> : vector<8x384xf32>
    %82 = tpu.matmul %72, %81, %cst_35 {dimension_numbers = #tpu.dot_dimension_numbers<[1], [0], [0], [1], [0, 0, 1, 1], [], []>} : vector<8x128xf32>, vector<128x384xf32>, vector<8x384xf32> -> vector<8x384xf32>
    %83 = vector.extract_strided_slice %80 {offsets = [0, 0], sizes = [8, 256], strides = [1, 1]} : vector<8x384xf32> to vector<8x256xf32>
    %84 = vector.extract_strided_slice %82 {offsets = [0, 0], sizes = [8, 256], strides = [1, 1]} : vector<8x384xf32> to vector<8x256xf32>
    %85 = arith.addf %83, %84 : vector<8x256xf32>
    %86 = arith.negf %85 : vector<8x256xf32>
    %87 = math.exp %86 : vector<8x256xf32>
    %cst_36 = arith.constant 1.000000e+00 : f32
    %88 = vector.broadcast %cst_36 : f32 to vector<8x256xf32>
    %89 = arith.addf %88, %87 : vector<8x256xf32>
    %90 = arith.divf %88, %89 : vector<8x256xf32>
    %91 = vector.extract_strided_slice %90 {offsets = [0, 0], sizes = [8, 128], strides = [1, 1]} : vector<8x256xf32> to vector<8x128xf32>
    %92 = vector.extract_strided_slice %90 {offsets = [0, 128], sizes = [8, 128], strides = [1, 1]} : vector<8x256xf32> to vector<8x128xf32>
    %93 = vector.extract_strided_slice %80 {offsets = [0, 256], sizes = [8, 128], strides = [1, 1]} : vector<8x384xf32> to vector<8x128xf32>
    %94 = vector.extract_strided_slice %82 {offsets = [0, 256], sizes = [8, 128], strides = [1, 1]} : vector<8x384xf32> to vector<8x128xf32>
    %95 = arith.addf %94, %13 : vector<8x128xf32>
    %96 = arith.mulf %91, %95 : vector<8x128xf32>
    %97 = arith.addf %93, %96 : vector<8x128xf32>
    %98 = math.tanh %97 : vector<8x128xf32>
    %cst_37 = arith.constant 1.000000e+00 : f32
    %99 = vector.broadcast %cst_37 : f32 to vector<8x128xf32>
    %100 = arith.subf %99, %92 : vector<8x128xf32>
    %101 = arith.mulf %100, %98 : vector<8x128xf32>
    %102 = arith.mulf %92, %72 : vector<8x128xf32>
    %103 = arith.addf %101, %102 : vector<8x128xf32>
    %104 = arith.index_cast %c2_i32 : i32 to index
    %c0_38 = arith.constant 0 : index
    %c0_39 = arith.constant 0 : index
    %105 = vector.load %arg14[%104, %c0_38, %c0_39] : memref<8x8x128xf32, #tpu.memory_space<vmem>>, vector<1x8x128xf32>
    %106 = vector.shape_cast %105 : vector<1x8x128xf32> to vector<8x128xf32>
    %107 = vector.shape_cast %103 : vector<8x128xf32> to vector<1x8x128xf32>
    tpu.vector_store %arg14[%104, %c0_38, %c0_39], %107 {strides = array<i32>} : memref<8x8x128xf32, #tpu.memory_space<vmem>>, vector<1x8x128xf32>,
    %c3_i32 = arith.constant 3 : i32
    %c8_i32_40 = arith.constant 8 : i32
    %108 = arith.muli %c3_i32, %c8_i32_40 : i32
    %109 = tpu.assume_multiple %108, 8 : i32
    %110 = arith.index_cast %109 : i32 to index
    %c0_41 = arith.constant 0 : index
    %111 = vector.load %arg13[%110, %c0_41] : memref<64x384xf32, #tpu.memory_space<vmem>>, vector<8x384xf32>
    %c0_42 = arith.constant 0 : index
    %c0_43 = arith.constant 0 : index
    %112 = vector.load %arg5[%c0_42, %c0_43] : memref<128x384xf32, #tpu.memory_space<vmem>>, vector<128x384xf32>
    %cst_44 = arith.constant dense<0.000000e+00> : vector<8x384xf32>
    %113 = tpu.matmul %103, %112, %cst_44 {dimension_numbers = #tpu.dot_dimension_numbers<[1], [0], [0], [1], [0, 0, 1, 1], [], []>} : vector<8x128xf32>, vector<128x384xf32>, vector<8x384xf32> -> vector<8x384xf32>
    %114 = vector.extract_strided_slice %111 {offsets = [0, 0], sizes = [8, 256], strides = [1, 1]} : vector<8x384xf32> to vector<8x256xf32>
    %115 = vector.extract_strided_slice %113 {offsets = [0, 0], sizes = [8, 256], strides = [1, 1]} : vector<8x384xf32> to vector<8x256xf32>
    %116 = arith.addf %114, %115 : vector<8x256xf32>
    %117 = arith.negf %116 : vector<8x256xf32>
    %118 = math.exp %117 : vector<8x256xf32>
    %cst_45 = arith.constant 1.000000e+00 : f32
    %119 = vector.broadcast %cst_45 : f32 to vector<8x256xf32>
    %120 = arith.addf %119, %118 : vector<8x256xf32>
    %121 = arith.divf %119, %120 : vector<8x256xf32>
    %122 = vector.extract_strided_slice %121 {offsets = [0, 0], sizes = [8, 128], strides = [1, 1]} : vector<8x256xf32> to vector<8x128xf32>
    %123 = vector.extract_strided_slice %121 {offsets = [0, 128], sizes = [8, 128], strides = [1, 1]} : vector<8x256xf32> to vector<8x128xf32>
    %124 = vector.extract_strided_slice %111 {offsets = [0, 256], sizes = [8, 128], strides = [1, 1]} : vector<8x384xf32> to vector<8x128xf32>
    %125 = vector.extract_strided_slice %113 {offsets = [0, 256], sizes = [8, 128], strides = [1, 1]} : vector<8x384xf32> to vector<8x128xf32>
    %126 = arith.addf %125, %13 : vector<8x128xf32>
    %127 = arith.mulf %122, %126 : vector<8x128xf32>
    %128 = arith.addf %124, %127 : vector<8x128xf32>
    %129 = math.tanh %128 : vector<8x128xf32>
    %cst_46 = arith.constant 1.000000e+00 : f32
    %130 = vector.broadcast %cst_46 : f32 to vector<8x128xf32>
    %131 = arith.subf %130, %123 : vector<8x128xf32>
    %132 = arith.mulf %131, %129 : vector<8x128xf32>
    %133 = arith.mulf %123, %103 : vector<8x128xf32>
    %134 = arith.addf %132, %133 : vector<8x128xf32>
    %135 = arith.index_cast %c3_i32 : i32 to index
    %c0_47 = arith.constant 0 : index
    %c0_48 = arith.constant 0 : index
    %136 = vector.load %arg14[%135, %c0_47, %c0_48] : memref<8x8x128xf32, #tpu.memory_space<vmem>>, vector<1x8x128xf32>
    %137 = vector.shape_cast %136 : vector<1x8x128xf32> to vector<8x128xf32>
    %138 = vector.shape_cast %134 : vector<8x128xf32> to vector<1x8x128xf32>
    tpu.vector_store %arg14[%135, %c0_47, %c0_48], %138 {strides = array<i32>} : memref<8x8x128xf32, #tpu.memory_space<vmem>>, vector<1x8x128xf32>,
    %c4_i32 = arith.constant 4 : i32
    %c8_i32_49 = arith.constant 8 : i32
    %139 = arith.muli %c4_i32, %c8_i32_49 : i32
    %140 = tpu.assume_multiple %139, 8 : i32
    %141 = arith.index_cast %140 : i32 to index
    %c0_50 = arith.constant 0 : index
    %142 = vector.load %arg13[%141, %c0_50] : memref<64x384xf32, #tpu.memory_space<vmem>>, vector<8x384xf32>
    %c0_51 = arith.constant 0 : index
    %c0_52 = arith.constant 0 : index
    %143 = vector.load %arg5[%c0_51, %c0_52] : memref<128x384xf32, #tpu.memory_space<vmem>>, vector<128x384xf32>
    %cst_53 = arith.constant dense<0.000000e+00> : vector<8x384xf32>
    %144 = tpu.matmul %134, %143, %cst_53 {dimension_numbers = #tpu.dot_dimension_numbers<[1], [0], [0], [1], [0, 0, 1, 1], [], []>} : vector<8x128xf32>, vector<128x384xf32>, vector<8x384xf32> -> vector<8x384xf32>
    %145 = vector.extract_strided_slice %142 {offsets = [0, 0], sizes = [8, 256], strides = [1, 1]} : vector<8x384xf32> to vector<8x256xf32>
    %146 = vector.extract_strided_slice %144 {offsets = [0, 0], sizes = [8, 256], strides = [1, 1]} : vector<8x384xf32> to vector<8x256xf32>
    %147 = arith.addf %145, %146 : vector<8x256xf32>
    %148 = arith.negf %147 : vector<8x256xf32>
    %149 = math.exp %148 : vector<8x256xf32>
    %cst_54 = arith.constant 1.000000e+00 : f32
    %150 = vector.broadcast %cst_54 : f32 to vector<8x256xf32>
    %151 = arith.addf %150, %149 : vector<8x256xf32>
    %152 = arith.divf %150, %151 : vector<8x256xf32>
    %153 = vector.extract_strided_slice %152 {offsets = [0, 0], sizes = [8, 128], strides = [1, 1]} : vector<8x256xf32> to vector<8x128xf32>
    %154 = vector.extract_strided_slice %152 {offsets = [0, 128], sizes = [8, 128], strides = [1, 1]} : vector<8x256xf32> to vector<8x128xf32>
    %155 = vector.extract_strided_slice %142 {offsets = [0, 256], sizes = [8, 128], strides = [1, 1]} : vector<8x384xf32> to vector<8x128xf32>
    %156 = vector.extract_strided_slice %144 {offsets = [0, 256], sizes = [8, 128], strides = [1, 1]} : vector<8x384xf32> to vector<8x128xf32>
    %157 = arith.addf %156, %13 : vector<8x128xf32>
    %158 = arith.mulf %153, %157 : vector<8x128xf32>
    %159 = arith.addf %155, %158 : vector<8x128xf32>
    %160 = math.tanh %159 : vector<8x128xf32>
    %cst_55 = arith.constant 1.000000e+00 : f32
    %161 = vector.broadcast %cst_55 : f32 to vector<8x128xf32>
    %162 = arith.subf %161, %154 : vector<8x128xf32>
    %163 = arith.mulf %162, %160 : vector<8x128xf32>
    %164 = arith.mulf %154, %134 : vector<8x128xf32>
    %165 = arith.addf %163, %164 : vector<8x128xf32>
    %166 = arith.index_cast %c4_i32 : i32 to index
    %c0_56 = arith.constant 0 : index
    %c0_57 = arith.constant 0 : index
    %167 = vector.load %arg14[%166, %c0_56, %c0_57] : memref<8x8x128xf32, #tpu.memory_space<vmem>>, vector<1x8x128xf32>
    %168 = vector.shape_cast %167 : vector<1x8x128xf32> to vector<8x128xf32>
    %169 = vector.shape_cast %165 : vector<8x128xf32> to vector<1x8x128xf32>
    tpu.vector_store %arg14[%166, %c0_56, %c0_57], %169 {strides = array<i32>} : memref<8x8x128xf32, #tpu.memory_space<vmem>>, vector<1x8x128xf32>,
    %c5_i32 = arith.constant 5 : i32
    %c8_i32_58 = arith.constant 8 : i32
    %170 = arith.muli %c5_i32, %c8_i32_58 : i32
    %171 = tpu.assume_multiple %170, 8 : i32
    %172 = arith.index_cast %171 : i32 to index
    %c0_59 = arith.constant 0 : index
    %173 = vector.load %arg13[%172, %c0_59] : memref<64x384xf32, #tpu.memory_space<vmem>>, vector<8x384xf32>
    %c0_60 = arith.constant 0 : index
    %c0_61 = arith.constant 0 : index
    %174 = vector.load %arg5[%c0_60, %c0_61] : memref<128x384xf32, #tpu.memory_space<vmem>>, vector<128x384xf32>
    %cst_62 = arith.constant dense<0.000000e+00> : vector<8x384xf32>
    %175 = tpu.matmul %165, %174, %cst_62 {dimension_numbers = #tpu.dot_dimension_numbers<[1], [0], [0], [1], [0, 0, 1, 1], [], []>} : vector<8x128xf32>, vector<128x384xf32>, vector<8x384xf32> -> vector<8x384xf32>
    %176 = vector.extract_strided_slice %173 {offsets = [0, 0], sizes = [8, 256], strides = [1, 1]} : vector<8x384xf32> to vector<8x256xf32>
    %177 = vector.extract_strided_slice %175 {offsets = [0, 0], sizes = [8, 256], strides = [1, 1]} : vector<8x384xf32> to vector<8x256xf32>
    %178 = arith.addf %176, %177 : vector<8x256xf32>
    %179 = arith.negf %178 : vector<8x256xf32>
    %180 = math.exp %179 : vector<8x256xf32>
    %cst_63 = arith.constant 1.000000e+00 : f32
    %181 = vector.broadcast %cst_63 : f32 to vector<8x256xf32>
    %182 = arith.addf %181, %180 : vector<8x256xf32>
    %183 = arith.divf %181, %182 : vector<8x256xf32>
    %184 = vector.extract_strided_slice %183 {offsets = [0, 0], sizes = [8, 128], strides = [1, 1]} : vector<8x256xf32> to vector<8x128xf32>
    %185 = vector.extract_strided_slice %183 {offsets = [0, 128], sizes = [8, 128], strides = [1, 1]} : vector<8x256xf32> to vector<8x128xf32>
    %186 = vector.extract_strided_slice %173 {offsets = [0, 256], sizes = [8, 128], strides = [1, 1]} : vector<8x384xf32> to vector<8x128xf32>
    %187 = vector.extract_strided_slice %175 {offsets = [0, 256], sizes = [8, 128], strides = [1, 1]} : vector<8x384xf32> to vector<8x128xf32>
    %188 = arith.addf %187, %13 : vector<8x128xf32>
    %189 = arith.mulf %184, %188 : vector<8x128xf32>
    %190 = arith.addf %186, %189 : vector<8x128xf32>
    %191 = math.tanh %190 : vector<8x128xf32>
    %cst_64 = arith.constant 1.000000e+00 : f32
    %192 = vector.broadcast %cst_64 : f32 to vector<8x128xf32>
    %193 = arith.subf %192, %185 : vector<8x128xf32>
    %194 = arith.mulf %193, %191 : vector<8x128xf32>
    %195 = arith.mulf %185, %165 : vector<8x128xf32>
    %196 = arith.addf %194, %195 : vector<8x128xf32>
    %197 = arith.index_cast %c5_i32 : i32 to index
    %c0_65 = arith.constant 0 : index
    %c0_66 = arith.constant 0 : index
    %198 = vector.load %arg14[%197, %c0_65, %c0_66] : memref<8x8x128xf32, #tpu.memory_space<vmem>>, vector<1x8x128xf32>
    %199 = vector.shape_cast %198 : vector<1x8x128xf32> to vector<8x128xf32>
    %200 = vector.shape_cast %196 : vector<8x128xf32> to vector<1x8x128xf32>
    tpu.vector_store %arg14[%197, %c0_65, %c0_66], %200 {strides = array<i32>} : memref<8x8x128xf32, #tpu.memory_space<vmem>>, vector<1x8x128xf32>,
    %c6_i32 = arith.constant 6 : i32
    %c8_i32_67 = arith.constant 8 : i32
    %201 = arith.muli %c6_i32, %c8_i32_67 : i32
    %202 = tpu.assume_multiple %201, 8 : i32
    %203 = arith.index_cast %202 : i32 to index
    %c0_68 = arith.constant 0 : index
    %204 = vector.load %arg13[%203, %c0_68] : memref<64x384xf32, #tpu.memory_space<vmem>>, vector<8x384xf32>
    %c0_69 = arith.constant 0 : index
    %c0_70 = arith.constant 0 : index
    %205 = vector.load %arg5[%c0_69, %c0_70] : memref<128x384xf32, #tpu.memory_space<vmem>>, vector<128x384xf32>
    %cst_71 = arith.constant dense<0.000000e+00> : vector<8x384xf32>
    %206 = tpu.matmul %196, %205, %cst_71 {dimension_numbers = #tpu.dot_dimension_numbers<[1], [0], [0], [1], [0, 0, 1, 1], [], []>} : vector<8x128xf32>, vector<128x384xf32>, vector<8x384xf32> -> vector<8x384xf32>
    %207 = vector.extract_strided_slice %204 {offsets = [0, 0], sizes = [8, 256], strides = [1, 1]} : vector<8x384xf32> to vector<8x256xf32>
    %208 = vector.extract_strided_slice %206 {offsets = [0, 0], sizes = [8, 256], strides = [1, 1]} : vector<8x384xf32> to vector<8x256xf32>
    %209 = arith.addf %207, %208 : vector<8x256xf32>
    %210 = arith.negf %209 : vector<8x256xf32>
    %211 = math.exp %210 : vector<8x256xf32>
    %cst_72 = arith.constant 1.000000e+00 : f32
    %212 = vector.broadcast %cst_72 : f32 to vector<8x256xf32>
    %213 = arith.addf %212, %211 : vector<8x256xf32>
    %214 = arith.divf %212, %213 : vector<8x256xf32>
    %215 = vector.extract_strided_slice %214 {offsets = [0, 0], sizes = [8, 128], strides = [1, 1]} : vector<8x256xf32> to vector<8x128xf32>
    %216 = vector.extract_strided_slice %214 {offsets = [0, 128], sizes = [8, 128], strides = [1, 1]} : vector<8x256xf32> to vector<8x128xf32>
    %217 = vector.extract_strided_slice %204 {offsets = [0, 256], sizes = [8, 128], strides = [1, 1]} : vector<8x384xf32> to vector<8x128xf32>
    %218 = vector.extract_strided_slice %206 {offsets = [0, 256], sizes = [8, 128], strides = [1, 1]} : vector<8x384xf32> to vector<8x128xf32>
    %219 = arith.addf %218, %13 : vector<8x128xf32>
    %220 = arith.mulf %215, %219 : vector<8x128xf32>
    %221 = arith.addf %217, %220 : vector<8x128xf32>
    %222 = math.tanh %221 : vector<8x128xf32>
    %cst_73 = arith.constant 1.000000e+00 : f32
    %223 = vector.broadcast %cst_73 : f32 to vector<8x128xf32>
    %224 = arith.subf %223, %216 : vector<8x128xf32>
    %225 = arith.mulf %224, %222 : vector<8x128xf32>
    %226 = arith.mulf %216, %196 : vector<8x128xf32>
    %227 = arith.addf %225, %226 : vector<8x128xf32>
    %228 = arith.index_cast %c6_i32 : i32 to index
    %c0_74 = arith.constant 0 : index
    %c0_75 = arith.constant 0 : index
    %229 = vector.load %arg14[%228, %c0_74, %c0_75] : memref<8x8x128xf32, #tpu.memory_space<vmem>>, vector<1x8x128xf32>
    %230 = vector.shape_cast %229 : vector<1x8x128xf32> to vector<8x128xf32>
    %231 = vector.shape_cast %227 : vector<8x128xf32> to vector<1x8x128xf32>
    tpu.vector_store %arg14[%228, %c0_74, %c0_75], %231 {strides = array<i32>} : memref<8x8x128xf32, #tpu.memory_space<vmem>>, vector<1x8x128xf32>,
    %c7_i32 = arith.constant 7 : i32
    %c8_i32_76 = arith.constant 8 : i32
    %232 = arith.muli %c7_i32, %c8_i32_76 : i32
    %233 = tpu.assume_multiple %232, 8 : i32
    %234 = arith.index_cast %233 : i32 to index
    %c0_77 = arith.constant 0 : index
    %235 = vector.load %arg13[%234, %c0_77] : memref<64x384xf32, #tpu.memory_space<vmem>>, vector<8x384xf32>
    %c0_78 = arith.constant 0 : index
    %c0_79 = arith.constant 0 : index
    %236 = vector.load %arg5[%c0_78, %c0_79] : memref<128x384xf32, #tpu.memory_space<vmem>>, vector<128x384xf32>
    %cst_80 = arith.constant dense<0.000000e+00> : vector<8x384xf32>
    %237 = tpu.matmul %227, %236, %cst_80 {dimension_numbers = #tpu.dot_dimension_numbers<[1], [0], [0], [1], [0, 0, 1, 1], [], []>} : vector<8x128xf32>, vector<128x384xf32>, vector<8x384xf32> -> vector<8x384xf32>
    %238 = vector.extract_strided_slice %235 {offsets = [0, 0], sizes = [8, 256], strides = [1, 1]} : vector<8x384xf32> to vector<8x256xf32>
    %239 = vector.extract_strided_slice %237 {offsets = [0, 0], sizes = [8, 256], strides = [1, 1]} : vector<8x384xf32> to vector<8x256xf32>
    %240 = arith.addf %238, %239 : vector<8x256xf32>
    %241 = arith.negf %240 : vector<8x256xf32>
    %242 = math.exp %241 : vector<8x256xf32>
    %cst_81 = arith.constant 1.000000e+00 : f32
    %243 = vector.broadcast %cst_81 : f32 to vector<8x256xf32>
    %244 = arith.addf %243, %242 : vector<8x256xf32>
    %245 = arith.divf %243, %244 : vector<8x256xf32>
    %246 = vector.extract_strided_slice %245 {offsets = [0, 0], sizes = [8, 128], strides = [1, 1]} : vector<8x256xf32> to vector<8x128xf32>
    %247 = vector.extract_strided_slice %245 {offsets = [0, 128], sizes = [8, 128], strides = [1, 1]} : vector<8x256xf32> to vector<8x128xf32>
    %248 = vector.extract_strided_slice %235 {offsets = [0, 256], sizes = [8, 128], strides = [1, 1]} : vector<8x384xf32> to vector<8x128xf32>
    %249 = vector.extract_strided_slice %237 {offsets = [0, 256], sizes = [8, 128], strides = [1, 1]} : vector<8x384xf32> to vector<8x128xf32>
    %250 = arith.addf %249, %13 : vector<8x128xf32>
    %251 = arith.mulf %246, %250 : vector<8x128xf32>
    %252 = arith.addf %248, %251 : vector<8x128xf32>
    %253 = math.tanh %252 : vector<8x128xf32>
    %cst_82 = arith.constant 1.000000e+00 : f32
    %254 = vector.broadcast %cst_82 : f32 to vector<8x128xf32>
    %255 = arith.subf %254, %247 : vector<8x128xf32>
    %256 = arith.mulf %255, %253 : vector<8x128xf32>
    %257 = arith.mulf %247, %227 : vector<8x128xf32>
    %258 = arith.addf %256, %257 : vector<8x128xf32>
    %259 = arith.index_cast %c7_i32 : i32 to index
    %c0_83 = arith.constant 0 : index
    %c0_84 = arith.constant 0 : index
    %260 = vector.load %arg14[%259, %c0_83, %c0_84] : memref<8x8x128xf32, #tpu.memory_space<vmem>>, vector<1x8x128xf32>
    %261 = vector.shape_cast %260 : vector<1x8x128xf32> to vector<8x128xf32>
    %262 = vector.shape_cast %258 : vector<8x128xf32> to vector<1x8x128xf32>
    tpu.vector_store %arg14[%259, %c0_83, %c0_84], %262 {strides = array<i32>} : memref<8x8x128xf32, #tpu.memory_space<vmem>>, vector<1x8x128xf32>,
    %c8_i32_85 = arith.constant 8 : i32
    %c0_86 = arith.constant 0 : index
    %c0_87 = arith.constant 0 : index
    %263 = vector.load %arg12[%c0_86, %c0_87] : memref<8x128xf32, #tpu.memory_space<vmem>>, vector<8x128xf32>
    tpu.vector_store %arg12[%c0_86, %c0_87], %258 {strides = array<i32>} : memref<8x128xf32, #tpu.memory_space<vmem>>, vector<8x128xf32>,
    %c0_88 = arith.constant 0 : index
    %c0_89 = arith.constant 0 : index
    %c0_90 = arith.constant 0 : index
    %264 = vector.load %arg14[%c0_88, %c0_89, %c0_90] : memref<8x8x128xf32, #tpu.memory_space<vmem>>, vector<8x8x128xf32>
    %cst_91 = arith.constant dense<0.000000e+00> : vector<8x8xf32>
    %265 = vector.multi_reduction <add>, %264, %cst_91 [2] : vector<8x8x128xf32> to vector<8x8xf32>
    %266 = vector.shape_cast %265 : vector<8x8xf32> to vector<8x8x1xf32>
    %267 = arith.mulf %264, %264 : vector<8x8x128xf32>
    %cst_92 = arith.constant dense<0.000000e+00> : vector<8x8xf32>
    %268 = vector.multi_reduction <add>, %267, %cst_92 [2] : vector<8x8x128xf32> to vector<8x8xf32>
    %269 = vector.shape_cast %268 : vector<8x8xf32> to vector<8x8x1xf32>
    %cst_93 = arith.constant 3.125000e-02 : f32
    %270 = vector.broadcast %cst_93 : f32 to vector<8x8x1xf32>
    %271 = arith.mulf %266, %270 : vector<8x8x1xf32>
    %cst_94 = arith.constant 3.125000e-02 : f32
    %272 = vector.broadcast %cst_94 : f32 to vector<8x8x1xf32>
    %273 = arith.mulf %269, %272 : vector<8x8x1xf32>
    %274 = arith.mulf %271, %271 : vector<8x8x1xf32>
    %275 = arith.subf %273, %274 : vector<8x8x1xf32>
    %cst_95 = arith.constant 0.000000e+00 : f32
    %276 = vector.broadcast %cst_95 : f32 to vector<8x8x1xf32>
    %277 = arith.maximumf %275, %276 : vector<8x8x1xf32>
    %278 = vector.broadcast %271 : vector<8x8x1xf32> to vector<8x8x128xf32>
    %279 = arith.subf %264, %278 : vector<8x8x128xf32>
    %cst_96 = arith.constant 9.99999974E-6 : f32
    %280 = vector.broadcast %cst_96 : f32 to vector<8x8x1xf32>
    %281 = arith.addf %277, %280 : vector<8x8x1xf32>
    %282 = math.rsqrt %281 : vector<8x8x1xf32>
    %283 = vector.broadcast %282 : vector<8x8x1xf32> to vector<8x8x128xf32>
    %284 = arith.mulf %279, %283 : vector<8x8x128xf32>
    %c0_97 = arith.constant 0 : index
    %c0_98 = arith.constant 0 : index
    %285 = vector.load %arg8[%c0_97, %c0_98] : memref<1x128xf32, #tpu.memory_space<vmem>>, vector<1x128xf32>
    %286 = vector.shape_cast %285 : vector<1x128xf32> to vector<1x1x128xf32>
    %287 = vector.broadcast %286 : vector<1x1x128xf32> to vector<8x8x128xf32>
    %288 = arith.mulf %284, %287 : vector<8x8x128xf32>
    %c0_99 = arith.constant 0 : index
    %c0_100 = arith.constant 0 : index
    %289 = vector.load %arg9[%c0_99, %c0_100] : memref<1x128xf32, #tpu.memory_space<vmem>>, vector<1x128xf32>
    %290 = vector.shape_cast %289 : vector<1x128xf32> to vector<1x1x128xf32>
    %291 = vector.broadcast %290 : vector<1x1x128xf32> to vector<8x8x128xf32>
    %292 = arith.addf %288, %291 : vector<8x8x128xf32>
    %293 = arith.negf %292 : vector<8x8x128xf32>
    %294 = math.exp %293 : vector<8x8x128xf32>
    %cst_101 = arith.constant 1.000000e+00 : f32
    %295 = vector.broadcast %cst_101 : f32 to vector<8x8x128xf32>
    %296 = arith.addf %295, %294 : vector<8x8x128xf32>
    %297 = arith.divf %295, %296 : vector<8x8x128xf32>
    %298 = arith.mulf %292, %297 : vector<8x8x128xf32>
    %c0_102 = arith.constant 0 : index
    %c0_103 = arith.constant 0 : index
    %c0_104 = arith.constant 0 : index
    %299 = vector.load %arg10[%c0_102, %c0_103, %c0_104] : memref<8x8x128xf32, #tpu.memory_space<vmem>>, vector<8x8x128xf32>
    tpu.vector_store %arg10[%c0_102, %c0_103, %c0_104], %298 {strides = array<i32>} : memref<8x8x128xf32, #tpu.memory_space<vmem>>, vector<8x8x128xf32>,
    %c0_i32_105 = arith.constant 0 : i32
    %300 = arith.cmpi eq, %arg1, %c0_i32_105 : i32
    %301 = arith.extui %300 : i1 to i32
    %c0_i32_106 = arith.constant 0 : i32
    %302 = arith.cmpi ne, %301, %c0_i32_106 : i32
    scf.if %302 {
      %c0_107 = arith.constant 0 : index
      %c0_108 = arith.constant 0 : index
      %c0_109 = arith.constant 0 : index
      %303 = vector.load %arg11[%c0_107, %c0_108, %c0_109] : memref<1x8x128xf32, #tpu.memory_space<vmem>>, vector<1x8x128xf32>
      %304 = vector.shape_cast %303 : vector<1x8x128xf32> to vector<8x128xf32>
      %305 = vector.shape_cast %258 : vector<8x128xf32> to vector<1x8x128xf32>
      tpu.vector_store %arg11[%c0_107, %c0_108, %c0_109], %305 {strides = array<i32>} : memref<1x8x128xf32, #tpu.memory_space<vmem>>, vector<1x8x128xf32>,
    } else {
    }
    return
  }
  func.func @transform_0(%arg0: i32, %arg1: i32) -> (i32, i32, i32) {
    %c0_i32 = arith.constant 0 : i32
    %c0_i32_0 = arith.constant 0 : i32
    return %arg1, %arg0, %c0_i32 : i32, i32, i32
  }
  func.func @transform_1(%arg0: i32, %arg1: i32) -> (i32, i32, i32) {
    %c0_i32 = arith.constant 0 : i32
    %c0_i32_0 = arith.constant 0 : i32
    %c0_i32_1 = arith.constant 0 : i32
    return %c0_i32, %arg0, %c0_i32_0 : i32, i32, i32
  }
  func.func @transform_2(%arg0: i32, %arg1: i32) -> (i32, i32) {
    %c0_i32 = arith.constant 0 : i32
    %c0_i32_0 = arith.constant 0 : i32
    %c0_i32_1 = arith.constant 0 : i32
    return %c0_i32, %c0_i32_0 : i32, i32
  }
  func.func @transform_3(%arg0: i32, %arg1: i32) -> (i32, i32) {
    %c0_i32 = arith.constant 0 : i32
    %c0_i32_0 = arith.constant 0 : i32
    %c0_i32_1 = arith.constant 0 : i32
    return %c0_i32, %c0_i32_0 : i32, i32
  }
  func.func @transform_4(%arg0: i32, %arg1: i32) -> (i32, i32) {
    %c0_i32 = arith.constant 0 : i32
    %c0_i32_0 = arith.constant 0 : i32
    %c0_i32_1 = arith.constant 0 : i32
    return %c0_i32, %c0_i32_0 : i32, i32
  }
  func.func @transform_5(%arg0: i32, %arg1: i32) -> (i32, i32) {
    %c0_i32 = arith.constant 0 : i32
    %c0_i32_0 = arith.constant 0 : i32
    %c0_i32_1 = arith.constant 0 : i32
    return %c0_i32, %c0_i32_0 : i32, i32
  }
  func.func @transform_6(%arg0: i32, %arg1: i32) -> (i32, i32) {
    %c0_i32 = arith.constant 0 : i32
    %c0_i32_0 = arith.constant 0 : i32
    %c0_i32_1 = arith.constant 0 : i32
    return %c0_i32, %c0_i32_0 : i32, i32
  }
  func.func @transform_7(%arg0: i32, %arg1: i32) -> (i32, i32) {
    %c0_i32 = arith.constant 0 : i32
    %c0_i32_0 = arith.constant 0 : i32
    %c0_i32_1 = arith.constant 0 : i32
    return %c0_i32, %c0_i32_0 : i32, i32
  }
  func.func @transform_8(%arg0: i32, %arg1: i32) -> (i32, i32, i32) {
    %c0_i32 = arith.constant 0 : i32
    %c0_i32_0 = arith.constant 0 : i32
    return %arg1, %arg0, %c0_i32 : i32, i32, i32
  }
  func.func @transform_9(%arg0: i32, %arg1: i32) -> (i32, i32, i32) {
    %c0_i32 = arith.constant 0 : i32
    %c0_i32_0 = arith.constant 0 : i32
    %c0_i32_1 = arith.constant 0 : i32
    return %c0_i32, %arg0, %c0_i32_0 : i32, i32, i32
  }
}

</mosaic_0001>

<llo_original>
// kernel: tpu_custom_call.1
$region0: #{tpu_custom_call.1}
  #allocation0 [shape = 'u32[]', space=smem, size = 0x4, offset = 0x4, fixed_abs, tag = 'smem constant byte address 0x4 - core index']
  #allocation1 [shape = 'u32[144,128]{1,0:T(1,128)}', space=vmem, size = 0x12000, scoped, tag = 'internal scratch']
  #allocation2 [shape = 'f32[8,128]{1,0:T(8,128)}', space=vmem, size = 0x1000, scoped, tag = 'scratch operand']
  #allocation3 [shape = 'f32[64,384]{1,0:T(8,128)}', space=vmem, size = 0x18000, scoped, tag = 'scratch operand']
  #allocation4 [shape = 'f32[8,8,128]{2,1,0:T(8,128)}', space=vmem, size = 0x8000, scoped, tag = 'scratch operand']
  %s0 = inlined_call_operand.hbm [shape: f32[8,8,16], index: 0, kind: input, shape index: {}]
  %s1 = inlined_call_operand.hbm [shape: f32[1,8,128], index: 1, kind: input, shape index: {}]
  %s2 = inlined_call_operand.hbm [shape: f32[16,384], index: 2, kind: input, shape index: {}]
  %s3 = inlined_call_operand.hbm [shape: f32[128,384], index: 3, kind: input, shape index: {}]
  %s4 = inlined_call_operand.vmem [shape: f32[1,384], index: 4, kind: input, shape index: {}]
  %s5 = inlined_call_operand.vmem [shape: f32[1,128], index: 5, kind: input, shape index: {}]
  %s6 = inlined_call_operand.vmem [shape: f32[1,128], index: 6, kind: input, shape index: {}]
  %s7 = inlined_call_operand.vmem [shape: f32[1,128], index: 7, kind: input, shape index: {}]
  %s8 = inlined_call_operand.hbm [shape: f32[8,8,128], index: 8, kind: output, shape index: {0}]
  %s9 = inlined_call_operand.hbm [shape: f32[1,8,128], index: 9, kind: output, shape index: {1}]
  %10 = xla_tuple %s8, %s9
  %s11 = sld [smem:[#allocation0]]
  $region74: #{tpu_custom_call.1} parent=0
    _
  %s13 = ssub.s32 1, %s11
  %s14 = scalar_select 0, %s13, %s11
  $region1: #{tpu_custom_call.1} parent=0
    #allocation5 [shape = 'u8[32768]{0}', space=vmem, size = 0x8000, scoped, tag = 'input window, operand 0, single buffered']
    #allocation6 [shape = 's32[1]{0}', space=sflag, size = 0x4, scoped, tag = 'scoped memory for tpu_custom_call.1']
    #allocation7 [shape = 's32[1]{0}', space=sflag, size = 0x4, scoped, tag = 'scoped memory for tpu_custom_call.1']
    #allocation8 [shape = 'u8[4096]{0}', space=vmem, size = 0x1000, scoped, tag = 'input window, operand 1, single buffered']
    #allocation9 [shape = 's32[1]{0}', space=sflag, size = 0x4, scoped, tag = 'scoped memory for tpu_custom_call.1']
    #allocation10 [shape = 'u8[24576]{0}', space=vmem, size = 0x6000, scoped, tag = 'input window, operand 2, single buffered']
    #allocation11 [shape = 'u8[196608]{0}', space=vmem, size = 0x30000, scoped, tag = 'input window, operand 3, single buffered']
    #allocation12 [shape = 's32[1]{0}', space=sflag, size = 0x4, scoped, tag = 'scoped memory for tpu_custom_call.1']
    #allocation13 [shape = 'u8[32768]{0}', space=vmem, size = 0x8000, scoped, tag = 'output window, operand 0, single buffered']
    #allocation14 [shape = 'u8[4096]{0}', space=vmem, size = 0x1000, scoped, tag = 'output window, operand 1, single buffered']
    #allocation15 [shape = 's32[1]{0}', space=sflag, size = 0x4, scoped, tag = 'scoped memory for tpu_custom_call.1']
    %15 = vsyncpa [#allocation6], 0
    %16 = vsyncpa [#allocation9], 0
    %17 = vsyncpa [#allocation12], 0
    %18 = vsyncpa [#allocation7], 0
    %19 = vsyncpa [#allocation15], 0
    // Predicated region
    $region2: #{tpu_custom_call.1} parent=1 // pred_check
      _
    $region3: #{tpu_custom_call.1} parent=1 // pred_check_branch
      %21 = sbr.rel (0) target = $region5
    $region4: #{tpu_custom_call.1} parent=1 // pred_region
      %s23 = ssub.s32 1024, 1024
      %24 = vsyncadd [#allocation6], %s23
      %s25 = sshll.u32 [#allocation5], 4
      %s26 = int_to_ptr.vmem [resolvable:$true] %s25
      %31 = dma.hbm_to_vmem [thread:$0]  %s0, 1024, %s26, [#allocation6], 128, 128, 8
    $region5: #{tpu_custom_call.1} parent=1 // pred_fallthru
      _
    // Predicated region
    $region6: #{tpu_custom_call.1} parent=1 // pred_check
      _
    $region7: #{tpu_custom_call.1} parent=1 // pred_check_branch
      %33 = sbr.rel (0) target = $region9
    $region8: #{tpu_custom_call.1} parent=1 // pred_region
      %s35 = ssub.s32 128, 128
      %36 = vsyncadd [#allocation9], %s35
      %s38 = sshll.u32 [#allocation8], 4
      %s39 = int_to_ptr.vmem [resolvable:$true] %s38
      %41 = dma.hbm_to_vmem [thread:$0]  %s1, 128, %s39, [#allocation9]
    $region9: #{tpu_custom_call.1} parent=1 // pred_fallthru
      _
    // Predicated region
    $region10: #{tpu_custom_call.1} parent=1 // pred_check
      _
    $region11: #{tpu_custom_call.1} parent=1 // pred_check_branch
      %43 = sbr.rel (0) target = $region13
    $region12: #{tpu_custom_call.1} parent=1 // pred_region
      %s45 = ssub.s32 768, 768
      %46 = vsyncadd [#allocation9], %s45
      %s47 = sshll.u32 [#allocation10], 4
      %s48 = int_to_ptr.vmem [resolvable:$true] %s47
      %53 = dma.hbm_to_vmem [thread:$0]  %s2, 768, %s48, [#allocation9], 384, 384, 24
    $region13: #{tpu_custom_call.1} parent=1 // pred_fallthru
      _
    // Predicated region
    $region14: #{tpu_custom_call.1} parent=1 // pred_check
      _
    $region15: #{tpu_custom_call.1} parent=1 // pred_check_branch
      %55 = sbr.rel (0) target = $region17
    $region16: #{tpu_custom_call.1} parent=1 // pred_region
      %s57 = ssub.s32 6144, 6144
      %58 = vsyncadd [#allocation12], %s57
      %s59 = sshll.u32 [#allocation11], 4
      %s60 = int_to_ptr.vmem [resolvable:$true] %s59
      %65 = dma.hbm_to_vmem [thread:$0]  %s3, 6144, %s60, [#allocation12], 384, 384, 24
    $region17: #{tpu_custom_call.1} parent=1 // pred_fallthru
      _
    // Predicated region
    $region18: #{tpu_custom_call.1} parent=1 // pred_check
      _
    $region19: #{tpu_custom_call.1} parent=1 // pred_check_branch
      %67 = sbr.rel (0) target = $region21
    $region20: #{tpu_custom_call.1} parent=1 // pred_region
      _
    $region21: #{tpu_custom_call.1} parent=1 // pred_fallthru
      _
    // Predicated region
    $region22: #{tpu_custom_call.1} parent=1 // pred_check
      _
    $region23: #{tpu_custom_call.1} parent=1 // pred_check_branch
      %69 = sbr.rel (0) target = $region25
    $region24: #{tpu_custom_call.1} parent=1 // pred_region
      _
    $region25: #{tpu_custom_call.1} parent=1 // pred_fallthru
      _
    // Predicated region
    $region26: #{tpu_custom_call.1} parent=1 // pred_check
      _
    $region27: #{tpu_custom_call.1} parent=1 // pred_check_branch
      %71 = sbr.rel (0) target = $region29
    $region28: #{tpu_custom_call.1} parent=1 // pred_region
      _
    $region29: #{tpu_custom_call.1} parent=1 // pred_fallthru
      _
    // Predicated region
    $region30: #{tpu_custom_call.1} parent=1 // pred_check
      _
    $region31: #{tpu_custom_call.1} parent=1 // pred_check_branch
      %73 = sbr.rel (0) target = $region33
    $region32: #{tpu_custom_call.1} parent=1 // pred_region
      _
    $region33: #{tpu_custom_call.1} parent=1 // pred_fallthru
      _
    // Predicated region
    $region34: #{tpu_custom_call.1} parent=1 // pred_check
      _
    $region35: #{tpu_custom_call.1} parent=1 // pred_check_branch
      %75 = sbr.rel (0) target = $region37
    $region36: #{tpu_custom_call.1} parent=1 // pred_region
      %76 = dma.done [#allocation6], 1024
    $region37: #{tpu_custom_call.1} parent=1 // pred_fallthru
      _
    // Predicated region
    $region38: #{tpu_custom_call.1} parent=1 // pred_check
      _
    $region39: #{tpu_custom_call.1} parent=1 // pred_check_branch
      %78 = sbr.rel (0) target = $region41
    $region40: #{tpu_custom_call.1} parent=1 // pred_region
      %79 = dma.done [#allocation9], 128
    $region41: #{tpu_custom_call.1} parent=1 // pred_fallthru
      _
    // Predicated region
    $region42: #{tpu_custom_call.1} parent=1 // pred_check
      _
    $region43: #{tpu_custom_call.1} parent=1 // pred_check_branch
      %81 = sbr.rel (0) target = $region45
    $region44: #{tpu_custom_call.1} parent=1 // pred_region
      %82 = dma.done [#allocation9], 768
    $region45: #{tpu_custom_call.1} parent=1 // pred_fallthru
      _
    // Predicated region
    $region46: #{tpu_custom_call.1} parent=1 // pred_check
      _
    $region47: #{tpu_custom_call.1} parent=1 // pred_check_branch
      %84 = sbr.rel (0) target = $region49
    $region48: #{tpu_custom_call.1} parent=1 // pred_region
      %85 = dma.done [#allocation12], 6144
    $region49: #{tpu_custom_call.1} parent=1 // pred_fallthru
      _
    %p86 = scmp.eq.s32.totalorder 0, 0
    // Predicated region
    $region50: #{tpu_custom_call.1} parent=1 // pred_check
      %p87 = pneg %p86
    $region51: #{tpu_custom_call.1} parent=1 // pred_check_branch
      %89 = sbr.rel (%p87) target = $region53
    $region52: #{tpu_custom_call.1} parent=1 // pred_region
      %v90 = vld [vmem:[#allocation8] sm:$0xff]
      %91 = vst [vmem:[#allocation2] sm:$0xff] %v90
    $region53: #{tpu_custom_call.1} parent=1 // pred_fallthru
      _
    %v92 = vld [vmem:[#allocation5] sm:$0xff]
    %v93 = vld [vmem:[#allocation5 + $0x8] sm:$0xff]
    %v94 = vld [vmem:[#allocation5 + $0x10] sm:$0xff]
    %v95 = vld [vmem:[#allocation5 + $0x18] sm:$0xff]
    %v96 = vld [vmem:[#allocation5 + $0x20] sm:$0xff]
    %v97 = vld [vmem:[#allocation5 + $0x28] sm:$0xff]
    %v98 = vld [vmem:[#allocation5 + $0x30] sm:$0xff]
    %v99 = vld [vmem:[#allocation5 + $0x38] sm:$0xff]
    %v100 = vld [vmem:[#allocation10] sm:$0xff]
    %v101 = vld [vmem:[#allocation10 + $0x8] sm:$0xff]
    %v102 = vld [vmem:[#allocation10 + $0x10] sm:$0xff]
    %v103 = vld [vmem:[#allocation10 + $0x18] sm:$0xff]
    %v104 = vld [vmem:[#allocation10 + $0x20] sm:$0xff]
    %v105 = vld [vmem:[#allocation10 + $0x28] sm:$0xff]
    %v106 = vld [vmem:[%s4] sm:$0x7]
    %v108 = vlaneseq
    %v109 = vshrl.u32 %v108, 7
    %v110 = vsub.s32 0, %v109
    %v111 = vrot.slane %v106, %v110
    %v112 = vlaneseq
    %v113 = vshrl.u32 %v112, 7
    %v114 = vsub.s32 1, %v113
    %v115 = vrot.slane %v106, %v114
    %v116 = vlaneseq
    %v117 = vshrl.u32 %v116, 7
    %v118 = vsub.s32 2, %v117
    %v119 = vrot.slane %v106, %v118
    %vm123 = vcmask 130048
    %v125 = vsel %vm123, %v92, 0
    %v128 = vsel %vm123, %v93, 0
    %v131 = vsel %vm123, %v94, 0
    %v134 = vsel %vm123, %v95, 0
    %v137 = vsel %vm123, %v96, 0
    %v140 = vsel %vm123, %v97, 0
    %v143 = vsel %vm123, %v98, 0
    %v146 = vsel %vm123, %v99, 0
    %148 = vmatprep.subr.mxu0 %v101
    %149 = vmatpush1.msra.mxu0 %v100
    %150 = vmatprep.subr.mxu0 %v104
    %151 = vmatpush1.msra.mxu0 %v103
    %152 = vmatprep.subr.mxu0 0.0
    %153 = vmatpush1.msra.mxu0 0.0
    %154 = vmatprep.subr.mxu0 0.0
    %155 = vmatpush1.msra.mxu0 0.0
    %156 = vmatprep.subr.mxu0 0.0
    %157 = vmatpush1.msra.mxu0 0.0
    %158 = vmatprep.subr.mxu0 0.0
    %159 = vmatpush1.msra.mxu0 0.0
    %160 = vmatprep.subr.mxu0 0.0
    %161 = vmatpush1.msra.mxu0 0.0
    %162 = vmatprep.subr.mxu0 0.0
    %163 = vmatpush1.msra.mxu0 0.0
    %164 = vmatprep.subr.mxu0 0.0
    %165 = vmatpush1.msra.mxu0 0.0
    %166 = vmatprep.subr.mxu0 0.0
    %167 = vmatpush1.msra.mxu0 0.0
    %168 = vmatprep.subr.mxu0 0.0
    %169 = vmatpush1.msra.mxu0 0.0
    %170 = vmatprep.subr.mxu0 0.0
    %171 = vmatpush1.msra.mxu0 0.0
    %172 = vmatprep.subr.mxu0 0.0
    %173 = vmatpush1.msra.mxu0 0.0
    %174 = vmatprep.subr.mxu0 0.0
    %175 = vmatpush1.msra.mxu0 0.0
    %176 = vmatprep.subr.mxu0 0.0
    %177 = vmatpush1.msra.mxu0 0.0
    %178 = vmatprep.subr.mxu0 0.0
    %179 = vmatpush1.msra.mxu0 0.0
    %180 = vmatprep.subr.mxu0 0.0
    %181 = vmatpush1.msra.mxu0 0.0
    %182 = vmatprep.subr.mxu0 0.0
    %183 = vmatpush1.msra.mxu0 0.0
    %184 = vmatprep.subr.mxu0 0.0
    %185 = vmatpush1.msra.mxu0 0.0
    %186 = vmatprep.subr.mxu0 0.0
    %187 = vmatpush1.msra.mxu0 0.0
    %188 = vmatprep.subr.mxu0 0.0
    %189 = vmatpush1.msra.mxu0 0.0
    %190 = vmatprep.subr.mxu0 0.0
    %191 = vmatpush1.msra.mxu0 0.0
    %192 = vmatprep.subr.mxu0 0.0
    %193 = vmatpush1.msra.mxu0 0.0
    %194 = vmatprep.subr.mxu0 0.0
    %195 = vmatpush1.msra.mxu0 0.0
    %196 = vmatprep.subr.mxu0 0.0
    %197 = vmatpush1.msra.mxu0 0.0
    %198 = vmatprep.subr.mxu0 0.0
    %199 = vmatpush1.msra.mxu0 0.0
    %200 = vmatprep.subr.mxu0 0.0
    %201 = vmatpush1.msra.mxu0 0.0
    %202 = vmatprep.subr.mxu0 0.0
    %203 = vmatpush1.msra.mxu0 0.0
    %204 = vmatprep.subr.mxu0 0.0
    %205 = vmatpush1.msra.mxu0 0.0
    %206 = vmatprep.subr.mxu0 0.0
    %207 = vmatpush1.msra.mxu0 0.0
    %208 = vmatprep.subr.mxu0 0.0
    %209 = vmatpush1.msra.mxu0 0.0
    %210 = vmatprep.subr.mxu0 0.0
    %211 = vmatpush1.msra.mxu0 0.0
    %212 = vmatprep.mubr.f32.mxu0 0.0
    %213 = vmatmul.mubr.f32.gmra.mrb[0].mxu0 %v125
    %v214 = vpop.f32.mrb[0].mxu0
    %v215 = vadd.f32 %v111, %v214
    %v216 = vpop.f32.mrb[0].mxu0
    %v217 = vadd.f32 %v115, %v216
    %218 = vmatprep.mubr.f32.mxu0 0.0
    %219 = vmatmul.mubr.f32.gmra.mrb[0].mxu0 %v128
    %v220 = vpop.f32.mrb[0].mxu0
    %v221 = vadd.f32 %v111, %v220
    %v222 = vpop.f32.mrb[0].mxu0
    %v223 = vadd.f32 %v115, %v222
    %224 = vmatprep.mubr.f32.mxu0 0.0
    %225 = vmatmul.mubr.f32.gmra.mrb[0].mxu0 %v131
    %v226 = vpop.f32.mrb[0].mxu0
    %v227 = vadd.f32 %v111, %v226
    %v228 = vpop.f32.mrb[0].mxu0
    %v229 = vadd.f32 %v115, %v228
    %230 = vmatprep.mubr.f32.mxu0 0.0
    %231 = vmatmul.mubr.f32.gmra.mrb[0].mxu0 %v134
    %v232 = vpop.f32.mrb[0].mxu0
    %v233 = vadd.f32 %v111, %v232
    %v234 = vpop.f32.mrb[0].mxu0
    %v235 = vadd.f32 %v115, %v234
    %236 = vmatprep.mubr.f32.mxu0 0.0
    %237 = vmatmul.mubr.f32.gmra.mrb[0].mxu0 %v137
    %v238 = vpop.f32.mrb[0].mxu0
    %v239 = vadd.f32 %v111, %v238
    %v240 = vpop.f32.mrb[0].mxu0
    %v241 = vadd.f32 %v115, %v240
    %242 = vmatprep.mubr.f32.mxu0 0.0
    %243 = vmatmul.mubr.f32.gmra.mrb[0].mxu0 %v140
    %v244 = vpop.f32.mrb[0].mxu0
    %v245 = vadd.f32 %v111, %v244
    %v246 = vpop.f32.mrb[0].mxu0
    %v247 = vadd.f32 %v115, %v246
    %248 = vmatprep.mubr.f32.mxu0 0.0
    %249 = vmatmul.mubr.f32.gmra.mrb[0].mxu0 %v143
    %v250 = vpop.f32.mrb[0].mxu0
    %v251 = vadd.f32 %v111, %v250
    %v252 = vpop.f32.mrb[0].mxu0
    %v253 = vadd.f32 %v115, %v252
    %254 = vmatprep.mubr.f32.mxu0 0.0
    %255 = vmatmul.mubr.f32.gmra.mrb[0].mxu0 %v146
    %v256 = vpop.f32.mrb[0].mxu0
    %v257 = vadd.f32 %v111, %v256
    %v258 = vpop.f32.mrb[0].mxu0
    %v259 = vadd.f32 %v115, %v258
    %260 = vdwg.mxu0
    %261 = vmatprep.subr.mxu0 0.0
    %262 = vmatpush1.msra.mxu0 %v102
    %263 = vmatprep.subr.mxu0 0.0
    %264 = vmatpush1.msra.mxu0 %v105
    %265 = vmatprep.subr.mxu0 0.0
    %266 = vmatpush1.msra.mxu0 0.0
    %267 = vmatprep.subr.mxu0 0.0
    %268 = vmatpush1.msra.mxu0 0.0
    %269 = vmatprep.subr.mxu0 0.0
    %270 = vmatpush1.msra.mxu0 0.0
    %271 = vmatprep.subr.mxu0 0.0
    %272 = vmatpush1.msra.mxu0 0.0
    %273 = vmatprep.subr.mxu0 0.0
    %274 = vmatpush1.msra.mxu0 0.0
    %275 = vmatprep.subr.mxu0 0.0
    %276 = vmatpush1.msra.mxu0 0.0
    %277 = vmatprep.subr.mxu0 0.0
    %278 = vmatpush1.msra.mxu0 0.0
    %279 = vmatprep.subr.mxu0 0.0
    %280 = vmatpush1.msra.mxu0 0.0
    %281 = vmatprep.subr.mxu0 0.0
    %282 = vmatpush1.msra.mxu0 0.0
    %283 = vmatprep.subr.mxu0 0.0
    %284 = vmatpush1.msra.mxu0 0.0
    %285 = vmatprep.subr.mxu0 0.0
    %286 = vmatpush1.msra.mxu0 0.0
    %287 = vmatprep.subr.mxu0 0.0
    %288 = vmatpush1.msra.mxu0 0.0
    %289 = vmatprep.subr.mxu0 0.0
    %290 = vmatpush1.msra.mxu0 0.0
    %291 = vmatprep.subr.mxu0 0.0
    %292 = vmatpush1.msra.mxu0 0.0
    %293 = vmatprep.subr.mxu0 0.0
    %294 = vmatpush1.msra.mxu0 0.0
    %295 = vmatprep.subr.mxu0 0.0
    %296 = vmatpush1.msra.mxu0 0.0
    %297 = vmatprep.subr.mxu0 0.0
    %298 = vmatpush1.msra.mxu0 0.0
    %299 = vmatprep.subr.mxu0 0.0
    %300 = vmatpush1.msra.mxu0 0.0
    %301 = vmatprep.subr.mxu0 0.0
    %302 = vmatpush1.msra.mxu0 0.0
    %303 = vmatprep.subr.mxu0 0.0
    %304 = vmatpush1.msra.mxu0 0.0
    %305 = vmatprep.subr.mxu0 0.0
    %306 = vmatpush1.msra.mxu0 0.0
    %307 = vmatprep.subr.mxu0 0.0
    %308 = vmatpush1.msra.mxu0 0.0
    %309 = vmatprep.subr.mxu0 0.0
    %310 = vmatpush1.msra.mxu0 0.0
    %311 = vmatprep.subr.mxu0 0.0
    %312 = vmatpush1.msra.mxu0 0.0
    %313 = vmatprep.subr.mxu0 0.0
    %314 = vmatpush1.msra.mxu0 0.0
    %315 = vmatprep.subr.mxu0 0.0
    %316 = vmatpush1.msra.mxu0 0.0
    %317 = vmatprep.subr.mxu0 0.0
    %318 = vmatpush1.msra.mxu0 0.0
    %319 = vmatprep.subr.mxu0 0.0
    %320 = vmatpush1.msra.mxu0 0.0
    %321 = vmatprep.subr.mxu0 0.0
    %322 = vmatpush1.msra.mxu0 0.0
    %323 = vmatprep.subr.mxu0 0.0
    %324 = vmatpush1.msra.mxu0 0.0
    %325 = vmatprep.mubr.f32.mxu0 0.0
    %326 = vmatmul.mubr.f32.gmra.mrb[0].mxu0 %v125
    %v327 = vpop.f32.mrb[0].mxu0
    %v328 = vadd.f32 %v119, %v327
    %v329 = vpop.f32.mrb[0].mxu0
    %330 = vmatprep.mubr.f32.mxu0 0.0
    %331 = vmatmul.mubr.f32.gmra.mrb[0].mxu0 %v128
    %v332 = vpop.f32.mrb[0].mxu0
    %v333 = vadd.f32 %v119, %v332
    %v334 = vpop.f32.mrb[0].mxu0
    %335 = vmatprep.mubr.f32.mxu0 0.0
    %336 = vmatmul.mubr.f32.gmra.mrb[0].mxu0 %v131
    %v337 = vpop.f32.mrb[0].mxu0
    %v338 = vadd.f32 %v119, %v337
    %v339 = vpop.f32.mrb[0].mxu0
    %340 = vmatprep.mubr.f32.mxu0 0.0
    %341 = vmatmul.mubr.f32.gmra.mrb[0].mxu0 %v134
    %v342 = vpop.f32.mrb[0].mxu0
    %v343 = vadd.f32 %v119, %v342
    %v344 = vpop.f32.mrb[0].mxu0
    %345 = vmatprep.mubr.f32.mxu0 0.0
    %346 = vmatmul.mubr.f32.gmra.mrb[0].mxu0 %v137
    %v347 = vpop.f32.mrb[0].mxu0
    %v348 = vadd.f32 %v119, %v347
    %v349 = vpop.f32.mrb[0].mxu0
    %350 = vmatprep.mubr.f32.mxu0 0.0
    %351 = vmatmul.mubr.f32.gmra.mrb[0].mxu0 %v140
    %v352 = vpop.f32.mrb[0].mxu0
    %v353 = vadd.f32 %v119, %v352
    %v354 = vpop.f32.mrb[0].mxu0
    %355 = vmatprep.mubr.f32.mxu0 0.0
    %356 = vmatmul.mubr.f32.gmra.mrb[0].mxu0 %v143
    %v357 = vpop.f32.mrb[0].mxu0
    %v358 = vadd.f32 %v119, %v357
    %v359 = vpop.f32.mrb[0].mxu0
    %360 = vmatprep.mubr.f32.mxu0 0.0
    %361 = vmatmul.mubr.f32.gmra.mrb[0].mxu0 %v146
    %v362 = vpop.f32.mrb[0].mxu0
    %v363 = vadd.f32 %v119, %v362
    %v364 = vpop.f32.mrb[0].mxu0
    %365 = vdwg.mxu0
    %366 = vst [vmem:[#allocation3] sm:$0xff] %v215
    %367 = vst [vmem:[#allocation3 + $0x8] sm:$0xff] %v217
    %368 = vst [vmem:[#allocation3 + $0x10] sm:$0xff] %v328
    %369 = vst [vmem:[#allocation3 + $0x18] sm:$0xff] %v221
    %370 = vst [vmem:[#allocation3 + $0x20] sm:$0xff] %v223
    %371 = vst [vmem:[#allocation3 + $0x28] sm:$0xff] %v333
    %372 = vst [vmem:[#allocation3 + $0x30] sm:$0xff] %v227
    %373 = vst [vmem:[#allocation3 + $0x38] sm:$0xff] %v229
    %374 = vst [vmem:[#allocation3 + $0x40] sm:$0xff] %v338
    %375 = vst [vmem:[#allocation3 + $0x48] sm:$0xff] %v233
    %376 = vst [vmem:[#allocation3 + $0x50] sm:$0xff] %v235
    %377 = vst [vmem:[#allocation3 + $0x58] sm:$0xff] %v343
    %378 = vst [vmem:[#allocation3 + $0x60] sm:$0xff] %v239
    %379 = vst [vmem:[#allocation3 + $0x68] sm:$0xff] %v241
    %380 = vst [vmem:[#allocation3 + $0x70] sm:$0xff] %v348
    %381 = vst [vmem:[#allocation3 + $0x78] sm:$0xff] %v245
    %382 = vst [vmem:[#allocation3 + $0x80] sm:$0xff] %v247
    %383 = vst [vmem:[#allocation3 + $0x88] sm:$0xff] %v353
    %384 = vst [vmem:[#allocation3 + $0x90] sm:$0xff] %v251
    %385 = vst [vmem:[#allocation3 + $0x98] sm:$0xff] %v253
    %386 = vst [vmem:[#allocation3 + $0xa0] sm:$0xff] %v358
    %387 = vst [vmem:[#allocation3 + $0xa8] sm:$0xff] %v257
    %388 = vst [vmem:[#allocation3 + $0xb0] sm:$0xff] %v259
    %389 = vst [vmem:[#allocation3 + $0xb8] sm:$0xff] %v363
    %v390 = vld [vmem:[%s5] sm:$0x1]
    %v392 = vlaneseq
    %v393 = vshrl.u32 %v392, 7
    %v394 = vsub.s32 0, %v393
    %v395 = vrot.slane %v390, %v394
    %v397 = vld [vmem:[#allocation2] sm:$0xff]
    %s398 = smul.u32 0, 3
    %s399 = smul.addr %s398, 8
    %s400 = scalar_lea.vmem [#allocation3], %s399
    %v401 = vld [vmem:[%s400] sm:$0xff]
    %v402 = vld [vmem:[%s400 + $0x8] sm:$0xff]
    %v403 = vld [vmem:[%s400 + $0x10] sm:$0xff]
    %v404 = vld [vmem:[#allocation11] sm:$0xff]
    %v405 = vld [vmem:[#allocation11 + $0x8] sm:$0xff]
    %v406 = vld [vmem:[#allocation11 + $0x10] sm:$0xff]
    %v407 = vld [vmem:[#allocation11 + $0x18] sm:$0xff]
    %v408 = vld [vmem:[#allocation11 + $0x20] sm:$0xff]
    %v409 = vld [vmem:[#allocation11 + $0x28] sm:$0xff]
    %v410 = vld [vmem:[#allocation11 + $0x30] sm:$0xff]
    %v411 = vld [vmem:[#allocation11 + $0x38] sm:$0xff]
    %v412 = vld [vmem:[#allocation11 + $0x40] sm:$0xff]
    %v413 = vld [vmem:[#allocation11 + $0x48] sm:$0xff]
    %v414 = vld [vmem:[#allocation11 + $0x50] sm:$0xff]
    %v415 = vld [vmem:[#allocation11 + $0x58] sm:$0xff]
    %v416 = vld [vmem:[#allocation11 + $0x60] sm:$0xff]
    %v417 = vld [vmem:[#allocation11 + $0x68] sm:$0xff]
    %v418 = vld [vmem:[#allocation11 + $0x70] sm:$0xff]
    %v419 = vld [vmem:[#allocation11 + $0x78] sm:$0xff]
    %v420 = vld [vmem:[#allocation11 + $0x80] sm:$0xff]
    %v421 = vld [vmem:[#allocation11 + $0x88] sm:$0xff]
    %v422 = vld [vmem:[#allocation11 + $0x90] sm:$0xff]
    %v423 = vld [vmem:[#allocation11 + $0x98] sm:$0xff]
    %v424 = vld [vmem:[#allocation11 + $0xa0] sm:$0xff]
    %v425 = vld [vmem:[#allocation11 + $0xa8] sm:$0xff]
    %v426 = vld [vmem:[#allocation11 + $0xb0] sm:$0xff]
    %v427 = vld [vmem:[#allocation11 + $0xb8] sm:$0xff]
    %v428 = vld [vmem:[#allocation11 + $0xc0] sm:$0xff]
    %v429 = vld [vmem:[#allocation11 + $0xc8] sm:$0xff]
    %v430 = vld [vmem:[#allocation11 + $0xd0] sm:$0xff]
    %v431 = vld [vmem:[#allocation11 + $0xd8] sm:$0xff]
    %v432 = vld [vmem:[#allocation11 + $0xe0] sm:$0xff]
    %v433 = vld [vmem:[#allocation11 + $0xe8] sm:$0xff]
    %v434 = vld [vmem:[#allocation11 + $0xf0] sm:$0xff]
    %v435 = vld [vmem:[#allocation11 + $0xf8] sm:$0xff]
    %v436 = vld [vmem:[#allocation11 + $0x100] sm:$0xff]
    %v437 = vld [vmem:[#allocation11 + $0x108] sm:$0xff]
    %v438 = vld [vmem:[#allocation11 + $0x110] sm:$0xff]
    %v439 = vld [vmem:[#allocation11 + $0x118] sm:$0xff]
    %v440 = vld [vmem:[#allocation11 + $0x120] sm:$0xff]
    %v441 = vld [vmem:[#allocation11 + $0x128] sm:$0xff]
    %v442 = vld [vmem:[#allocation11 + $0x130] sm:$0xff]
    %v443 = vld [vmem:[#allocation11 + $0x138] sm:$0xff]
    %v444 = vld [vmem:[#allocation11 + $0x140] sm:$0xff]
    %v445 = vld [vmem:[#allocation11 + $0x148] sm:$0xff]
    %v446 = vld [vmem:[#allocation11 + $0x150] sm:$0xff]
    %v447 = vld [vmem:[#allocation11 + $0x158] sm:$0xff]
    %v448 = vld [vmem:[#allocation11 + $0x160] sm:$0xff]
    %v449 = vld [vmem:[#allocation11 + $0x168] sm:$0xff]
    %v450 = vld [vmem:[#allocation11 + $0x170] sm:$0xff]
    %v451 = vld [vmem:[#allocation11 + $0x178] sm:$0xff]
    %452 = vmatprep.subr.mxu0 %v405
    %453 = vmatpush1.msra.mxu0 %v404
    %454 = vmatprep.subr.mxu0 %v408
    %455 = vmatpush1.msra.mxu0 %v407
    %456 = vmatprep.subr.mxu0 %v411
    %457 = vmatpush1.msra.mxu0 %v410
    %458 = vmatprep.subr.mxu0 %v414
    %459 = vmatpush1.msra.mxu0 %v413
    %460 = vmatprep.subr.mxu0 %v417
    %461 = vmatpush1.msra.mxu0 %v416
    %462 = vmatprep.subr.mxu0 %v420
    %463 = vmatpush1.msra.mxu0 %v419
    %464 = vmatprep.subr.mxu0 %v423
    %465 = vmatpush1.msra.mxu0 %v422
    %466 = vmatprep.subr.mxu0 %v426
    %467 = vmatpush1.msra.mxu0 %v425
    %468 = vmatprep.subr.mxu0 %v429
    %469 = vmatpush1.msra.mxu0 %v428
    %470 = vmatprep.subr.mxu0 %v432
    %471 = vmatpush1.msra.mxu0 %v431
    %472 = vmatprep.subr.mxu0 %v435
    %473 = vmatpush1.msra.mxu0 %v434
    %474 = vmatprep.subr.mxu0 %v438
    %475 = vmatpush1.msra.mxu0 %v437
    %476 = vmatprep.subr.mxu0 %v441
    %477 = vmatpush1.msra.mxu0 %v440
    %478 = vmatprep.subr.mxu0 %v444
    %479 = vmatpush1.msra.mxu0 %v443
    %480 = vmatprep.subr.mxu0 %v447
    %481 = vmatpush1.msra.mxu0 %v446
    %482 = vmatprep.subr.mxu0 %v450
    %483 = vmatpush1.msra.mxu0 %v449
    %484 = vmatprep.subr.mxu0 0.0
    %485 = vmatpush1.msra.mxu0 0.0
    %486 = vmatprep.subr.mxu0 0.0
    %487 = vmatpush1.msra.mxu0 0.0
    %488 = vmatprep.subr.mxu0 0.0
    %489 = vmatpush1.msra.mxu0 0.0
    %490 = vmatprep.subr.mxu0 0.0
    %491 = vmatpush1.msra.mxu0 0.0
    %492 = vmatprep.subr.mxu0 0.0
    %493 = vmatpush1.msra.mxu0 0.0
    %494 = vmatprep.subr.mxu0 0.0
    %495 = vmatpush1.msra.mxu0 0.0
    %496 = vmatprep.subr.mxu0 0.0
    %497 = vmatpush1.msra.mxu0 0.0
    %498 = vmatprep.subr.mxu0 0.0
    %499 = vmatpush1.msra.mxu0 0.0
    %500 = vmatprep.subr.mxu0 0.0
    %501 = vmatpush1.msra.mxu0 0.0
    %502 = vmatprep.subr.mxu0 0.0
    %503 = vmatpush1.msra.mxu0 0.0
    %504 = vmatprep.subr.mxu0 0.0
    %505 = vmatpush1.msra.mxu0 0.0
    %506 = vmatprep.subr.mxu0 0.0
    %507 = vmatpush1.msra.mxu0 0.0
    %508 = vmatprep.subr.mxu0 0.0
    %509 = vmatpush1.msra.mxu0 0.0
    %510 = vmatprep.subr.mxu0 0.0
    %511 = vmatpush1.msra.mxu0 0.0
    %512 = vmatprep.subr.mxu0 0.0
    %513 = vmatpush1.msra.mxu0 0.0
    %514 = vmatprep.subr.mxu0 0.0
    %515 = vmatpush1.msra.mxu0 0.0
    %516 = vmatprep.mubr.f32.mxu0 0.0
    %517 = vmatmul.mubr.f32.gmra.mrb[0].mxu0 %v397
    %v518 = vpop.f32.mrb[0].mxu0
    %v519 = vadd.f32 0.0, %v518
    %v520 = vpop.f32.mrb[0].mxu0
    %v521 = vadd.f32 0.0, %v520
    %522 = vdwg.mxu0
    %523 = vmatprep.subr.mxu0 0.0
    %524 = vmatpush1.msra.mxu0 %v406
    %525 = vmatprep.subr.mxu0 0.0
    %526 = vmatpush1.msra.mxu0 %v409
    %527 = vmatprep.subr.mxu0 0.0
    %528 = vmatpush1.msra.mxu0 %v412
    %529 = vmatprep.subr.mxu0 0.0
    %530 = vmatpush1.msra.mxu0 %v415
    %531 = vmatprep.subr.mxu0 0.0
    %532 = vmatpush1.msra.mxu0 %v418
    %533 = vmatprep.subr.mxu0 0.0
    %534 = vmatpush1.msra.mxu0 %v421
    %535 = vmatprep.subr.mxu0 0.0
    %536 = vmatpush1.msra.mxu0 %v424
    %537 = vmatprep.subr.mxu0 0.0
    %538 = vmatpush1.msra.mxu0 %v427
    %539 = vmatprep.subr.mxu0 0.0
    %540 = vmatpush1.msra.mxu0 %v430
    %541 = vmatprep.subr.mxu0 0.0
    %542 = vmatpush1.msra.mxu0 %v433
    %543 = vmatprep.subr.mxu0 0.0
    %544 = vmatpush1.msra.mxu0 %v436
    %545 = vmatprep.subr.mxu0 0.0
    %546 = vmatpush1.msra.mxu0 %v439
    %547 = vmatprep.subr.mxu0 0.0
    %548 = vmatpush1.msra.mxu0 %v442
    %549 = vmatprep.subr.mxu0 0.0
    %550 = vmatpush1.msra.mxu0 %v445
    %551 = vmatprep.subr.mxu0 0.0
    %552 = vmatpush1.msra.mxu0 %v448
    %553 = vmatprep.subr.mxu0 0.0
    %554 = vmatpush1.msra.mxu0 %v451
    %555 = vmatprep.subr.mxu0 0.0
    %556 = vmatpush1.msra.mxu0 0.0
    %557 = vmatprep.subr.mxu0 0.0
    %558 = vmatpush1.msra.mxu0 0.0
    %559 = vmatprep.subr.mxu0 0.0
    %560 = vmatpush1.msra.mxu0 0.0
    %561 = vmatprep.subr.mxu0 0.0
    %562 = vmatpush1.msra.mxu0 0.0
    %563 = vmatprep.subr.mxu0 0.0
    %564 = vmatpush1.msra.mxu0 0.0
    %565 = vmatprep.subr.mxu0 0.0
    %566 = vmatpush1.msra.mxu0 0.0
    %567 = vmatprep.subr.mxu0 0.0
    %568 = vmatpush1.msra.mxu0 0.0
    %569 = vmatprep.subr.mxu0 0.0
    %570 = vmatpush1.msra.mxu0 0.0
    %571 = vmatprep.subr.mxu0 0.0
    %572 = vmatpush1.msra.mxu0 0.0
    %573 = vmatprep.subr.mxu0 0.0
    %574 = vmatpush1.msra.mxu0 0.0
    %575 = vmatprep.subr.mxu0 0.0
    %576 = vmatpush1.msra.mxu0 0.0
    %577 = vmatprep.subr.mxu0 0.0
    %578 = vmatpush1.msra.mxu0 0.0
    %579 = vmatprep.subr.mxu0 0.0
    %580 = vmatpush1.msra.mxu0 0.0
    %581 = vmatprep.subr.mxu0 0.0
    %582 = vmatpush1.msra.mxu0 0.0
    %583 = vmatprep.subr.mxu0 0.0
    %584 = vmatpush1.msra.mxu0 0.0
    %585 = vmatprep.subr.mxu0 0.0
    %586 = vmatpush1.msra.mxu0 0.0
    %587 = vmatprep.mubr.f32.mxu0 0.0
    %588 = vmatmul.mubr.f32.gmra.mrb[0].mxu0 %v397
    %v589 = vpop.f32.mrb[0].mxu0
    %v590 = vadd.f32 0.0, %v589
    %v591 = vpop.f32.mrb[0].mxu0
    %592 = vdwg.mxu0
    %v593 = vadd.f32 %v401, %v519
    %v594 = vadd.f32 %v402, %v521
    %v595 = vxor.u32 %v593, 2147483648
    %v596 = vxor.u32 %v594, 2147483648
    %v597 = vmul.f32 %v595, 1.442695
    %v598 = vpow.pop %v597
    %v599 = vmul.f32 %v596, 1.442695
    %v600 = vpow.pop %v599
    %v601 = vadd.f32 %v598, 1.0
    %v602 = vadd.f32 %v600, 1.0
    %v603 = vrcp.pop %v601
    %v604 = vmul.f32 1.0, %v603
    %v605 = vrcp.pop %v602
    %v606 = vmul.f32 1.0, %v605
    %v607 = vadd.f32 %v590, %v395
    %v608 = vmul.f32 %v604, %v607
    %v609 = vadd.f32 %v403, %v608
    %v610 = vtanh.pop %v609
    %v611 = vsub.f32 1.0, %v606
    %v612 = vmul.f32 %v611, %v610
    %v613 = vmul.f32 %v606, %v397
    %v614 = vadd.f32 %v612, %v613
    %615 = vst [vmem:[#allocation4] sm:$0xff] %v614
    %s616 = smul.u32 1, 3
    %s617 = smul.addr %s616, 8
    %s618 = scalar_lea.vmem [#allocation3], %s617
    %v619 = vld [vmem:[%s618] sm:$0xff]
    %v620 = vld [vmem:[%s618 + $0x8] sm:$0xff]
    %v621 = vld [vmem:[%s618 + $0x10] sm:$0xff]
    %v622 = vld [vmem:[#allocation11] sm:$0xff]
    %v623 = vld [vmem:[#allocation11 + $0x8] sm:$0xff]
    %v624 = vld [vmem:[#allocation11 + $0x10] sm:$0xff]
    %v625 = vld [vmem:[#allocation11 + $0x18] sm:$0xff]
    %v626 = vld [vmem:[#allocation11 + $0x20] sm:$0xff]
    %v627 = vld [vmem:[#allocation11 + $0x28] sm:$0xff]
    %v628 = vld [vmem:[#allocation11 + $0x30] sm:$0xff]
    %v629 = vld [vmem:[#allocation11 + $0x38] sm:$0xff]
    %v630 = vld [vmem:[#allocation11 + $0x40] sm:$0xff]
    %v631 = vld [vmem:[#allocation11 + $0x48] sm:$0xff]
    %v632 = vld [vmem:[#allocation11 + $0x50] sm:$0xff]
    %v633 = vld [vmem:[#allocation11 + $0x58] sm:$0xff]
    %v634 = vld [vmem:[#allocation11 + $0x60] sm:$0xff]
    %v635 = vld [vmem:[#allocation11 + $0x68] sm:$0xff]
    %v636 = vld [vmem:[#allocation11 + $0x70] sm:$0xff]
    %v637 = vld [vmem:[#allocation11 + $0x78] sm:$0xff]
    %v638 = vld [vmem:[#allocation11 + $0x80] sm:$0xff]
    %v639 = vld [vmem:[#allocation11 + $0x88] sm:$0xff]
    %v640 = vld [vmem:[#allocation11 + $0x90] sm:$0xff]
    %v641 = vld [vmem:[#allocation11 + $0x98] sm:$0xff]
    %v642 = vld [vmem:[#allocation11 + $0xa0] sm:$0xff]
    %v643 = vld [vmem:[#allocation11 + $0xa8] sm:$0xff]
    %v644 = vld [vmem:[#allocation11 + $0xb0] sm:$0xff]
    %v645 = vld [vmem:[#allocation11 + $0xb8] sm:$0xff]
    %v646 = vld [vmem:[#allocation11 + $0xc0] sm:$0xff]
    %v647 = vld [vmem:[#allocation11 + $0xc8] sm:$0xff]
    %v648 = vld [vmem:[#allocation11 + $0xd0] sm:$0xff]
    %v649 = vld [vmem:[#allocation11 + $0xd8] sm:$0xff]
    %v650 = vld [vmem:[#allocation11 + $0xe0] sm:$0xff]
    %v651 = vld [vmem:[#allocation11 + $0xe8] sm:$0xff]
    %v652 = vld [vmem:[#allocation11 + $0xf0] sm:$0xff]
    %v653 = vld [vmem:[#allocation11 + $0xf8] sm:$0xff]
    %v654 = vld [vmem:[#allocation11 + $0x100] sm:$0xff]
    %v655 = vld [vmem:[#allocation11 + $0x108] sm:$0xff]
    %v656 = vld [vmem:[#allocation11 + $0x110] sm:$0xff]
    %v657 = vld [vmem:[#allocation11 + $0x118] sm:$0xff]
    %v658 = vld [vmem:[#allocation11 + $0x120] sm:$0xff]
    %v659 = vld [vmem:[#allocation11 + $0x128] sm:$0xff]
    %v660 = vld [vmem:[#allocation11 + $0x130] sm:$0xff]
    %v661 = vld [vmem:[#allocation11 + $0x138] sm:$0xff]
    %v662 = vld [vmem:[#allocation11 + $0x140] sm:$0xff]
    %v663 = vld [vmem:[#allocation11 + $0x148] sm:$0xff]
    %v664 = vld [vmem:[#allocation11 + $0x150] sm:$0xff]
    %v665 = vld [vmem:[#allocation11 + $0x158] sm:$0xff]
    %v666 = vld [vmem:[#allocation11 + $0x160] sm:$0xff]
    %v667 = vld [vmem:[#allocation11 + $0x168] sm:$0xff]
    %v668 = vld [vmem:[#allocation11 + $0x170] sm:$0xff]
    %v669 = vld [vmem:[#allocation11 + $0x178] sm:$0xff]
    %670 = vmatprep.subr.mxu0 %v623
    %671 = vmatpush1.msra.mxu0 %v622
    %672 = vmatprep.subr.mxu0 %v626
    %673 = vmatpush1.msra.mxu0 %v625
    %674 = vmatprep.subr.mxu0 %v629
    %675 = vmatpush1.msra.mxu0 %v628
    %676 = vmatprep.subr.mxu0 %v632
    %677 = vmatpush1.msra.mxu0 %v631
    %678 = vmatprep.subr.mxu0 %v635
    %679 = vmatpush1.msra.mxu0 %v634
    %680 = vmatprep.subr.mxu0 %v638
    %681 = vmatpush1.msra.mxu0 %v637
    %682 = vmatprep.subr.mxu0 %v641
    %683 = vmatpush1.msra.mxu0 %v640
    %684 = vmatprep.subr.mxu0 %v644
    %685 = vmatpush1.msra.mxu0 %v643
    %686 = vmatprep.subr.mxu0 %v647
    %687 = vmatpush1.msra.mxu0 %v646
    %688 = vmatprep.subr.mxu0 %v650
    %689 = vmatpush1.msra.mxu0 %v649
    %690 = vmatprep.subr.mxu0 %v653
    %691 = vmatpush1.msra.mxu0 %v652
    %692 = vmatprep.subr.mxu0 %v656
    %693 = vmatpush1.msra.mxu0 %v655
    %694 = vmatprep.subr.mxu0 %v659
    %695 = vmatpush1.msra.mxu0 %v658
    %696 = vmatprep.subr.mxu0 %v662
    %697 = vmatpush1.msra.mxu0 %v661
    %698 = vmatprep.subr.mxu0 %v665
    %699 = vmatpush1.msra.mxu0 %v664
    %700 = vmatprep.subr.mxu0 %v668
    %701 = vmatpush1.msra.mxu0 %v667
    %702 = vmatprep.subr.mxu0 0.0
    %703 = vmatpush1.msra.mxu0 0.0
    %704 = vmatprep.subr.mxu0 0.0
    %705 = vmatpush1.msra.mxu0 0.0
    %706 = vmatprep.subr.mxu0 0.0
    %707 = vmatpush1.msra.mxu0 0.0
    %708 = vmatprep.subr.mxu0 0.0
    %709 = vmatpush1.msra.mxu0 0.0
    %710 = vmatprep.subr.mxu0 0.0
    %711 = vmatpush1.msra.mxu0 0.0
    %712 = vmatprep.subr.mxu0 0.0
    %713 = vmatpush1.msra.mxu0 0.0
    %714 = vmatprep.subr.mxu0 0.0
    %715 = vmatpush1.msra.mxu0 0.0
    %716 = vmatprep.subr.mxu0 0.0
    %717 = vmatpush1.msra.mxu0 0.0
    %718 = vmatprep.subr.mxu0 0.0
    %719 = vmatpush1.msra.mxu0 0.0
    %720 = vmatprep.subr.mxu0 0.0
    %721 = vmatpush1.msra.mxu0 0.0
    %722 = vmatprep.subr.mxu0 0.0
    %723 = vmatpush1.msra.mxu0 0.0
    %724 = vmatprep.subr.mxu0 0.0
    %725 = vmatpush1.msra.mxu0 0.0
    %726 = vmatprep.subr.mxu0 0.0
    %727 = vmatpush1.msra.mxu0 0.0
    %728 = vmatprep.subr.mxu0 0.0
    %729 = vmatpush1.msra.mxu0 0.0
    %730 = vmatprep.subr.mxu0 0.0
    %731 = vmatpush1.msra.mxu0 0.0
    %732 = vmatprep.subr.mxu0 0.0
    %733 = vmatpush1.msra.mxu0 0.0
    %734 = vmatprep.mubr.f32.mxu0 0.0
    %735 = vmatmul.mubr.f32.gmra.mrb[0].mxu0 %v614
    %v736 = vpop.f32.mrb[0].mxu0
    %v737 = vadd.f32 0.0, %v736
    %v738 = vpop.f32.mrb[0].mxu0
    %v739 = vadd.f32 0.0, %v738
    %740 = vdwg.mxu0
    %741 = vmatprep.subr.mxu0 0.0
    %742 = vmatpush1.msra.mxu0 %v624
    %743 = vmatprep.subr.mxu0 0.0
    %744 = vmatpush1.msra.mxu0 %v627
    %745 = vmatprep.subr.mxu0 0.0
    %746 = vmatpush1.msra.mxu0 %v630
    %747 = vmatprep.subr.mxu0 0.0
    %748 = vmatpush1.msra.mxu0 %v633
    %749 = vmatprep.subr.mxu0 0.0
    %750 = vmatpush1.msra.mxu0 %v636
    %751 = vmatprep.subr.mxu0 0.0
    %752 = vmatpush1.msra.mxu0 %v639
    %753 = vmatprep.subr.mxu0 0.0
    %754 = vmatpush1.msra.mxu0 %v642
    %755 = vmatprep.subr.mxu0 0.0
    %756 = vmatpush1.msra.mxu0 %v645
    %757 = vmatprep.subr.mxu0 0.0
    %758 = vmatpush1.msra.mxu0 %v648
    %759 = vmatprep.subr.mxu0 0.0
    %760 = vmatpush1.msra.mxu0 %v651
    %761 = vmatprep.subr.mxu0 0.0
    %762 = vmatpush1.msra.mxu0 %v654
    %763 = vmatprep.subr.mxu0 0.0
    %764 = vmatpush1.msra.mxu0 %v657
    %765 = vmatprep.subr.mxu0 0.0
    %766 = vmatpush1.msra.mxu0 %v660
    %767 = vmatprep.subr.mxu0 0.0
    %768 = vmatpush1.msra.mxu0 %v663
    %769 = vmatprep.subr.mxu0 0.0
    %770 = vmatpush1.msra.mxu0 %v666
    %771 = vmatprep.subr.mxu0 0.0
    %772 = vmatpush1.msra.mxu0 %v669
    %773 = vmatprep.subr.mxu0 0.0
    %774 = vmatpush1.msra.mxu0 0.0
    %775 = vmatprep.subr.mxu0 0.0
    %776 = vmatpush1.msra.mxu0 0.0
    %777 = vmatprep.subr.mxu0 0.0
    %778 = vmatpush1.msra.mxu0 0.0
    %779 = vmatprep.subr.mxu0 0.0
    %780 = vmatpush1.msra.mxu0 0.0
    %781 = vmatprep.subr.mxu0 0.0
    %782 = vmatpush1.msra.mxu0 0.0
    %783 = vmatprep.subr.mxu0 0.0
    %784 = vmatpush1.msra.mxu0 0.0
    %785 = vmatprep.subr.mxu0 0.0
    %786 = vmatpush1.msra.mxu0 0.0
    %787 = vmatprep.subr.mxu0 0.0
    %788 = vmatpush1.msra.mxu0 0.0
    %789 = vmatprep.subr.mxu0 0.0
    %790 = vmatpush1.msra.mxu0 0.0
    %791 = vmatprep.subr.mxu0 0.0
    %792 = vmatpush1.msra.mxu0 0.0
    %793 = vmatprep.subr.mxu0 0.0
    %794 = vmatpush1.msra.mxu0 0.0
    %795 = vmatprep.subr.mxu0 0.0
    %796 = vmatpush1.msra.mxu0 0.0
    %797 = vmatprep.subr.mxu0 0.0
    %798 = vmatpush1.msra.mxu0 0.0
    %799 = vmatprep.subr.mxu0 0.0
    %800 = vmatpush1.msra.mxu0 0.0
    %801 = vmatprep.subr.mxu0 0.0
    %802 = vmatpush1.msra.mxu0 0.0
    %803 = vmatprep.subr.mxu0 0.0
    %804 = vmatpush1.msra.mxu0 0.0
    %805 = vmatprep.mubr.f32.mxu0 0.0
    %806 = vmatmul.mubr.f32.gmra.mrb[0].mxu0 %v614
    %v807 = vpop.f32.mrb[0].mxu0
    %v808 = vadd.f32 0.0, %v807
    %v809 = vpop.f32.mrb[0].mxu0
    %810 = vdwg.mxu0
    %v811 = vadd.f32 %v619, %v737
    %v812 = vadd.f32 %v620, %v739
    %v813 = vxor.u32 %v811, 2147483648
    %v814 = vxor.u32 %v812, 2147483648
    %v815 = vmul.f32 %v813, 1.442695
    %v816 = vpow.pop %v815
    %v817 = vmul.f32 %v814, 1.442695
    %v818 = vpow.pop %v817
    %v819 = vadd.f32 %v816, 1.0
    %v820 = vadd.f32 %v818, 1.0
    %v821 = vrcp.pop %v819
    %v822 = vmul.f32 1.0, %v821
    %v823 = vrcp.pop %v820
    %v824 = vmul.f32 1.0, %v823
    %v825 = vadd.f32 %v808, %v395
    %v826 = vmul.f32 %v822, %v825
    %v827 = vadd.f32 %v621, %v826
    %v828 = vtanh.pop %v827
    %v829 = vsub.f32 1.0, %v824
    %v830 = vmul.f32 %v829, %v828
    %v831 = vmul.f32 %v824, %v614
    %v832 = vadd.f32 %v830, %v831
    %s833 = scalar_lea.vmem [#allocation4], 8
    %834 = vst [vmem:[%s833] sm:$0xff] %v832
    %s835 = smul.u32 2, 3
    %s836 = smul.addr %s835, 8
    %s837 = scalar_lea.vmem [#allocation3], %s836
    %v838 = vld [vmem:[%s837] sm:$0xff]
    %v839 = vld [vmem:[%s837 + $0x8] sm:$0xff]
    %v840 = vld [vmem:[%s837 + $0x10] sm:$0xff]
    %v841 = vld [vmem:[#allocation11] sm:$0xff]
    %v842 = vld [vmem:[#allocation11 + $0x8] sm:$0xff]
    %v843 = vld [vmem:[#allocation11 + $0x10] sm:$0xff]
    %v844 = vld [vmem:[#allocation11 + $0x18] sm:$0xff]
    %v845 = vld [vmem:[#allocation11 + $0x20] sm:$0xff]
    %v846 = vld [vmem:[#allocation11 + $0x28] sm:$0xff]
    %v847 = vld [vmem:[#allocation11 + $0x30] sm:$0xff]
    %v848 = vld [vmem:[#allocation11 + $0x38] sm:$0xff]
    %v849 = vld [vmem:[#allocation11 + $0x40] sm:$0xff]
    %v850 = vld [vmem:[#allocation11 + $0x48] sm:$0xff]
    %v851 = vld [vmem:[#allocation11 + $0x50] sm:$0xff]
    %v852 = vld [vmem:[#allocation11 + $0x58] sm:$0xff]
    %v853 = vld [vmem:[#allocation11 + $0x60] sm:$0xff]
    %v854 = vld [vmem:[#allocation11 + $0x68] sm:$0xff]
    %v855 = vld [vmem:[#allocation11 + $0x70] sm:$0xff]
    %v856 = vld [vmem:[#allocation11 + $0x78] sm:$0xff]
    %v857 = vld [vmem:[#allocation11 + $0x80] sm:$0xff]
    %v858 = vld [vmem:[#allocation11 + $0x88] sm:$0xff]
    %v859 = vld [vmem:[#allocation11 + $0x90] sm:$0xff]
    %v860 = vld [vmem:[#allocation11 + $0x98] sm:$0xff]
    %v861 = vld [vmem:[#allocation11 + $0xa0] sm:$0xff]
    %v862 = vld [vmem:[#allocation11 + $0xa8] sm:$0xff]
    %v863 = vld [vmem:[#allocation11 + $0xb0] sm:$0xff]
    %v864 = vld [vmem:[#allocation11 + $0xb8] sm:$0xff]
    %v865 = vld [vmem:[#allocation11 + $0xc0] sm:$0xff]
    %v866 = vld [vmem:[#allocation11 + $0xc8] sm:$0xff]
    %v867 = vld [vmem:[#allocation11 + $0xd0] sm:$0xff]
    %v868 = vld [vmem:[#allocation11 + $0xd8] sm:$0xff]
    %v869 = vld [vmem:[#allocation11 + $0xe0] sm:$0xff]
    %v870 = vld [vmem:[#allocation11 + $0xe8] sm:$0xff]
    %v871 = vld [vmem:[#allocation11 + $0xf0] sm:$0xff]
    %v872 = vld [vmem:[#allocation11 + $0xf8] sm:$0xff]
    %v873 = vld [vmem:[#allocation11 + $0x100] sm:$0xff]
    %v874 = vld [vmem:[#allocation11 + $0x108] sm:$0xff]
    %v875 = vld [vmem:[#allocation11 + $0x110] sm:$0xff]
    %v876 = vld [vmem:[#allocation11 + $0x118] sm:$0xff]
    %v877 = vld [vmem:[#allocation11 + $0x120] sm:$0xff]
    %v878 = vld [vmem:[#allocation11 + $0x128] sm:$0xff]
    %v879 = vld [vmem:[#allocation11 + $0x130] sm:$0xff]
    %v880 = vld [vmem:[#allocation11 + $0x138] sm:$0xff]
    %v881 = vld [vmem:[#allocation11 + $0x140] sm:$0xff]
    %v882 = vld [vmem:[#allocation11 + $0x148] sm:$0xff]
    %v883 = vld [vmem:[#allocation11 + $0x150] sm:$0xff]
    %v884 = vld [vmem:[#allocation11 + $0x158] sm:$0xff]
    %v885 = vld [vmem:[#allocation11 + $0x160] sm:$0xff]
    %v886 = vld [vmem:[#allocation11 + $0x168] sm:$0xff]
    %v887 = vld [vmem:[#allocation11 + $0x170] sm:$0xff]
    %v888 = vld [vmem:[#allocation11 + $0x178] sm:$0xff]
    %889 = vmatprep.subr.mxu0 %v842
    %890 = vmatpush1.msra.mxu0 %v841
    %891 = vmatprep.subr.mxu0 %v845
    %892 = vmatpush1.msra.mxu0 %v844
    %893 = vmatprep.subr.mxu0 %v848
    %894 = vmatpush1.msra.mxu0 %v847
    %895 = vmatprep.subr.mxu0 %v851
    %896 = vmatpush1.msra.mxu0 %v850
    %897 = vmatprep.subr.mxu0 %v854
    %898 = vmatpush1.msra.mxu0 %v853
    %899 = vmatprep.subr.mxu0 %v857
    %900 = vmatpush1.msra.mxu0 %v856
    %901 = vmatprep.subr.mxu0 %v860
    %902 = vmatpush1.msra.mxu0 %v859
    %903 = vmatprep.subr.mxu0 %v863
    %904 = vmatpush1.msra.mxu0 %v862
    %905 = vmatprep.subr.mxu0 %v866
    %906 = vmatpush1.msra.mxu0 %v865
    %907 = vmatprep.subr.mxu0 %v869
    %908 = vmatpush1.msra.mxu0 %v868
    %909 = vmatprep.subr.mxu0 %v872
    %910 = vmatpush1.msra.mxu0 %v871
    %911 = vmatprep.subr.mxu0 %v875
    %912 = vmatpush1.msra.mxu0 %v874
    %913 = vmatprep.subr.mxu0 %v878
    %914 = vmatpush1.msra.mxu0 %v877
    %915 = vmatprep.subr.mxu0 %v881
    %916 = vmatpush1.msra.mxu0 %v880
    %917 = vmatprep.subr.mxu0 %v884
    %918 = vmatpush1.msra.mxu0 %v883
    %919 = vmatprep.subr.mxu0 %v887
    %920 = vmatpush1.msra.mxu0 %v886
    %921 = vmatprep.subr.mxu0 0.0
    %922 = vmatpush1.msra.mxu0 0.0
    %923 = vmatprep.subr.mxu0 0.0
    %924 = vmatpush1.msra.mxu0 0.0
    %925 = vmatprep.subr.mxu0 0.0
    %926 = vmatpush1.msra.mxu0 0.0
    %927 = vmatprep.subr.mxu0 0.0
    %928 = vmatpush1.msra.mxu0 0.0
    %929 = vmatprep.subr.mxu0 0.0
    %930 = vmatpush1.msra.mxu0 0.0
    %931 = vmatprep.subr.mxu0 0.0
    %932 = vmatpush1.msra.mxu0 0.0
    %933 = vmatprep.subr.mxu0 0.0
    %934 = vmatpush1.msra.mxu0 0.0
    %935 = vmatprep.subr.mxu0 0.0
    %936 = vmatpush1.msra.mxu0 0.0
    %937 = vmatprep.subr.mxu0 0.0
    %938 = vmatpush1.msra.mxu0 0.0
    %939 = vmatprep.subr.mxu0 0.0
    %940 = vmatpush1.msra.mxu0 0.0
    %941 = vmatprep.subr.mxu0 0.0
    %942 = vmatpush1.msra.mxu0 0.0
    %943 = vmatprep.subr.mxu0 0.0
    %944 = vmatpush1.msra.mxu0 0.0
    %945 = vmatprep.subr.mxu0 0.0
    %946 = vmatpush1.msra.mxu0 0.0
    %947 = vmatprep.subr.mxu0 0.0
    %948 = vmatpush1.msra.mxu0 0.0
    %949 = vmatprep.subr.mxu0 0.0
    %950 = vmatpush1.msra.mxu0 0.0
    %951 = vmatprep.subr.mxu0 0.0
    %952 = vmatpush1.msra.mxu0 0.0
    %953 = vmatprep.mubr.f32.mxu0 0.0
    %954 = vmatmul.mubr.f32.gmra.mrb[0].mxu0 %v832
    %v955 = vpop.f32.mrb[0].mxu0
    %v956 = vadd.f32 0.0, %v955
    %v957 = vpop.f32.mrb[0].mxu0
    %v958 = vadd.f32 0.0, %v957
    %959 = vdwg.mxu0
    %960 = vmatprep.subr.mxu0 0.0
    %961 = vmatpush1.msra.mxu0 %v843
    %962 = vmatprep.subr.mxu0 0.0
    %963 = vmatpush1.msra.mxu0 %v846
    %964 = vmatprep.subr.mxu0 0.0
    %965 = vmatpush1.msra.mxu0 %v849
    %966 = vmatprep.subr.mxu0 0.0
    %967 = vmatpush1.msra.mxu0 %v852
    %968 = vmatprep.subr.mxu0 0.0
    %969 = vmatpush1.msra.mxu0 %v855
    %970 = vmatprep.subr.mxu0 0.0
    %971 = vmatpush1.msra.mxu0 %v858
    %972 = vmatprep.subr.mxu0 0.0
    %973 = vmatpush1.msra.mxu0 %v861
    %974 = vmatprep.subr.mxu0 0.0
    %975 = vmatpush1.msra.mxu0 %v864
    %976 = vmatprep.subr.mxu0 0.0
    %977 = vmatpush1.msra.mxu0 %v867
    %978 = vmatprep.subr.mxu0 0.0
    %979 = vmatpush1.msra.mxu0 %v870
    %980 = vmatprep.subr.mxu0 0.0
    %981 = vmatpush1.msra.mxu0 %v873
    %982 = vmatprep.subr.mxu0 0.0
    %983 = vmatpush1.msra.mxu0 %v876
    %984 = vmatprep.subr.mxu0 0.0
    %985 = vmatpush1.msra.mxu0 %v879
    %986 = vmatprep.subr.mxu0 0.0
    %987 = vmatpush1.msra.mxu0 %v882
    %988 = vmatprep.subr.mxu0 0.0
    %989 = vmatpush1.msra.mxu0 %v885
    %990 = vmatprep.subr.mxu0 0.0
    %991 = vmatpush1.msra.mxu0 %v888
    %992 = vmatprep.subr.mxu0 0.0
    %993 = vmatpush1.msra.mxu0 0.0
    %994 = vmatprep.subr.mxu0 0.0
    %995 = vmatpush1.msra.mxu0 0.0
    %996 = vmatprep.subr.mxu0 0.0
    %997 = vmatpush1.msra.mxu0 0.0
    %998 = vmatprep.subr.mxu0 0.0
    %999 = vmatpush1.msra.mxu0 0.0
    %1000 = vmatprep.subr.mxu0 0.0
    %1001 = vmatpush1.msra.mxu0 0.0
    %1002 = vmatprep.subr.mxu0 0.0
    %1003 = vmatpush1.msra.mxu0 0.0
    %1004 = vmatprep.subr.mxu0 0.0
    %1005 = vmatpush1.msra.mxu0 0.0
    %1006 = vmatprep.subr.mxu0 0.0
    %1007 = vmatpush1.msra.mxu0 0.0
    %1008 = vmatprep.subr.mxu0 0.0
    %1009 = vmatpush1.msra.mxu0 0.0
    %1010 = vmatprep.subr.mxu0 0.0
    %1011 = vmatpush1.msra.mxu0 0.0
    %1012 = vmatprep.subr.mxu0 0.0
    %1013 = vmatpush1.msra.mxu0 0.0
    %1014 = vmatprep.subr.mxu0 0.0
    %1015 = vmatpush1.msra.mxu0 0.0
    %1016 = vmatprep.subr.mxu0 0.0
    %1017 = vmatpush1.msra.mxu0 0.0
    %1018 = vmatprep.subr.mxu0 0.0
    %1019 = vmatpush1.msra.mxu0 0.0
    %1020 = vmatprep.subr.mxu0 0.0
    %1021 = vmatpush1.msra.mxu0 0.0
    %1022 = vmatprep.subr.mxu0 0.0
    %1023 = vmatpush1.msra.mxu0 0.0
    %1024 = vmatprep.mubr.f32.mxu0 0.0
    %1025 = vmatmul.mubr.f32.gmra.mrb[0].mxu0 %v832
    %v1026 = vpop.f32.mrb[0].mxu0
    %v1027 = vadd.f32 0.0, %v1026
    %v1028 = vpop.f32.mrb[0].mxu0
    %1029 = vdwg.mxu0
    %v1030 = vadd.f32 %v838, %v956
    %v1031 = vadd.f32 %v839, %v958
    %v1032 = vxor.u32 %v1030, 2147483648
    %v1033 = vxor.u32 %v1031, 2147483648
    %v1034 = vmul.f32 %v1032, 1.442695
    %v1035 = vpow.pop %v1034
    %v1036 = vmul.f32 %v1033, 1.442695
    %v1037 = vpow.pop %v1036
    %v1038 = vadd.f32 %v1035, 1.0
    %v1039 = vadd.f32 %v1037, 1.0
    %v1040 = vrcp.pop %v1038
    %v1041 = vmul.f32 1.0, %v1040
    %v1042 = vrcp.pop %v1039
    %v1043 = vmul.f32 1.0, %v1042
    %v1044 = vadd.f32 %v1027, %v395
    %v1045 = vmul.f32 %v1041, %v1044
    %v1046 = vadd.f32 %v840, %v1045
    %v1047 = vtanh.pop %v1046
    %v1048 = vsub.f32 1.0, %v1043
    %v1049 = vmul.f32 %v1048, %v1047
    %v1050 = vmul.f32 %v1043, %v832
    %v1051 = vadd.f32 %v1049, %v1050
    %s1052 = scalar_lea.vmem [#allocation4], 16
    %1053 = vst [vmem:[%s1052] sm:$0xff] %v1051
    %s1054 = smul.u32 3, 3
    %s1055 = smul.addr %s1054, 8
    %s1056 = scalar_lea.vmem [#allocation3], %s1055
    %v1057 = vld [vmem:[%s1056] sm:$0xff]
    %v1058 = vld [vmem:[%s1056 + $0x8] sm:$0xff]
    %v1059 = vld [vmem:[%s1056 + $0x10] sm:$0xff]
    %v1060 = vld [vmem:[#allocation11] sm:$0xff]
    %v1061 = vld [vmem:[#allocation11 + $0x8] sm:$0xff]
    %v1062 = vld [vmem:[#allocation11 + $0x10] sm:$0xff]
    %v1063 = vld [vmem:[#allocation11 + $0x18] sm:$0xff]
    %v1064 = vld [vmem:[#allocation11 + $0x20] sm:$0xff]
    %v1065 = vld [vmem:[#allocation11 + $0x28] sm:$0xff]
    %v1066 = vld [vmem:[#allocation11 + $0x30] sm:$0xff]
    %v1067 = vld [vmem:[#allocation11 + $0x38] sm:$0xff]
    %v1068 = vld [vmem:[#allocation11 + $0x40] sm:$0xff]
    %v1069 = vld [vmem:[#allocation11 + $0x48] sm:$0xff]
    %v1070 = vld [vmem:[#allocation11 + $0x50] sm:$0xff]
    %v1071 = vld [vmem:[#allocation11 + $0x58] sm:$0xff]
    %v1072 = vld [vmem:[#allocation11 + $0x60] sm:$0xff]
    %v1073 = vld [vmem:[#allocation11 + $0x68] sm:$0xff]
    %v1074 = vld [vmem:[#allocation11 + $0x70] sm:$0xff]
    %v1075 = vld [vmem:[#allocation11 + $0x78] sm:$0xff]
    %v1076 = vld [vmem:[#allocation11 + $0x80] sm:$0xff]
    %v1077 = vld [vmem:[#allocation11 + $0x88] sm:$0xff]
    %v1078 = vld [vmem:[#allocation11 + $0x90] sm:$0xff]
    %v1079 = vld [vmem:[#allocation11 + $0x98] sm:$0xff]
    %v1080 = vld [vmem:[#allocation11 + $0xa0] sm:$0xff]
    %v1081 = vld [vmem:[#allocation11 + $0xa8] sm:$0xff]
    %v1082 = vld [vmem:[#allocation11 + $0xb0] sm:$0xff]
    %v1083 = vld [vmem:[#allocation11 + $0xb8] sm:$0xff]
    %v1084 = vld [vmem:[#allocation11 + $0xc0] sm:$0xff]
    %v1085 = vld [vmem:[#allocation11 + $0xc8] sm:$0xff]
    %v1086 = vld [vmem:[#allocation11 + $0xd0] sm:$0xff]
    %v1087 = vld [vmem:[#allocation11 + $0xd8] sm:$0xff]
    %v1088 = vld [vmem:[#allocation11 + $0xe0] sm:$0xff]
    %v1089 = vld [vmem:[#allocation11 + $0xe8] sm:$0xff]
    %v1090 = vld [vmem:[#allocation11 + $0xf0] sm:$0xff]
    %v1091 = vld [vmem:[#allocation11 + $0xf8] sm:$0xff]
    %v1092 = vld [vmem:[#allocation11 + $0x100] sm:$0xff]
    %v1093 = vld [vmem:[#allocation11 + $0x108] sm:$0xff]
    %v1094 = vld [vmem:[#allocation11 + $0x110] sm:$0xff]
    %v1095 = vld [vmem:[#allocation11 + $0x118] sm:$0xff]
    %v1096 = vld [vmem:[#allocation11 + $0x120] sm:$0xff]
    %v1097 = vld [vmem:[#allocation11 + $0x128] sm:$0xff]
    %v1098 = vld [vmem:[#allocation11 + $0x130] sm:$0xff]
    %v1099 = vld [vmem:[#allocation11 + $0x138] sm:$0xff]
    %v1100 = vld [vmem:[#allocation11 + $0x140] sm:$0xff]
    %v1101 = vld [vmem:[#allocation11 + $0x148] sm:$0xff]
    %v1102 = vld [vmem:[#allocation11 + $0x150] sm:$0xff]
    %v1103 = vld [vmem:[#allocation11 + $0x158] sm:$0xff]
    %v1104 = vld [vmem:[#allocation11 + $0x160] sm:$0xff]
    %v1105 = vld [vmem:[#allocation11 + $0x168] sm:$0xff]
    %v1106 = vld [vmem:[#allocation11 + $0x170] sm:$0xff]
    %v1107 = vld [vmem:[#allocation11 + $0x178] sm:$0xff]
    %1108 = vmatprep.subr.mxu0 %v1061
    %1109 = vmatpush1.msra.mxu0 %v1060
    %1110 = vmatprep.subr.mxu0 %v1064
    %1111 = vmatpush1.msra.mxu0 %v1063
    %1112 = vmatprep.subr.mxu0 %v1067
    %1113 = vmatpush1.msra.mxu0 %v1066
    %1114 = vmatprep.subr.mxu0 %v1070
    %1115 = vmatpush1.msra.mxu0 %v1069
    %1116 = vmatprep.subr.mxu0 %v1073
    %1117 = vmatpush1.msra.mxu0 %v1072
    %1118 = vmatprep.subr.mxu0 %v1076
    %1119 = vmatpush1.msra.mxu0 %v1075
    %1120 = vmatprep.subr.mxu0 %v1079
    %1121 = vmatpush1.msra.mxu0 %v1078
    %1122 = vmatprep.subr.mxu0 %v1082
    %1123 = vmatpush1.msra.mxu0 %v1081
    %1124 = vmatprep.subr.mxu0 %v1085
    %1125 = vmatpush1.msra.mxu0 %v1084
    %1126 = vmatprep.subr.mxu0 %v1088
    %1127 = vmatpush1.msra.mxu0 %v1087
    %1128 = vmatprep.subr.mxu0 %v1091
    %1129 = vmatpush1.msra.mxu0 %v1090
    %1130 = vmatprep.subr.mxu0 %v1094
    %1131 = vmatpush1.msra.mxu0 %v1093
    %1132 = vmatprep.subr.mxu0 %v1097
    %1133 = vmatpush1.msra.mxu0 %v1096
    %1134 = vmatprep.subr.mxu0 %v1100
    %1135 = vmatpush1.msra.mxu0 %v1099
    %1136 = vmatprep.subr.mxu0 %v1103
    %1137 = vmatpush1.msra.mxu0 %v1102
    %1138 = vmatprep.subr.mxu0 %v1106
    %1139 = vmatpush1.msra.mxu0 %v1105
    %1140 = vmatprep.subr.mxu0 0.0
    %1141 = vmatpush1.msra.mxu0 0.0
    %1142 = vmatprep.subr.mxu0 0.0
    %1143 = vmatpush1.msra.mxu0 0.0
    %1144 = vmatprep.subr.mxu0 0.0
    %1145 = vmatpush1.msra.mxu0 0.0
    %1146 = vmatprep.subr.mxu0 0.0
    %1147 = vmatpush1.msra.mxu0 0.0
    %1148 = vmatprep.subr.mxu0 0.0
    %1149 = vmatpush1.msra.mxu0 0.0
    %1150 = vmatprep.subr.mxu0 0.0
    %1151 = vmatpush1.msra.mxu0 0.0
    %1152 = vmatprep.subr.mxu0 0.0
    %1153 = vmatpush1.msra.mxu0 0.0
    %1154 = vmatprep.subr.mxu0 0.0
    %1155 = vmatpush1.msra.mxu0 0.0
    %1156 = vmatprep.subr.mxu0 0.0
    %1157 = vmatpush1.msra.mxu0 0.0
    %1158 = vmatprep.subr.mxu0 0.0
    %1159 = vmatpush1.msra.mxu0 0.0
    %1160 = vmatprep.subr.mxu0 0.0
    %1161 = vmatpush1.msra.mxu0 0.0
    %1162 = vmatprep.subr.mxu0 0.0
    %1163 = vmatpush1.msra.mxu0 0.0
    %1164 = vmatprep.subr.mxu0 0.0
    %1165 = vmatpush1.msra.mxu0 0.0
    %1166 = vmatprep.subr.mxu0 0.0
    %1167 = vmatpush1.msra.mxu0 0.0
    %1168 = vmatprep.subr.mxu0 0.0
    %1169 = vmatpush1.msra.mxu0 0.0
    %1170 = vmatprep.subr.mxu0 0.0
    %1171 = vmatpush1.msra.mxu0 0.0
    %1172 = vmatprep.mubr.f32.mxu0 0.0
    %1173 = vmatmul.mubr.f32.gmra.mrb[0].mxu0 %v1051
    %v1174 = vpop.f32.mrb[0].mxu0
    %v1175 = vadd.f32 0.0, %v1174
    %v1176 = vpop.f32.mrb[0].mxu0
    %v1177 = vadd.f32 0.0, %v1176
    %1178 = vdwg.mxu0
    %1179 = vmatprep.subr.mxu0 0.0
    %1180 = vmatpush1.msra.mxu0 %v1062
    %1181 = vmatprep.subr.mxu0 0.0
    %1182 = vmatpush1.msra.mxu0 %v1065
    %1183 = vmatprep.subr.mxu0 0.0
    %1184 = vmatpush1.msra.mxu0 %v1068
    %1185 = vmatprep.subr.mxu0 0.0
    %1186 = vmatpush1.msra.mxu0 %v1071
    %1187 = vmatprep.subr.mxu0 0.0
    %1188 = vmatpush1.msra.mxu0 %v1074
    %1189 = vmatprep.subr.mxu0 0.0
    %1190 = vmatpush1.msra.mxu0 %v1077
    %1191 = vmatprep.subr.mxu0 0.0
    %1192 = vmatpush1.msra.mxu0 %v1080
    %1193 = vmatprep.subr.mxu0 0.0
    %1194 = vmatpush1.msra.mxu0 %v1083
    %1195 = vmatprep.subr.mxu0 0.0
    %1196 = vmatpush1.msra.mxu0 %v1086
    %1197 = vmatprep.subr.mxu0 0.0
    %1198 = vmatpush1.msra.mxu0 %v1089
    %1199 = vmatprep.subr.mxu0 0.0
    %1200 = vmatpush1.msra.mxu0 %v1092
    %1201 = vmatprep.subr.mxu0 0.0
    %1202 = vmatpush1.msra.mxu0 %v1095
    %1203 = vmatprep.subr.mxu0 0.0
    %1204 = vmatpush1.msra.mxu0 %v1098
    %1205 = vmatprep.subr.mxu0 0.0
    %1206 = vmatpush1.msra.mxu0 %v1101
    %1207 = vmatprep.subr.mxu0 0.0
    %1208 = vmatpush1.msra.mxu0 %v1104
    %1209 = vmatprep.subr.mxu0 0.0
    %1210 = vmatpush1.msra.mxu0 %v1107
    %1211 = vmatprep.subr.mxu0 0.0
    %1212 = vmatpush1.msra.mxu0 0.0
    %1213 = vmatprep.subr.mxu0 0.0
    %1214 = vmatpush1.msra.mxu0 0.0
    %1215 = vmatprep.subr.mxu0 0.0
    %1216 = vmatpush1.msra.mxu0 0.0
    %1217 = vmatprep.subr.mxu0 0.0
    %1218 = vmatpush1.msra.mxu0 0.0
    %1219 = vmatprep.subr.mxu0 0.0
    %1220 = vmatpush1.msra.mxu0 0.0
    %1221 = vmatprep.subr.mxu0 0.0
    %1222 = vmatpush1.msra.mxu0 0.0
    %1223 = vmatprep.subr.mxu0 0.0
    %1224 = vmatpush1.msra.mxu0 0.0
    %1225 = vmatprep.subr.mxu0 0.0
    %1226 = vmatpush1.msra.mxu0 0.0
    %1227 = vmatprep.subr.mxu0 0.0
    %1228 = vmatpush1.msra.mxu0 0.0
    %1229 = vmatprep.subr.mxu0 0.0
    %1230 = vmatpush1.msra.mxu0 0.0
    %1231 = vmatprep.subr.mxu0 0.0
    %1232 = vmatpush1.msra.mxu0 0.0
    %1233 = vmatprep.subr.mxu0 0.0
    %1234 = vmatpush1.msra.mxu0 0.0
    %1235 = vmatprep.subr.mxu0 0.0
    %1236 = vmatpush1.msra.mxu0 0.0
    %1237 = vmatprep.subr.mxu0 0.0
    %1238 = vmatpush1.msra.mxu0 0.0
    %1239 = vmatprep.subr.mxu0 0.0
    %1240 = vmatpush1.msra.mxu0 0.0
    %1241 = vmatprep.subr.mxu0 0.0
    %1242 = vmatpush1.msra.mxu0 0.0
    %1243 = vmatprep.mubr.f32.mxu0 0.0
    %1244 = vmatmul.mubr.f32.gmra.mrb[0].mxu0 %v1051
    %v1245 = vpop.f32.mrb[0].mxu0
    %v1246 = vadd.f32 0.0, %v1245
    %v1247 = vpop.f32.mrb[0].mxu0
    %1248 = vdwg.mxu0
    %v1249 = vadd.f32 %v1057, %v1175
    %v1250 = vadd.f32 %v1058, %v1177
    %v1251 = vxor.u32 %v1249, 2147483648
    %v1252 = vxor.u32 %v1250, 2147483648
    %v1253 = vmul.f32 %v1251, 1.442695
    %v1254 = vpow.pop %v1253
    %v1255 = vmul.f32 %v1252, 1.442695
    %v1256 = vpow.pop %v1255
    %v1257 = vadd.f32 %v1254, 1.0
    %v1258 = vadd.f32 %v1256, 1.0
    %v1259 = vrcp.pop %v1257
    %v1260 = vmul.f32 1.0, %v1259
    %v1261 = vrcp.pop %v1258
    %v1262 = vmul.f32 1.0, %v1261
    %v1263 = vadd.f32 %v1246, %v395
    %v1264 = vmul.f32 %v1260, %v1263
    %v1265 = vadd.f32 %v1059, %v1264
    %v1266 = vtanh.pop %v1265
    %v1267 = vsub.f32 1.0, %v1262
    %v1268 = vmul.f32 %v1267, %v1266
    %v1269 = vmul.f32 %v1262, %v1051
    %v1270 = vadd.f32 %v1268, %v1269
    %s1271 = scalar_lea.vmem [#allocation4], 24
    %1272 = vst [vmem:[%s1271] sm:$0xff] %v1270
    %s1273 = smul.u32 4, 3
    %s1274 = smul.addr %s1273, 8
    %s1275 = scalar_lea.vmem [#allocation3], %s1274
    %v1276 = vld [vmem:[%s1275] sm:$0xff]
    %v1277 = vld [vmem:[%s1275 + $0x8] sm:$0xff]
    %v1278 = vld [vmem:[%s1275 + $0x10] sm:$0xff]
    %v1279 = vld [vmem:[#allocation11] sm:$0xff]
    %v1280 = vld [vmem:[#allocation11 + $0x8] sm:$0xff]
    %v1281 = vld [vmem:[#allocation11 + $0x10] sm:$0xff]
    %v1282 = vld [vmem:[#allocation11 + $0x18] sm:$0xff]
    %v1283 = vld [vmem:[#allocation11 + $0x20] sm:$0xff]
    %v1284 = vld [vmem:[#allocation11 + $0x28] sm:$0xff]
    %v1285 = vld [vmem:[#allocation11 + $0x30] sm:$0xff]
    %v1286 = vld [vmem:[#allocation11 + $0x38] sm:$0xff]
    %v1287 = vld [vmem:[#allocation11 + $0x40] sm:$0xff]
    %v1288 = vld [vmem:[#allocation11 + $0x48] sm:$0xff]
    %v1289 = vld [vmem:[#allocation11 + $0x50] sm:$0xff]
    %v1290 = vld [vmem:[#allocation11 + $0x58] sm:$0xff]
    %v1291 = vld [vmem:[#allocation11 + $0x60] sm:$0xff]
    %v1292 = vld [vmem:[#allocation11 + $0x68] sm:$0xff]
    %v1293 = vld [vmem:[#allocation11 + $0x70] sm:$0xff]
    %v1294 = vld [vmem:[#allocation11 + $0x78] sm:$0xff]
    %v1295 = vld [vmem:[#allocation11 + $0x80] sm:$0xff]
    %v1296 = vld [vmem:[#allocation11 + $0x88] sm:$0xff]
    %v1297 = vld [vmem:[#allocation11 + $0x90] sm:$0xff]
    %v1298 = vld [vmem:[#allocation11 + $0x98] sm:$0xff]
    %v1299 = vld [vmem:[#allocation11 + $0xa0] sm:$0xff]
    %v1300 = vld [vmem:[#allocation11 + $0xa8] sm:$0xff]
    %v1301 = vld [vmem:[#allocation11 + $0xb0] sm:$0xff]
    %v1302 = vld [vmem:[#allocation11 + $0xb8] sm:$0xff]
    %v1303 = vld [vmem:[#allocation11 + $0xc0] sm:$0xff]
    %v1304 = vld [vmem:[#allocation11 + $0xc8] sm:$0xff]
    %v1305 = vld [vmem:[#allocation11 + $0xd0] sm:$0xff]
    %v1306 = vld [vmem:[#allocation11 + $0xd8] sm:$0xff]
    %v1307 = vld [vmem:[#allocation11 + $0xe0] sm:$0xff]
    %v1308 = vld [vmem:[#allocation11 + $0xe8] sm:$0xff]
    %v1309 = vld [vmem:[#allocation11 + $0xf0] sm:$0xff]
    %v1310 = vld [vmem:[#allocation11 + $0xf8] sm:$0xff]
    %v1311 = vld [vmem:[#allocation11 + $0x100] sm:$0xff]
    %v1312 = vld [vmem:[#allocation11 + $0x108] sm:$0xff]
    %v1313 = vld [vmem:[#allocation11 + $0x110] sm:$0xff]
    %v1314 = vld [vmem:[#allocation11 + $0x118] sm:$0xff]
    %v1315 = vld [vmem:[#allocation11 + $0x120] sm:$0xff]
    %v1316 = vld [vmem:[#allocation11 + $0x128] sm:$0xff]
    %v1317 = vld [vmem:[#allocation11 + $0x130] sm:$0xff]
    %v1318 = vld [vmem:[#allocation11 + $0x138] sm:$0xff]
    %v1319 = vld [vmem:[#allocation11 + $0x140] sm:$0xff]
    %v1320 = vld [vmem:[#allocation11 + $0x148] sm:$0xff]
    %v1321 = vld [vmem:[#allocation11 + $0x150] sm:$0xff]
    %v1322 = vld [vmem:[#allocation11 + $0x158] sm:$0xff]
    %v1323 = vld [vmem:[#allocation11 + $0x160] sm:$0xff]
    %v1324 = vld [vmem:[#allocation11 + $0x168] sm:$0xff]
    %v1325 = vld [vmem:[#allocation11 + $0x170] sm:$0xff]
    %v1326 = vld [vmem:[#allocation11 + $0x178] sm:$0xff]
    %1327 = vmatprep.subr.mxu0 %v1280
    %1328 = vmatpush1.msra.mxu0 %v1279
    %1329 = vmatprep.subr.mxu0 %v1283
    %1330 = vmatpush1.msra.mxu0 %v1282
    %1331 = vmatprep.subr.mxu0 %v1286
    %1332 = vmatpush1.msra.mxu0 %v1285
    %1333 = vmatprep.subr.mxu0 %v1289
    %1334 = vmatpush1.msra.mxu0 %v1288
    %1335 = vmatprep.subr.mxu0 %v1292
    %1336 = vmatpush1.msra.mxu0 %v1291
    %1337 = vmatprep.subr.mxu0 %v1295
    %1338 = vmatpush1.msra.mxu0 %v1294
    %1339 = vmatprep.subr.mxu0 %v1298
    %1340 = vmatpush1.msra.mxu0 %v1297
    %1341 = vmatprep.subr.mxu0 %v1301
    %1342 = vmatpush1.msra.mxu0 %v1300
    %1343 = vmatprep.subr.mxu0 %v1304
    %1344 = vmatpush1.msra.mxu0 %v1303
    %1345 = vmatprep.subr.mxu0 %v1307
    %1346 = vmatpush1.msra.mxu0 %v1306
    %1347 = vmatprep.subr.mxu0 %v1310
    %1348 = vmatpush1.msra.mxu0 %v1309
    %1349 = vmatprep.subr.mxu0 %v1313
    %1350 = vmatpush1.msra.mxu0 %v1312
    %1351 = vmatprep.subr.mxu0 %v1316
    %1352 = vmatpush1.msra.mxu0 %v1315
    %1353 = vmatprep.subr.mxu0 %v1319
    %1354 = vmatpush1.msra.mxu0 %v1318
    %1355 = vmatprep.subr.mxu0 %v1322
    %1356 = vmatpush1.msra.mxu0 %v1321
    %1357 = vmatprep.subr.mxu0 %v1325
    %1358 = vmatpush1.msra.mxu0 %v1324
    %1359 = vmatprep.subr.mxu0 0.0
    %1360 = vmatpush1.msra.mxu0 0.0
    %1361 = vmatprep.subr.mxu0 0.0
    %1362 = vmatpush1.msra.mxu0 0.0
    %1363 = vmatprep.subr.mxu0 0.0
    %1364 = vmatpush1.msra.mxu0 0.0
    %1365 = vmatprep.subr.mxu0 0.0
    %1366 = vmatpush1.msra.mxu0 0.0
    %1367 = vmatprep.subr.mxu0 0.0
    %1368 = vmatpush1.msra.mxu0 0.0
    %1369 = vmatprep.subr.mxu0 0.0
    %1370 = vmatpush1.msra.mxu0 0.0
    %1371 = vmatprep.subr.mxu0 0.0
    %1372 = vmatpush1.msra.mxu0 0.0
    %1373 = vmatprep.subr.mxu0 0.0
    %1374 = vmatpush1.msra.mxu0 0.0
    %1375 = vmatprep.subr.mxu0 0.0
    %1376 = vmatpush1.msra.mxu0 0.0
    %1377 = vmatprep.subr.mxu0 0.0
    %1378 = vmatpush1.msra.mxu0 0.0
    %1379 = vmatprep.subr.mxu0 0.0
    %1380 = vmatpush1.msra.mxu0 0.0
    %1381 = vmatprep.subr.mxu0 0.0
    %1382 = vmatpush1.msra.mxu0 0.0
    %1383 = vmatprep.subr.mxu0 0.0
    %1384 = vmatpush1.msra.mxu0 0.0
    %1385 = vmatprep.subr.mxu0 0.0
    %1386 = vmatpush1.msra.mxu0 0.0
    %1387 = vmatprep.subr.mxu0 0.0
    %1388 = vmatpush1.msra.mxu0 0.0
    %1389 = vmatprep.subr.mxu0 0.0
    %1390 = vmatpush1.msra.mxu0 0.0
    %1391 = vmatprep.mubr.f32.mxu0 0.0
    %1392 = vmatmul.mubr.f32.gmra.mrb[0].mxu0 %v1270
    %v1393 = vpop.f32.mrb[0].mxu0
    %v1394 = vadd.f32 0.0, %v1393
    %v1395 = vpop.f32.mrb[0].mxu0
    %v1396 = vadd.f32 0.0, %v1395
    %1397 = vdwg.mxu0
    %1398 = vmatprep.subr.mxu0 0.0
    %1399 = vmatpush1.msra.mxu0 %v1281
    %1400 = vmatprep.subr.mxu0 0.0
    %1401 = vmatpush1.msra.mxu0 %v1284
    %1402 = vmatprep.subr.mxu0 0.0
    %1403 = vmatpush1.msra.mxu0 %v1287
    %1404 = vmatprep.subr.mxu0 0.0
    %1405 = vmatpush1.msra.mxu0 %v1290
    %1406 = vmatprep.subr.mxu0 0.0
    %1407 = vmatpush1.msra.mxu0 %v1293
    %1408 = vmatprep.subr.mxu0 0.0
    %1409 = vmatpush1.msra.mxu0 %v1296
    %1410 = vmatprep.subr.mxu0 0.0
    %1411 = vmatpush1.msra.mxu0 %v1299
    %1412 = vmatprep.subr.mxu0 0.0
    %1413 = vmatpush1.msra.mxu0 %v1302
    %1414 = vmatprep.subr.mxu0 0.0
    %1415 = vmatpush1.msra.mxu0 %v1305
    %1416 = vmatprep.subr.mxu0 0.0
    %1417 = vmatpush1.msra.mxu0 %v1308
    %1418 = vmatprep.subr.mxu0 0.0
    %1419 = vmatpush1.msra.mxu0 %v1311
    %1420 = vmatprep.subr.mxu0 0.0
    %1421 = vmatpush1.msra.mxu0 %v1314
    %1422 = vmatprep.subr.mxu0 0.0
    %1423 = vmatpush1.msra.mxu0 %v1317
    %1424 = vmatprep.subr.mxu0 0.0
    %1425 = vmatpush1.msra.mxu0 %v1320
    %1426 = vmatprep.subr.mxu0 0.0
    %1427 = vmatpush1.msra.mxu0 %v1323
    %1428 = vmatprep.subr.mxu0 0.0
    %1429 = vmatpush1.msra.mxu0 %v1326
    %1430 = vmatprep.subr.mxu0 0.0
    %1431 = vmatpush1.msra.mxu0 0.0
    %1432 = vmatprep.subr.mxu0 0.0
    %1433 = vmatpush1.msra.mxu0 0.0
    %1434 = vmatprep.subr.mxu0 0.0
    %1435 = vmatpush1.msra.mxu0 0.0
    %1436 = vmatprep.subr.mxu0 0.0
    %1437 = vmatpush1.msra.mxu0 0.0
    %1438 = vmatprep.subr.mxu0 0.0
    %1439 = vmatpush1.msra.mxu0 0.0
    %1440 = vmatprep.subr.mxu0 0.0
    %1441 = vmatpush1.msra.mxu0 0.0
    %1442 = vmatprep.subr.mxu0 0.0
    %1443 = vmatpush1.msra.mxu0 0.0
    %1444 = vmatprep.subr.mxu0 0.0
    %1445 = vmatpush1.msra.mxu0 0.0
    %1446 = vmatprep.subr.mxu0 0.0
    %1447 = vmatpush1.msra.mxu0 0.0
    %1448 = vmatprep.subr.mxu0 0.0
    %1449 = vmatpush1.msra.mxu0 0.0
    %1450 = vmatprep.subr.mxu0 0.0
    %1451 = vmatpush1.msra.mxu0 0.0
    %1452 = vmatprep.subr.mxu0 0.0
    %1453 = vmatpush1.msra.mxu0 0.0
    %1454 = vmatprep.subr.mxu0 0.0
    %1455 = vmatpush1.msra.mxu0 0.0
    %1456 = vmatprep.subr.mxu0 0.0
    %1457 = vmatpush1.msra.mxu0 0.0
    %1458 = vmatprep.subr.mxu0 0.0
    %1459 = vmatpush1.msra.mxu0 0.0
    %1460 = vmatprep.subr.mxu0 0.0
    %1461 = vmatpush1.msra.mxu0 0.0
    %1462 = vmatprep.mubr.f32.mxu0 0.0
    %1463 = vmatmul.mubr.f32.gmra.mrb[0].mxu0 %v1270
    %v1464 = vpop.f32.mrb[0].mxu0
    %v1465 = vadd.f32 0.0, %v1464
    %v1466 = vpop.f32.mrb[0].mxu0
    %1467 = vdwg.mxu0
    %v1468 = vadd.f32 %v1276, %v1394
    %v1469 = vadd.f32 %v1277, %v1396
    %v1470 = vxor.u32 %v1468, 2147483648
    %v1471 = vxor.u32 %v1469, 2147483648
    %v1472 = vmul.f32 %v1470, 1.442695
    %v1473 = vpow.pop %v1472
    %v1474 = vmul.f32 %v1471, 1.442695
    %v1475 = vpow.pop %v1474
    %v1476 = vadd.f32 %v1473, 1.0
    %v1477 = vadd.f32 %v1475, 1.0
    %v1478 = vrcp.pop %v1476
    %v1479 = vmul.f32 1.0, %v1478
    %v1480 = vrcp.pop %v1477
    %v1481 = vmul.f32 1.0, %v1480
    %v1482 = vadd.f32 %v1465, %v395
    %v1483 = vmul.f32 %v1479, %v1482
    %v1484 = vadd.f32 %v1278, %v1483
    %v1485 = vtanh.pop %v1484
    %v1486 = vsub.f32 1.0, %v1481
    %v1487 = vmul.f32 %v1486, %v1485
    %v1488 = vmul.f32 %v1481, %v1270
    %v1489 = vadd.f32 %v1487, %v1488
    %s1490 = scalar_lea.vmem [#allocation4], 32
    %1491 = vst [vmem:[%s1490] sm:$0xff] %v1489
    %s1492 = smul.u32 5, 3
    %s1493 = smul.addr %s1492, 8
    %s1494 = scalar_lea.vmem [#allocation3], %s1493
    %v1495 = vld [vmem:[%s1494] sm:$0xff]
    %v1496 = vld [vmem:[%s1494 + $0x8] sm:$0xff]
    %v1497 = vld [vmem:[%s1494 + $0x10] sm:$0xff]
    %v1498 = vld [vmem:[#allocation11] sm:$0xff]
    %v1499 = vld [vmem:[#allocation11 + $0x8] sm:$0xff]
    %v1500 = vld [vmem:[#allocation11 + $0x10] sm:$0xff]
    %v1501 = vld [vmem:[#allocation11 + $0x18] sm:$0xff]
    %v1502 = vld [vmem:[#allocation11 + $0x20] sm:$0xff]
    %v1503 = vld [vmem:[#allocation11 + $0x28] sm:$0xff]
    %v1504 = vld [vmem:[#allocation11 + $0x30] sm:$0xff]
    %v1505 = vld [vmem:[#allocation11 + $0x38] sm:$0xff]
    %v1506 = vld [vmem:[#allocation11 + $0x40] sm:$0xff]
    %v1507 = vld [vmem:[#allocation11 + $0x48] sm:$0xff]
    %v1508 = vld [vmem:[#allocation11 + $0x50] sm:$0xff]
    %v1509 = vld [vmem:[#allocation11 + $0x58] sm:$0xff]
    %v1510 = vld [vmem:[#allocation11 + $0x60] sm:$0xff]
    %v1511 = vld [vmem:[#allocation11 + $0x68] sm:$0xff]
    %v1512 = vld [vmem:[#allocation11 + $0x70] sm:$0xff]
    %v1513 = vld [vmem:[#allocation11 + $0x78] sm:$0xff]
    %v1514 = vld [vmem:[#allocation11 + $0x80] sm:$0xff]
    %v1515 = vld [vmem:[#allocation11 + $0x88] sm:$0xff]
    %v1516 = vld [vmem:[#allocation11 + $0x90] sm:$0xff]
    %v1517 = vld [vmem:[#allocation11 + $0x98] sm:$0xff]
    %v1518 = vld [vmem:[#allocation11 + $0xa0] sm:$0xff]
    %v1519 = vld [vmem:[#allocation11 + $0xa8] sm:$0xff]
    %v1520 = vld [vmem:[#allocation11 + $0xb0] sm:$0xff]
    %v1521 = vld [vmem:[#allocation11 + $0xb8] sm:$0xff]
    %v1522 = vld [vmem:[#allocation11 + $0xc0] sm:$0xff]
    %v1523 = vld [vmem:[#allocation11 + $0xc8] sm:$0xff]
    %v1524 = vld [vmem:[#allocation11 + $0xd0] sm:$0xff]
    %v1525 = vld [vmem:[#allocation11 + $0xd8] sm:$0xff]
    %v1526 = vld [vmem:[#allocation11 + $0xe0] sm:$0xff]
    %v1527 = vld [vmem:[#allocation11 + $0xe8] sm:$0xff]
    %v1528 = vld [vmem:[#allocation11 + $0xf0] sm:$0xff]
    %v1529 = vld [vmem:[#allocation11 + $0xf8] sm:$0xff]
    %v1530 = vld [vmem:[#allocation11 + $0x100] sm:$0xff]
    %v1531 = vld [vmem:[#allocation11 + $0x108] sm:$0xff]
    %v1532 = vld [vmem:[#allocation11 + $0x110] sm:$0xff]
    %v1533 = vld [vmem:[#allocation11 + $0x118] sm:$0xff]
    %v1534 = vld [vmem:[#allocation11 + $0x120] sm:$0xff]
    %v1535 = vld [vmem:[#allocation11 + $0x128] sm:$0xff]
    %v1536 = vld [vmem:[#allocation11 + $0x130] sm:$0xff]
    %v1537 = vld [vmem:[#allocation11 + $0x138] sm:$0xff]
    %v1538 = vld [vmem:[#allocation11 + $0x140] sm:$0xff]
    %v1539 = vld [vmem:[#allocation11 + $0x148] sm:$0xff]
    %v1540 = vld [vmem:[#allocation11 + $0x150] sm:$0xff]
    %v1541 = vld [vmem:[#allocation11 + $0x158] sm:$0xff]
    %v1542 = vld [vmem:[#allocation11 + $0x160] sm:$0xff]
    %v1543 = vld [vmem:[#allocation11 + $0x168] sm:$0xff]
    %v1544 = vld [vmem:[#allocation11 + $0x170] sm:$0xff]
    %v1545 = vld [vmem:[#allocation11 + $0x178] sm:$0xff]
    %1546 = vmatprep.subr.mxu0 %v1499
    %1547 = vmatpush1.msra.mxu0 %v1498
    %1548 = vmatprep.subr.mxu0 %v1502
    %1549 = vmatpush1.msra.mxu0 %v1501
    %1550 = vmatprep.subr.mxu0 %v1505
    %1551 = vmatpush1.msra.mxu0 %v1504
    %1552 = vmatprep.subr.mxu0 %v1508
    %1553 = vmatpush1.msra.mxu0 %v1507
    %1554 = vmatprep.subr.mxu0 %v1511
    %1555 = vmatpush1.msra.mxu0 %v1510
    %1556 = vmatprep.subr.mxu0 %v1514
    %1557 = vmatpush1.msra.mxu0 %v1513
    %1558 = vmatprep.subr.mxu0 %v1517
    %1559 = vmatpush1.msra.mxu0 %v1516
    %1560 = vmatprep.subr.mxu0 %v1520
    %1561 = vmatpush1.msra.mxu0 %v1519
    %1562 = vmatprep.subr.mxu0 %v1523
    %1563 = vmatpush1.msra.mxu0 %v1522
    %1564 = vmatprep.subr.mxu0 %v1526
    %1565 = vmatpush1.msra.mxu0 %v1525
    %1566 = vmatprep.subr.mxu0 %v1529
    %1567 = vmatpush1.msra.mxu0 %v1528
    %1568 = vmatprep.subr.mxu0 %v1532
    %1569 = vmatpush1.msra.mxu0 %v1531
    %1570 = vmatprep.subr.mxu0 %v1535
    %1571 = vmatpush1.msra.mxu0 %v1534
    %1572 = vmatprep.subr.mxu0 %v1538
    %1573 = vmatpush1.msra.mxu0 %v1537
    %1574 = vmatprep.subr.mxu0 %v1541
    %1575 = vmatpush1.msra.mxu0 %v1540
    %1576 = vmatprep.subr.mxu0 %v1544
    %1577 = vmatpush1.msra.mxu0 %v1543
    %1578 = vmatprep.subr.mxu0 0.0
    %1579 = vmatpush1.msra.mxu0 0.0
    %1580 = vmatprep.subr.mxu0 0.0
    %1581 = vmatpush1.msra.mxu0 0.0
    %1582 = vmatprep.subr.mxu0 0.0
    %1583 = vmatpush1.msra.mxu0 0.0
    %1584 = vmatprep.subr.mxu0 0.0
    %1585 = vmatpush1.msra.mxu0 0.0
    %1586 = vmatprep.subr.mxu0 0.0
    %1587 = vmatpush1.msra.mxu0 0.0
    %1588 = vmatprep.subr.mxu0 0.0
    %1589 = vmatpush1.msra.mxu0 0.0
    %1590 = vmatprep.subr.mxu0 0.0
    %1591 = vmatpush1.msra.mxu0 0.0
    %1592 = vmatprep.subr.mxu0 0.0
    %1593 = vmatpush1.msra.mxu0 0.0
    %1594 = vmatprep.subr.mxu0 0.0
    %1595 = vmatpush1.msra.mxu0 0.0
    %1596 = vmatprep.subr.mxu0 0.0
    %1597 = vmatpush1.msra.mxu0 0.0
    %1598 = vmatprep.subr.mxu0 0.0
    %1599 = vmatpush1.msra.mxu0 0.0
    %1600 = vmatprep.subr.mxu0 0.0
    %1601 = vmatpush1.msra.mxu0 0.0
    %1602 = vmatprep.subr.mxu0 0.0
    %1603 = vmatpush1.msra.mxu0 0.0
    %1604 = vmatprep.subr.mxu0 0.0
    %1605 = vmatpush1.msra.mxu0 0.0
    %1606 = vmatprep.subr.mxu0 0.0
    %1607 = vmatpush1.msra.mxu0 0.0
    %1608 = vmatprep.subr.mxu0 0.0
    %1609 = vmatpush1.msra.mxu0 0.0
    %1610 = vmatprep.mubr.f32.mxu0 0.0
    %1611 = vmatmul.mubr.f32.gmra.mrb[0].mxu0 %v1489
    %v1612 = vpop.f32.mrb[0].mxu0
    %v1613 = vadd.f32 0.0, %v1612
    %v1614 = vpop.f32.mrb[0].mxu0
    %v1615 = vadd.f32 0.0, %v1614
    %1616 = vdwg.mxu0
    %1617 = vmatprep.subr.mxu0 0.0
    %1618 = vmatpush1.msra.mxu0 %v1500
    %1619 = vmatprep.subr.mxu0 0.0
    %1620 = vmatpush1.msra.mxu0 %v1503
    %1621 = vmatprep.subr.mxu0 0.0
    %1622 = vmatpush1.msra.mxu0 %v1506
    %1623 = vmatprep.subr.mxu0 0.0
    %1624 = vmatpush1.msra.mxu0 %v1509
    %1625 = vmatprep.subr.mxu0 0.0
    %1626 = vmatpush1.msra.mxu0 %v1512
    %1627 = vmatprep.subr.mxu0 0.0
    %1628 = vmatpush1.msra.mxu0 %v1515
    %1629 = vmatprep.subr.mxu0 0.0
    %1630 = vmatpush1.msra.mxu0 %v1518
    %1631 = vmatprep.subr.mxu0 0.0
    %1632 = vmatpush1.msra.mxu0 %v1521
    %1633 = vmatprep.subr.mxu0 0.0
    %1634 = vmatpush1.msra.mxu0 %v1524
    %1635 = vmatprep.subr.mxu0 0.0
    %1636 = vmatpush1.msra.mxu0 %v1527
    %1637 = vmatprep.subr.mxu0 0.0
    %1638 = vmatpush1.msra.mxu0 %v1530
    %1639 = vmatprep.subr.mxu0 0.0
    %1640 = vmatpush1.msra.mxu0 %v1533
    %1641 = vmatprep.subr.mxu0 0.0
    %1642 = vmatpush1.msra.mxu0 %v1536
    %1643 = vmatprep.subr.mxu0 0.0
    %1644 = vmatpush1.msra.mxu0 %v1539
    %1645 = vmatprep.subr.mxu0 0.0
    %1646 = vmatpush1.msra.mxu0 %v1542
    %1647 = vmatprep.subr.mxu0 0.0
    %1648 = vmatpush1.msra.mxu0 %v1545
    %1649 = vmatprep.subr.mxu0 0.0
    %1650 = vmatpush1.msra.mxu0 0.0
    %1651 = vmatprep.subr.mxu0 0.0
    %1652 = vmatpush1.msra.mxu0 0.0
    %1653 = vmatprep.subr.mxu0 0.0
    %1654 = vmatpush1.msra.mxu0 0.0
    %1655 = vmatprep.subr.mxu0 0.0
    %1656 = vmatpush1.msra.mxu0 0.0
    %1657 = vmatprep.subr.mxu0 0.0
    %1658 = vmatpush1.msra.mxu0 0.0
    %1659 = vmatprep.subr.mxu0 0.0
    %1660 = vmatpush1.msra.mxu0 0.0
    %1661 = vmatprep.subr.mxu0 0.0
    %1662 = vmatpush1.msra.mxu0 0.0
    %1663 = vmatprep.subr.mxu0 0.0
    %1664 = vmatpush1.msra.mxu0 0.0
    %1665 = vmatprep.subr.mxu0 0.0
    %1666 = vmatpush1.msra.mxu0 0.0
    %1667 = vmatprep.subr.mxu0 0.0
    %1668 = vmatpush1.msra.mxu0 0.0
    %1669 = vmatprep.subr.mxu0 0.0
    %1670 = vmatpush1.msra.mxu0 0.0
    %1671 = vmatprep.subr.mxu0 0.0
    %1672 = vmatpush1.msra.mxu0 0.0
    %1673 = vmatprep.subr.mxu0 0.0
    %1674 = vmatpush1.msra.mxu0 0.0
    %1675 = vmatprep.subr.mxu0 0.0
    %1676 = vmatpush1.msra.mxu0 0.0
    %1677 = vmatprep.subr.mxu0 0.0
    %1678 = vmatpush1.msra.mxu0 0.0
    %1679 = vmatprep.subr.mxu0 0.0
    %1680 = vmatpush1.msra.mxu0 0.0
    %1681 = vmatprep.mubr.f32.mxu0 0.0
    %1682 = vmatmul.mubr.f32.gmra.mrb[0].mxu0 %v1489
    %v1683 = vpop.f32.mrb[0].mxu0
    %v1684 = vadd.f32 0.0, %v1683
    %v1685 = vpop.f32.mrb[0].mxu0
    %1686 = vdwg.mxu0
    %v1687 = vadd.f32 %v1495, %v1613
    %v1688 = vadd.f32 %v1496, %v1615
    %v1689 = vxor.u32 %v1687, 2147483648
    %v1690 = vxor.u32 %v1688, 2147483648
    %v1691 = vmul.f32 %v1689, 1.442695
    %v1692 = vpow.pop %v1691
    %v1693 = vmul.f32 %v1690, 1.442695
    %v1694 = vpow.pop %v1693
    %v1695 = vadd.f32 %v1692, 1.0
    %v1696 = vadd.f32 %v1694, 1.0
    %v1697 = vrcp.pop %v1695
    %v1698 = vmul.f32 1.0, %v1697
    %v1699 = vrcp.pop %v1696
    %v1700 = vmul.f32 1.0, %v1699
    %v1701 = vadd.f32 %v1684, %v395
    %v1702 = vmul.f32 %v1698, %v1701
    %v1703 = vadd.f32 %v1497, %v1702
    %v1704 = vtanh.pop %v1703
    %v1705 = vsub.f32 1.0, %v1700
    %v1706 = vmul.f32 %v1705, %v1704
    %v1707 = vmul.f32 %v1700, %v1489
    %v1708 = vadd.f32 %v1706, %v1707
    %s1709 = scalar_lea.vmem [#allocation4], 40
    %1710 = vst [vmem:[%s1709] sm:$0xff] %v1708
    %s1711 = smul.u32 6, 3
    %s1712 = smul.addr %s1711, 8
    %s1713 = scalar_lea.vmem [#allocation3], %s1712
    %v1714 = vld [vmem:[%s1713] sm:$0xff]
    %v1715 = vld [vmem:[%s1713 + $0x8] sm:$0xff]
    %v1716 = vld [vmem:[%s1713 + $0x10] sm:$0xff]
    %v1717 = vld [vmem:[#allocation11] sm:$0xff]
    %v1718 = vld [vmem:[#allocation11 + $0x8] sm:$0xff]
    %v1719 = vld [vmem:[#allocation11 + $0x10] sm:$0xff]
    %v1720 = vld [vmem:[#allocation11 + $0x18] sm:$0xff]
    %v1721 = vld [vmem:[#allocation11 + $0x20] sm:$0xff]
    %v1722 = vld [vmem:[#allocation11 + $0x28] sm:$0xff]
    %v1723 = vld [vmem:[#allocation11 + $0x30] sm:$0xff]
    %v1724 = vld [vmem:[#allocation11 + $0x38] sm:$0xff]
    %v1725 = vld [vmem:[#allocation11 + $0x40] sm:$0xff]
    %v1726 = vld [vmem:[#allocation11 + $0x48] sm:$0xff]
    %v1727 = vld [vmem:[#allocation11 + $0x50] sm:$0xff]
    %v1728 = vld [vmem:[#allocation11 + $0x58] sm:$0xff]
    %v1729 = vld [vmem:[#allocation11 + $0x60] sm:$0xff]
    %v1730 = vld [vmem:[#allocation11 + $0x68] sm:$0xff]
    %v1731 = vld [vmem:[#allocation11 + $0x70] sm:$0xff]
    %v1732 = vld [vmem:[#allocation11 + $0x78] sm:$0xff]
    %v1733 = vld [vmem:[#allocation11 + $0x80] sm:$0xff]
    %v1734 = vld [vmem:[#allocation11 + $0x88] sm:$0xff]
    %v1735 = vld [vmem:[#allocation11 + $0x90] sm:$0xff]
    %v1736 = vld [vmem:[#allocation11 + $0x98] sm:$0xff]
    %v1737 = vld [vmem:[#allocation11 + $0xa0] sm:$0xff]
    %v1738 = vld [vmem:[#allocation11 + $0xa8] sm:$0xff]
    %v1739 = vld [vmem:[#allocation11 + $0xb0] sm:$0xff]
    %v1740 = vld [vmem:[#allocation11 + $0xb8] sm:$0xff]
    %v1741 = vld [vmem:[#allocation11 + $0xc0] sm:$0xff]
    %v1742 = vld [vmem:[#allocation11 + $0xc8] sm:$0xff]
    %v1743 = vld [vmem:[#allocation11 + $0xd0] sm:$0xff]
    %v1744 = vld [vmem:[#allocation11 + $0xd8] sm:$0xff]
    %v1745 = vld [vmem:[#allocation11 + $0xe0] sm:$0xff]
    %v1746 = vld [vmem:[#allocation11 + $0xe8] sm:$0xff]
    %v1747 = vld [vmem:[#allocation11 + $0xf0] sm:$0xff]
    %v1748 = vld [vmem:[#allocation11 + $0xf8] sm:$0xff]
    %v1749 = vld [vmem:[#allocation11 + $0x100] sm:$0xff]
    %v1750 = vld [vmem:[#allocation11 + $0x108] sm:$0xff]
    %v1751 = vld [vmem:[#allocation11 + $0x110] sm:$0xff]
    %v1752 = vld [vmem:[#allocation11 + $0x118] sm:$0xff]
    %v1753 = vld [vmem:[#allocation11 + $0x120] sm:$0xff]
    %v1754 = vld [vmem:[#allocation11 + $0x128] sm:$0xff]
    %v1755 = vld [vmem:[#allocation11 + $0x130] sm:$0xff]
    %v1756 = vld [vmem:[#allocation11 + $0x138] sm:$0xff]
    %v1757 = vld [vmem:[#allocation11 + $0x140] sm:$0xff]
    %v1758 = vld [vmem:[#allocation11 + $0x148] sm:$0xff]
    %v1759 = vld [vmem:[#allocation11 + $0x150] sm:$0xff]
    %v1760 = vld [vmem:[#allocation11 + $0x158] sm:$0xff]
    %v1761 = vld [vmem:[#allocation11 + $0x160] sm:$0xff]
    %v1762 = vld [vmem:[#allocation11 + $0x168] sm:$0xff]
    %v1763 = vld [vmem:[#allocation11 + $0x170] sm:$0xff]
    %v1764 = vld [vmem:[#allocation11 + $0x178] sm:$0xff]
    %1765 = vmatprep.subr.mxu0 %v1718
    %1766 = vmatpush1.msra.mxu0 %v1717
    %1767 = vmatprep.subr.mxu0 %v1721
    %1768 = vmatpush1.msra.mxu0 %v1720
    %1769 = vmatprep.subr.mxu0 %v1724
    %1770 = vmatpush1.msra.mxu0 %v1723
    %1771 = vmatprep.subr.mxu0 %v1727
    %1772 = vmatpush1.msra.mxu0 %v1726
    %1773 = vmatprep.subr.mxu0 %v1730
    %1774 = vmatpush1.msra.mxu0 %v1729
    %1775 = vmatprep.subr.mxu0 %v1733
    %1776 = vmatpush1.msra.mxu0 %v1732
    %1777 = vmatprep.subr.mxu0 %v1736
    %1778 = vmatpush1.msra.mxu0 %v1735
    %1779 = vmatprep.subr.mxu0 %v1739
    %1780 = vmatpush1.msra.mxu0 %v1738
    %1781 = vmatprep.subr.mxu0 %v1742
    %1782 = vmatpush1.msra.mxu0 %v1741
    %1783 = vmatprep.subr.mxu0 %v1745
    %1784 = vmatpush1.msra.mxu0 %v1744
    %1785 = vmatprep.subr.mxu0 %v1748
    %1786 = vmatpush1.msra.mxu0 %v1747
    %1787 = vmatprep.subr.mxu0 %v1751
    %1788 = vmatpush1.msra.mxu0 %v1750
    %1789 = vmatprep.subr.mxu0 %v1754
    %1790 = vmatpush1.msra.mxu0 %v1753
    %1791 = vmatprep.subr.mxu0 %v1757
    %1792 = vmatpush1.msra.mxu0 %v1756
    %1793 = vmatprep.subr.mxu0 %v1760
    %1794 = vmatpush1.msra.mxu0 %v1759
    %1795 = vmatprep.subr.mxu0 %v1763
    %1796 = vmatpush1.msra.mxu0 %v1762
    %1797 = vmatprep.subr.mxu0 0.0
    %1798 = vmatpush1.msra.mxu0 0.0
    %1799 = vmatprep.subr.mxu0 0.0
    %1800 = vmatpush1.msra.mxu0 0.0
    %1801 = vmatprep.subr.mxu0 0.0
    %1802 = vmatpush1.msra.mxu0 0.0
    %1803 = vmatprep.subr.mxu0 0.0
    %1804 = vmatpush1.msra.mxu0 0.0
    %1805 = vmatprep.subr.mxu0 0.0
    %1806 = vmatpush1.msra.mxu0 0.0
    %1807 = vmatprep.subr.mxu0 0.0
    %1808 = vmatpush1.msra.mxu0 0.0
    %1809 = vmatprep.subr.mxu0 0.0
    %1810 = vmatpush1.msra.mxu0 0.0
    %1811 = vmatprep.subr.mxu0 0.0
    %1812 = vmatpush1.msra.mxu0 0.0
    %1813 = vmatprep.subr.mxu0 0.0
    %1814 = vmatpush1.msra.mxu0 0.0
    %1815 = vmatprep.subr.mxu0 0.0
    %1816 = vmatpush1.msra.mxu0 0.0
    %1817 = vmatprep.subr.mxu0 0.0
    %1818 = vmatpush1.msra.mxu0 0.0
    %1819 = vmatprep.subr.mxu0 0.0
    %1820 = vmatpush1.msra.mxu0 0.0
    %1821 = vmatprep.subr.mxu0 0.0
    %1822 = vmatpush1.msra.mxu0 0.0
    %1823 = vmatprep.subr.mxu0 0.0
    %1824 = vmatpush1.msra.mxu0 0.0
    %1825 = vmatprep.subr.mxu0 0.0
    %1826 = vmatpush1.msra.mxu0 0.0
    %1827 = vmatprep.subr.mxu0 0.0
    %1828 = vmatpush1.msra.mxu0 0.0
    %1829 = vmatprep.mubr.f32.mxu0 0.0
    %1830 = vmatmul.mubr.f32.gmra.mrb[0].mxu0 %v1708
    %v1831 = vpop.f32.mrb[0].mxu0
    %v1832 = vadd.f32 0.0, %v1831
    %v1833 = vpop.f32.mrb[0].mxu0
    %v1834 = vadd.f32 0.0, %v1833
    %1835 = vdwg.mxu0
    %1836 = vmatprep.subr.mxu0 0.0
    %1837 = vmatpush1.msra.mxu0 %v1719
    %1838 = vmatprep.subr.mxu0 0.0
    %1839 = vmatpush1.msra.mxu0 %v1722
    %1840 = vmatprep.subr.mxu0 0.0
    %1841 = vmatpush1.msra.mxu0 %v1725
    %1842 = vmatprep.subr.mxu0 0.0
    %1843 = vmatpush1.msra.mxu0 %v1728
    %1844 = vmatprep.subr.mxu0 0.0
    %1845 = vmatpush1.msra.mxu0 %v1731
    %1846 = vmatprep.subr.mxu0 0.0
    %1847 = vmatpush1.msra.mxu0 %v1734
    %1848 = vmatprep.subr.mxu0 0.0
    %1849 = vmatpush1.msra.mxu0 %v1737
    %1850 = vmatprep.subr.mxu0 0.0
    %1851 = vmatpush1.msra.mxu0 %v1740
    %1852 = vmatprep.subr.mxu0 0.0
    %1853 = vmatpush1.msra.mxu0 %v1743
    %1854 = vmatprep.subr.mxu0 0.0
    %1855 = vmatpush1.msra.mxu0 %v1746
    %1856 = vmatprep.subr.mxu0 0.0
    %1857 = vmatpush1.msra.mxu0 %v1749
    %1858 = vmatprep.subr.mxu0 0.0
    %1859 = vmatpush1.msra.mxu0 %v1752
    %1860 = vmatprep.subr.mxu0 0.0
    %1861 = vmatpush1.msra.mxu0 %v1755
    %1862 = vmatprep.subr.mxu0 0.0
    %1863 = vmatpush1.msra.mxu0 %v1758
    %1864 = vmatprep.subr.mxu0 0.0
    %1865 = vmatpush1.msra.mxu0 %v1761
    %1866 = vmatprep.subr.mxu0 0.0
    %1867 = vmatpush1.msra.mxu0 %v1764
    %1868 = vmatprep.subr.mxu0 0.0
    %1869 = vmatpush1.msra.mxu0 0.0
    %1870 = vmatprep.subr.mxu0 0.0
    %1871 = vmatpush1.msra.mxu0 0.0
    %1872 = vmatprep.subr.mxu0 0.0
    %1873 = vmatpush1.msra.mxu0 0.0
    %1874 = vmatprep.subr.mxu0 0.0
    %1875 = vmatpush1.msra.mxu0 0.0
    %1876 = vmatprep.subr.mxu0 0.0
    %1877 = vmatpush1.msra.mxu0 0.0
    %1878 = vmatprep.subr.mxu0 0.0
    %1879 = vmatpush1.msra.mxu0 0.0
    %1880 = vmatprep.subr.mxu0 0.0
    %1881 = vmatpush1.msra.mxu0 0.0
    %1882 = vmatprep.subr.mxu0 0.0
    %1883 = vmatpush1.msra.mxu0 0.0
    %1884 = vmatprep.subr.mxu0 0.0
    %1885 = vmatpush1.msra.mxu0 0.0
    %1886 = vmatprep.subr.mxu0 0.0
    %1887 = vmatpush1.msra.mxu0 0.0
    %1888 = vmatprep.subr.mxu0 0.0
    %1889 = vmatpush1.msra.mxu0 0.0
    %1890 = vmatprep.subr.mxu0 0.0
    %1891 = vmatpush1.msra.mxu0 0.0
    %1892 = vmatprep.subr.mxu0 0.0
    %1893 = vmatpush1.msra.mxu0 0.0
    %1894 = vmatprep.subr.mxu0 0.0
    %1895 = vmatpush1.msra.mxu0 0.0
    %1896 = vmatprep.subr.mxu0 0.0
    %1897 = vmatpush1.msra.mxu0 0.0
    %1898 = vmatprep.subr.mxu0 0.0
    %1899 = vmatpush1.msra.mxu0 0.0
    %1900 = vmatprep.mubr.f32.mxu0 0.0
    %1901 = vmatmul.mubr.f32.gmra.mrb[0].mxu0 %v1708
    %v1902 = vpop.f32.mrb[0].mxu0
    %v1903 = vadd.f32 0.0, %v1902
    %v1904 = vpop.f32.mrb[0].mxu0
    %1905 = vdwg.mxu0
    %v1906 = vadd.f32 %v1714, %v1832
    %v1907 = vadd.f32 %v1715, %v1834
    %v1908 = vxor.u32 %v1906, 2147483648
    %v1909 = vxor.u32 %v1907, 2147483648
    %v1910 = vmul.f32 %v1908, 1.442695
    %v1911 = vpow.pop %v1910
    %v1912 = vmul.f32 %v1909, 1.442695
    %v1913 = vpow.pop %v1912
    %v1914 = vadd.f32 %v1911, 1.0
    %v1915 = vadd.f32 %v1913, 1.0
    %v1916 = vrcp.pop %v1914
    %v1917 = vmul.f32 1.0, %v1916
    %v1918 = vrcp.pop %v1915
    %v1919 = vmul.f32 1.0, %v1918
    %v1920 = vadd.f32 %v1903, %v395
    %v1921 = vmul.f32 %v1917, %v1920
    %v1922 = vadd.f32 %v1716, %v1921
    %v1923 = vtanh.pop %v1922
    %v1924 = vsub.f32 1.0, %v1919
    %v1925 = vmul.f32 %v1924, %v1923
    %v1926 = vmul.f32 %v1919, %v1708
    %v1927 = vadd.f32 %v1925, %v1926
    %s1928 = scalar_lea.vmem [#allocation4], 48
    %1929 = vst [vmem:[%s1928] sm:$0xff] %v1927
    %s1930 = smul.u32 7, 3
    %s1931 = smul.addr %s1930, 8
    %s1932 = scalar_lea.vmem [#allocation3], %s1931
    %v1933 = vld [vmem:[%s1932] sm:$0xff]
    %v1934 = vld [vmem:[%s1932 + $0x8] sm:$0xff]
    %v1935 = vld [vmem:[%s1932 + $0x10] sm:$0xff]
    %v1936 = vld [vmem:[#allocation11] sm:$0xff]
    %v1937 = vld [vmem:[#allocation11 + $0x8] sm:$0xff]
    %v1938 = vld [vmem:[#allocation11 + $0x10] sm:$0xff]
    %v1939 = vld [vmem:[#allocation11 + $0x18] sm:$0xff]
    %v1940 = vld [vmem:[#allocation11 + $0x20] sm:$0xff]
    %v1941 = vld [vmem:[#allocation11 + $0x28] sm:$0xff]
    %v1942 = vld [vmem:[#allocation11 + $0x30] sm:$0xff]
    %v1943 = vld [vmem:[#allocation11 + $0x38] sm:$0xff]
    %v1944 = vld [vmem:[#allocation11 + $0x40] sm:$0xff]
    %v1945 = vld [vmem:[#allocation11 + $0x48] sm:$0xff]
    %v1946 = vld [vmem:[#allocation11 + $0x50] sm:$0xff]
    %v1947 = vld [vmem:[#allocation11 + $0x58] sm:$0xff]
    %v1948 = vld [vmem:[#allocation11 + $0x60] sm:$0xff]
    %v1949 = vld [vmem:[#allocation11 + $0x68] sm:$0xff]
    %v1950 = vld [vmem:[#allocation11 + $0x70] sm:$0xff]
    %v1951 = vld [vmem:[#allocation11 + $0x78] sm:$0xff]
    %v1952 = vld [vmem:[#allocation11 + $0x80] sm:$0xff]
    %v1953 = vld [vmem:[#allocation11 + $0x88] sm:$0xff]
    %v1954 = vld [vmem:[#allocation11 + $0x90] sm:$0xff]
    %v1955 = vld [vmem:[#allocation11 + $0x98] sm:$0xff]
    %v1956 = vld [vmem:[#allocation11 + $0xa0] sm:$0xff]
    %v1957 = vld [vmem:[#allocation11 + $0xa8] sm:$0xff]
    %v1958 = vld [vmem:[#allocation11 + $0xb0] sm:$0xff]
    %v1959 = vld [vmem:[#allocation11 + $0xb8] sm:$0xff]
    %v1960 = vld [vmem:[#allocation11 + $0xc0] sm:$0xff]
    %v1961 = vld [vmem:[#allocation11 + $0xc8] sm:$0xff]
    %v1962 = vld [vmem:[#allocation11 + $0xd0] sm:$0xff]
    %v1963 = vld [vmem:[#allocation11 + $0xd8] sm:$0xff]
    %v1964 = vld [vmem:[#allocation11 + $0xe0] sm:$0xff]
    %v1965 = vld [vmem:[#allocation11 + $0xe8] sm:$0xff]
    %v1966 = vld [vmem:[#allocation11 + $0xf0] sm:$0xff]
    %v1967 = vld [vmem:[#allocation11 + $0xf8] sm:$0xff]
    %v1968 = vld [vmem:[#allocation11 + $0x100] sm:$0xff]
    %v1969 = vld [vmem:[#allocation11 + $0x108] sm:$0xff]
    %v1970 = vld [vmem:[#allocation11 + $0x110] sm:$0xff]
    %v1971 = vld [vmem:[#allocation11 + $0x118] sm:$0xff]
    %v1972 = vld [vmem:[#allocation11 + $0x120] sm:$0xff]
    %v1973 = vld [vmem:[#allocation11 + $0x128] sm:$0xff]
    %v1974 = vld [vmem:[#allocation11 + $0x130] sm:$0xff]
    %v1975 = vld [vmem:[#allocation11 + $0x138] sm:$0xff]
    %v1976 = vld [vmem:[#allocation11 + $0x140] sm:$0xff]
    %v1977 = vld [vmem:[#allocation11 + $0x148] sm:$0xff]
    %v1978 = vld [vmem:[#allocation11 + $0x150] sm:$0xff]
    %v1979 = vld [vmem:[#allocation11 + $0x158] sm:$0xff]
    %v1980 = vld [vmem:[#allocation11 + $0x160] sm:$0xff]
    %v1981 = vld [vmem:[#allocation11 + $0x168] sm:$0xff]
    %v1982 = vld [vmem:[#allocation11 + $0x170] sm:$0xff]
    %v1983 = vld [vmem:[#allocation11 + $0x178] sm:$0xff]
    %1984 = vmatprep.subr.mxu0 %v1937
    %1985 = vmatpush1.msra.mxu0 %v1936
    %1986 = vmatprep.subr.mxu0 %v1940
    %1987 = vmatpush1.msra.mxu0 %v1939
    %1988 = vmatprep.subr.mxu0 %v1943
    %1989 = vmatpush1.msra.mxu0 %v1942
    %1990 = vmatprep.subr.mxu0 %v1946
    %1991 = vmatpush1.msra.mxu0 %v1945
    %1992 = vmatprep.subr.mxu0 %v1949
    %1993 = vmatpush1.msra.mxu0 %v1948
    %1994 = vmatprep.subr.mxu0 %v1952
    %1995 = vmatpush1.msra.mxu0 %v1951
    %1996 = vmatprep.subr.mxu0 %v1955
    %1997 = vmatpush1.msra.mxu0 %v1954
    %1998 = vmatprep.subr.mxu0 %v1958
    %1999 = vmatpush1.msra.mxu0 %v1957
    %2000 = vmatprep.subr.mxu0 %v1961
    %2001 = vmatpush1.msra.mxu0 %v1960
    %2002 = vmatprep.subr.mxu0 %v1964
    %2003 = vmatpush1.msra.mxu0 %v1963
    %2004 = vmatprep.subr.mxu0 %v1967
    %2005 = vmatpush1.msra.mxu0 %v1966
    %2006 = vmatprep.subr.mxu0 %v1970
    %2007 = vmatpush1.msra.mxu0 %v1969
    %2008 = vmatprep.subr.mxu0 %v1973
    %2009 = vmatpush1.msra.mxu0 %v1972
    %2010 = vmatprep.subr.mxu0 %v1976
    %2011 = vmatpush1.msra.mxu0 %v1975
    %2012 = vmatprep.subr.mxu0 %v1979
    %2013 = vmatpush1.msra.mxu0 %v1978
    %2014 = vmatprep.subr.mxu0 %v1982
    %2015 = vmatpush1.msra.mxu0 %v1981
    %2016 = vmatprep.subr.mxu0 0.0
    %2017 = vmatpush1.msra.mxu0 0.0
    %2018 = vmatprep.subr.mxu0 0.0
    %2019 = vmatpush1.msra.mxu0 0.0
    %2020 = vmatprep.subr.mxu0 0.0
    %2021 = vmatpush1.msra.mxu0 0.0
    %2022 = vmatprep.subr.mxu0 0.0
    %2023 = vmatpush1.msra.mxu0 0.0
    %2024 = vmatprep.subr.mxu0 0.0
    %2025 = vmatpush1.msra.mxu0 0.0
    %2026 = vmatprep.subr.mxu0 0.0
    %2027 = vmatpush1.msra.mxu0 0.0
    %2028 = vmatprep.subr.mxu0 0.0
    %2029 = vmatpush1.msra.mxu0 0.0
    %2030 = vmatprep.subr.mxu0 0.0
    %2031 = vmatpush1.msra.mxu0 0.0
    %2032 = vmatprep.subr.mxu0 0.0
    %2033 = vmatpush1.msra.mxu0 0.0
    %2034 = vmatprep.subr.mxu0 0.0
    %2035 = vmatpush1.msra.mxu0 0.0
    %2036 = vmatprep.subr.mxu0 0.0
    %2037 = vmatpush1.msra.mxu0 0.0
    %2038 = vmatprep.subr.mxu0 0.0
    %2039 = vmatpush1.msra.mxu0 0.0
    %2040 = vmatprep.subr.mxu0 0.0
    %2041 = vmatpush1.msra.mxu0 0.0
    %2042 = vmatprep.subr.mxu0 0.0
    %2043 = vmatpush1.msra.mxu0 0.0
    %2044 = vmatprep.subr.mxu0 0.0
    %2045 = vmatpush1.msra.mxu0 0.0
    %2046 = vmatprep.subr.mxu0 0.0
    %2047 = vmatpush1.msra.mxu0 0.0
    %2048 = vmatprep.mubr.f32.mxu0 0.0
    %2049 = vmatmul.mubr.f32.gmra.mrb[0].mxu0 %v1927
    %v2050 = vpop.f32.mrb[0].mxu0
    %v2051 = vadd.f32 0.0, %v2050
    %v2052 = vpop.f32.mrb[0].mxu0
    %v2053 = vadd.f32 0.0, %v2052
    %2054 = vdwg.mxu0
    %2055 = vmatprep.subr.mxu0 0.0
    %2056 = vmatpush1.msra.mxu0 %v1938
    %2057 = vmatprep.subr.mxu0 0.0
    %2058 = vmatpush1.msra.mxu0 %v1941
    %2059 = vmatprep.subr.mxu0 0.0
    %2060 = vmatpush1.msra.mxu0 %v1944
    %2061 = vmatprep.subr.mxu0 0.0
    %2062 = vmatpush1.msra.mxu0 %v1947
    %2063 = vmatprep.subr.mxu0 0.0
    %2064 = vmatpush1.msra.mxu0 %v1950
    %2065 = vmatprep.subr.mxu0 0.0
    %2066 = vmatpush1.msra.mxu0 %v1953
    %2067 = vmatprep.subr.mxu0 0.0
    %2068 = vmatpush1.msra.mxu0 %v1956
    %2069 = vmatprep.subr.mxu0 0.0
    %2070 = vmatpush1.msra.mxu0 %v1959
    %2071 = vmatprep.subr.mxu0 0.0
    %2072 = vmatpush1.msra.mxu0 %v1962
    %2073 = vmatprep.subr.mxu0 0.0
    %2074 = vmatpush1.msra.mxu0 %v1965
    %2075 = vmatprep.subr.mxu0 0.0
    %2076 = vmatpush1.msra.mxu0 %v1968
    %2077 = vmatprep.subr.mxu0 0.0
    %2078 = vmatpush1.msra.mxu0 %v1971
    %2079 = vmatprep.subr.mxu0 0.0
    %2080 = vmatpush1.msra.mxu0 %v1974
    %2081 = vmatprep.subr.mxu0 0.0
    %2082 = vmatpush1.msra.mxu0 %v1977
    %2083 = vmatprep.subr.mxu0 0.0
    %2084 = vmatpush1.msra.mxu0 %v1980
    %2085 = vmatprep.subr.mxu0 0.0
    %2086 = vmatpush1.msra.mxu0 %v1983
    %2087 = vmatprep.subr.mxu0 0.0
    %2088 = vmatpush1.msra.mxu0 0.0
    %2089 = vmatprep.subr.mxu0 0.0
    %2090 = vmatpush1.msra.mxu0 0.0
    %2091 = vmatprep.subr.mxu0 0.0
    %2092 = vmatpush1.msra.mxu0 0.0
    %2093 = vmatprep.subr.mxu0 0.0
    %2094 = vmatpush1.msra.mxu0 0.0
    %2095 = vmatprep.subr.mxu0 0.0
    %2096 = vmatpush1.msra.mxu0 0.0
    %2097 = vmatprep.subr.mxu0 0.0
    %2098 = vmatpush1.msra.mxu0 0.0
    %2099 = vmatprep.subr.mxu0 0.0
    %2100 = vmatpush1.msra.mxu0 0.0
    %2101 = vmatprep.subr.mxu0 0.0
    %2102 = vmatpush1.msra.mxu0 0.0
    %2103 = vmatprep.subr.mxu0 0.0
    %2104 = vmatpush1.msra.mxu0 0.0
    %2105 = vmatprep.subr.mxu0 0.0
    %2106 = vmatpush1.msra.mxu0 0.0
    %2107 = vmatprep.subr.mxu0 0.0
    %2108 = vmatpush1.msra.mxu0 0.0
    %2109 = vmatprep.subr.mxu0 0.0
    %2110 = vmatpush1.msra.mxu0 0.0
    %2111 = vmatprep.subr.mxu0 0.0
    %2112 = vmatpush1.msra.mxu0 0.0
    %2113 = vmatprep.subr.mxu0 0.0
    %2114 = vmatpush1.msra.mxu0 0.0
    %2115 = vmatprep.subr.mxu0 0.0
    %2116 = vmatpush1.msra.mxu0 0.0
    %2117 = vmatprep.subr.mxu0 0.0
    %2118 = vmatpush1.msra.mxu0 0.0
    %2119 = vmatprep.mubr.f32.mxu0 0.0
    %2120 = vmatmul.mubr.f32.gmra.mrb[0].mxu0 %v1927
    %v2121 = vpop.f32.mrb[0].mxu0
    %v2122 = vadd.f32 0.0, %v2121
    %v2123 = vpop.f32.mrb[0].mxu0
    %2124 = vdwg.mxu0
    %v2125 = vadd.f32 %v1933, %v2051
    %v2126 = vadd.f32 %v1934, %v2053
    %v2127 = vxor.u32 %v2125, 2147483648
    %v2128 = vxor.u32 %v2126, 2147483648
    %v2129 = vmul.f32 %v2127, 1.442695
    %v2130 = vpow.pop %v2129
    %v2131 = vmul.f32 %v2128, 1.442695
    %v2132 = vpow.pop %v2131
    %v2133 = vadd.f32 %v2130, 1.0
    %v2134 = vadd.f32 %v2132, 1.0
    %v2135 = vrcp.pop %v2133
    %v2136 = vmul.f32 1.0, %v2135
    %v2137 = vrcp.pop %v2134
    %v2138 = vmul.f32 1.0, %v2137
    %v2139 = vadd.f32 %v2122, %v395
    %v2140 = vmul.f32 %v2136, %v2139
    %v2141 = vadd.f32 %v1935, %v2140
    %v2142 = vtanh.pop %v2141
    %v2143 = vsub.f32 1.0, %v2138
    %v2144 = vmul.f32 %v2143, %v2142
    %v2145 = vmul.f32 %v2138, %v1927
    %v2146 = vadd.f32 %v2144, %v2145
    %s2147 = scalar_lea.vmem [#allocation4], 56
    %2148 = vst [vmem:[%s2147] sm:$0xff] %v2146
    %2149 = vst [vmem:[#allocation2] sm:$0xff] %v2146
    %v2150 = vld [vmem:[#allocation4] sm:$0xff]
    %v2151 = vld [vmem:[#allocation4 + $0x8] sm:$0xff]
    %v2152 = vld [vmem:[#allocation4 + $0x10] sm:$0xff]
    %v2153 = vld [vmem:[#allocation4 + $0x18] sm:$0xff]
    %v2154 = vld [vmem:[#allocation4 + $0x20] sm:$0xff]
    %v2155 = vld [vmem:[#allocation4 + $0x28] sm:$0xff]
    %v2156 = vld [vmem:[#allocation4 + $0x30] sm:$0xff]
    %v2157 = vld [vmem:[#allocation4 + $0x38] sm:$0xff]
    %2158 = vadd.xlane.f32.xlu0 %v2150
    %v2159 = vpop.xlane.xlu0 %2158
    %2160 = vadd.xlane.f32.xlu0 %v2151
    %v2161 = vpop.xlane.xlu0 %2160
    %2162 = vadd.xlane.f32.xlu0 %v2152
    %v2163 = vpop.xlane.xlu0 %2162
    %2164 = vadd.xlane.f32.xlu0 %v2153
    %v2165 = vpop.xlane.xlu0 %2164
    %2166 = vadd.xlane.f32.xlu0 %v2154
    %v2167 = vpop.xlane.xlu0 %2166
    %2168 = vadd.xlane.f32.xlu0 %v2155
    %v2169 = vpop.xlane.xlu0 %2168
    %2170 = vadd.xlane.f32.xlu0 %v2156
    %v2171 = vpop.xlane.xlu0 %2170
    %2172 = vadd.xlane.f32.xlu0 %v2157
    %v2173 = vpop.xlane.xlu0 %2172
    %v2174 = vmul.f32 %v2150, %v2150
    %v2175 = vmul.f32 %v2151, %v2151
    %v2176 = vmul.f32 %v2152, %v2152
    %v2177 = vmul.f32 %v2153, %v2153
    %v2178 = vmul.f32 %v2154, %v2154
    %v2179 = vmul.f32 %v2155, %v2155
    %v2180 = vmul.f32 %v2156, %v2156
    %v2181 = vmul.f32 %v2157, %v2157
    %2182 = vadd.xlane.f32.xlu0 %v2174
    %v2183 = vpop.xlane.xlu0 %2182
    %2184 = vadd.xlane.f32.xlu0 %v2175
    %v2185 = vpop.xlane.xlu0 %2184
    %2186 = vadd.xlane.f32.xlu0 %v2176
    %v2187 = vpop.xlane.xlu0 %2186
    %2188 = vadd.xlane.f32.xlu0 %v2177
    %v2189 = vpop.xlane.xlu0 %2188
    %2190 = vadd.xlane.f32.xlu0 %v2178
    %v2191 = vpop.xlane.xlu0 %2190
    %2192 = vadd.xlane.f32.xlu0 %v2179
    %v2193 = vpop.xlane.xlu0 %2192
    %2194 = vadd.xlane.f32.xlu0 %v2180
    %v2195 = vpop.xlane.xlu0 %2194
    %2196 = vadd.xlane.f32.xlu0 %v2181
    %v2197 = vpop.xlane.xlu0 %2196
    %v2198 = vmul.f32 %v2159, 0.03125
    %v2199 = vmul.f32 %v2161, 0.03125
    %v2200 = vmul.f32 %v2163, 0.03125
    %v2201 = vmul.f32 %v2165, 0.03125
    %v2202 = vmul.f32 %v2167, 0.03125
    %v2203 = vmul.f32 %v2169, 0.03125
    %v2204 = vmul.f32 %v2171, 0.03125
    %v2205 = vmul.f32 %v2173, 0.03125
    %v2206 = vmul.f32 %v2183, 0.03125
    %v2207 = vmul.f32 %v2185, 0.03125
    %v2208 = vmul.f32 %v2187, 0.03125
    %v2209 = vmul.f32 %v2189, 0.03125
    %v2210 = vmul.f32 %v2191, 0.03125
    %v2211 = vmul.f32 %v2193, 0.03125
    %v2212 = vmul.f32 %v2195, 0.03125
    %v2213 = vmul.f32 %v2197, 0.03125
    %v2214 = vmul.f32 %v2198, %v2198
    %v2215 = vmul.f32 %v2199, %v2199
    %v2216 = vmul.f32 %v2200, %v2200
    %v2217 = vmul.f32 %v2201, %v2201
    %v2218 = vmul.f32 %v2202, %v2202
    %v2219 = vmul.f32 %v2203, %v2203
    %v2220 = vmul.f32 %v2204, %v2204
    %v2221 = vmul.f32 %v2205, %v2205
    %v2222 = vsub.f32 %v2206, %v2214
    %v2223 = vsub.f32 %v2207, %v2215
    %v2224 = vsub.f32 %v2208, %v2216
    %v2225 = vsub.f32 %v2209, %v2217
    %v2226 = vsub.f32 %v2210, %v2218
    %v2227 = vsub.f32 %v2211, %v2219
    %v2228 = vsub.f32 %v2212, %v2220
    %v2229 = vsub.f32 %v2213, %v2221
    %v2230 = vmax.f32 %v2222, 0.0
    %v2231 = vmax.f32 %v2223, 0.0
    %v2232 = vmax.f32 %v2224, 0.0
    %v2233 = vmax.f32 %v2225, 0.0
    %v2234 = vmax.f32 %v2226, 0.0
    %v2235 = vmax.f32 %v2227, 0.0
    %v2236 = vmax.f32 %v2228, 0.0
    %v2237 = vmax.f32 %v2229, 0.0
    %v2238 = vsub.f32 %v2150, %v2198
    %v2239 = vsub.f32 %v2151, %v2199
    %v2240 = vsub.f32 %v2152, %v2200
    %v2241 = vsub.f32 %v2153, %v2201
    %v2242 = vsub.f32 %v2154, %v2202
    %v2243 = vsub.f32 %v2155, %v2203
    %v2244 = vsub.f32 %v2156, %v2204
    %v2245 = vsub.f32 %v2157, %v2205
    %v2246 = vadd.f32 %v2230, 1e-05
    %v2247 = vadd.f32 %v2231, 1e-05
    %v2248 = vadd.f32 %v2232, 1e-05
    %v2249 = vadd.f32 %v2233, 1e-05
    %v2250 = vadd.f32 %v2234, 1e-05
    %v2251 = vadd.f32 %v2235, 1e-05
    %v2252 = vadd.f32 %v2236, 1e-05
    %v2253 = vadd.f32 %v2237, 1e-05
    %v2254 = vrsqrt.pop %v2246
    %v2255 = vrsqrt.pop %v2247
    %v2256 = vrsqrt.pop %v2248
    %v2257 = vrsqrt.pop %v2249
    %v2258 = vrsqrt.pop %v2250
    %v2259 = vrsqrt.pop %v2251
    %v2260 = vrsqrt.pop %v2252
    %v2261 = vrsqrt.pop %v2253
    %v2262 = vmul.f32 %v2238, %v2254
    %v2263 = vmul.f32 %v2239, %v2255
    %v2264 = vmul.f32 %v2240, %v2256
    %v2265 = vmul.f32 %v2241, %v2257
    %v2266 = vmul.f32 %v2242, %v2258
    %v2267 = vmul.f32 %v2243, %v2259
    %v2268 = vmul.f32 %v2244, %v2260
    %v2269 = vmul.f32 %v2245, %v2261
    %v2270 = vld [vmem:[%s6] sm:$0x1]
    %v2272 = vlaneseq
    %v2273 = vshrl.u32 %v2272, 7
    %v2274 = vsub.s32 0, %v2273
    %v2275 = vrot.slane %v2270, %v2274
    %v2277 = vmul.f32 %v2262, %v2275
    %v2278 = vmul.f32 %v2263, %v2275
    %v2279 = vmul.f32 %v2264, %v2275
    %v2280 = vmul.f32 %v2265, %v2275
    %v2281 = vmul.f32 %v2266, %v2275
    %v2282 = vmul.f32 %v2267, %v2275
    %v2283 = vmul.f32 %v2268, %v2275
    %v2284 = vmul.f32 %v2269, %v2275
    %v2285 = vld [vmem:[%s7] sm:$0x1]
    %v2287 = vlaneseq
    %v2288 = vshrl.u32 %v2287, 7
    %v2289 = vsub.s32 0, %v2288
    %v2290 = vrot.slane %v2285, %v2289
    %v2292 = vadd.f32 %v2277, %v2290
    %v2293 = vadd.f32 %v2278, %v2290
    %v2294 = vadd.f32 %v2279, %v2290
    %v2295 = vadd.f32 %v2280, %v2290
    %v2296 = vadd.f32 %v2281, %v2290
    %v2297 = vadd.f32 %v2282, %v2290
    %v2298 = vadd.f32 %v2283, %v2290
    %v2299 = vadd.f32 %v2284, %v2290
    %v2300 = vxor.u32 %v2292, 2147483648
    %v2301 = vxor.u32 %v2293, 2147483648
    %v2302 = vxor.u32 %v2294, 2147483648
    %v2303 = vxor.u32 %v2295, 2147483648
    %v2304 = vxor.u32 %v2296, 2147483648
    %v2305 = vxor.u32 %v2297, 2147483648
    %v2306 = vxor.u32 %v2298, 2147483648
    %v2307 = vxor.u32 %v2299, 2147483648
    %v2308 = vmul.f32 %v2300, 1.442695
    %v2309 = vpow.pop %v2308
    %v2310 = vmul.f32 %v2301, 1.442695
    %v2311 = vpow.pop %v2310
    %v2312 = vmul.f32 %v2302, 1.442695
    %v2313 = vpow.pop %v2312
    %v2314 = vmul.f32 %v2303, 1.442695
    %v2315 = vpow.pop %v2314
    %v2316 = vmul.f32 %v2304, 1.442695
    %v2317 = vpow.pop %v2316
    %v2318 = vmul.f32 %v2305, 1.442695
    %v2319 = vpow.pop %v2318
    %v2320 = vmul.f32 %v2306, 1.442695
    %v2321 = vpow.pop %v2320
    %v2322 = vmul.f32 %v2307, 1.442695
    %v2323 = vpow.pop %v2322
    %v2324 = vadd.f32 %v2309, 1.0
    %v2325 = vadd.f32 %v2311, 1.0
    %v2326 = vadd.f32 %v2313, 1.0
    %v2327 = vadd.f32 %v2315, 1.0
    %v2328 = vadd.f32 %v2317, 1.0
    %v2329 = vadd.f32 %v2319, 1.0
    %v2330 = vadd.f32 %v2321, 1.0
    %v2331 = vadd.f32 %v2323, 1.0
    %v2332 = vrcp.pop %v2324
    %v2333 = vmul.f32 1.0, %v2332
    %v2334 = vrcp.pop %v2325
    %v2335 = vmul.f32 1.0, %v2334
    %v2336 = vrcp.pop %v2326
    %v2337 = vmul.f32 1.0, %v2336
    %v2338 = vrcp.pop %v2327
    %v2339 = vmul.f32 1.0, %v2338
    %v2340 = vrcp.pop %v2328
    %v2341 = vmul.f32 1.0, %v2340
    %v2342 = vrcp.pop %v2329
    %v2343 = vmul.f32 1.0, %v2342
    %v2344 = vrcp.pop %v2330
    %v2345 = vmul.f32 1.0, %v2344
    %v2346 = vrcp.pop %v2331
    %v2347 = vmul.f32 1.0, %v2346
    %v2348 = vmul.f32 %v2292, %v2333
    %v2349 = vmul.f32 %v2293, %v2335
    %v2350 = vmul.f32 %v2294, %v2337
    %v2351 = vmul.f32 %v2295, %v2339
    %v2352 = vmul.f32 %v2296, %v2341
    %v2353 = vmul.f32 %v2297, %v2343
    %v2354 = vmul.f32 %v2298, %v2345
    %v2355 = vmul.f32 %v2299, %v2347
    %2356 = vst [vmem:[#allocation13] sm:$0xff] %v2348
    %2357 = vst [vmem:[#allocation13 + $0x8] sm:$0xff] %v2349
    %2358 = vst [vmem:[#allocation13 + $0x10] sm:$0xff] %v2350
    %2359 = vst [vmem:[#allocation13 + $0x18] sm:$0xff] %v2351
    %2360 = vst [vmem:[#allocation13 + $0x20] sm:$0xff] %v2352
    %2361 = vst [vmem:[#allocation13 + $0x28] sm:$0xff] %v2353
    %2362 = vst [vmem:[#allocation13 + $0x30] sm:$0xff] %v2354
    %2363 = vst [vmem:[#allocation13 + $0x38] sm:$0xff] %v2355
    // Predicated region
    $region54: #{tpu_custom_call.1} parent=1 // pred_check
      %p2364 = pneg %p86
    $region55: #{tpu_custom_call.1} parent=1 // pred_check_branch
      %2366 = sbr.rel (%p2364) target = $region57
    $region56: #{tpu_custom_call.1} parent=1 // pred_region
      %2367 = vst [vmem:[#allocation14] sm:$0xff] %v2146
    $region57: #{tpu_custom_call.1} parent=1 // pred_fallthru
      _
    // Predicated region
    $region58: #{tpu_custom_call.1} parent=1 // pred_check
      _
    $region59: #{tpu_custom_call.1} parent=1 // pred_check_branch
      %2369 = sbr.rel (0) target = $region61
    $region60: #{tpu_custom_call.1} parent=1 // pred_region
      %s2371 = ssub.s32 1024, 1024
      %2372 = vsyncadd [#allocation7], %s2371
      %s2373 = sshll.u32 [#allocation13], 4
      %s2374 = int_to_ptr.vmem [resolvable:$true] %s2373
      %2379 = dma.vmem_to_hbm [thread:$0]  %s2374, 1024, %s8, [#allocation7], 128, 128, 8
    $region61: #{tpu_custom_call.1} parent=1 // pred_fallthru
      _
    // Predicated region
    $region62: #{tpu_custom_call.1} parent=1 // pred_check
      _
    $region63: #{tpu_custom_call.1} parent=1 // pred_check_branch
      %2381 = sbr.rel (0) target = $region65
    $region64: #{tpu_custom_call.1} parent=1 // pred_region
      %s2383 = ssub.s32 128, 128
      %2384 = vsyncadd [#allocation15], %s2383
      %s2386 = sshll.u32 [#allocation14], 4
      %s2387 = int_to_ptr.vmem [resolvable:$true] %s2386
      %2389 = dma.vmem_to_hbm [thread:$0]  %s2387, 128, %s9, [#allocation15]
    $region65: #{tpu_custom_call.1} parent=1 // pred_fallthru
      _
    // Predicated region
    $region66: #{tpu_custom_call.1} parent=1 // pred_check
      _
    $region67: #{tpu_custom_call.1} parent=1 // pred_check_branch
      %2391 = sbr.rel (0) target = $region69
    $region68: #{tpu_custom_call.1} parent=1 // pred_region
      %2392 = dma.done [#allocation7], 1024
    $region69: #{tpu_custom_call.1} parent=1 // pred_fallthru
      _
    // Predicated region
    $region70: #{tpu_custom_call.1} parent=1 // pred_check
      _
    $region71: #{tpu_custom_call.1} parent=1 // pred_check_branch
      %2394 = sbr.rel (0) target = $region73
    $region72: #{tpu_custom_call.1} parent=1 // pred_region
      %2395 = dma.done [#allocation15], 128
    $region73: #{tpu_custom_call.1} parent=1 // pred_fallthru
      _
    %2396 = vsyncpa [#allocation6], 1
    %2397 = vsyncpa [#allocation9], 1
    %2398 = vsyncpa [#allocation12], 1
    %2399 = vsyncpa [#allocation7], 1
    %2400 = vsyncpa [#allocation15], 1

</llo_original>
